<compile_context>
chip_gen: v5e
topology: v5e:2x2
jax: 0.10.0
libtpu: 0.0.40
codegen_flags: <defaults>
</compile_context>

<pallas_src>
import functools

import jax
import jax.numpy as jnp
from jax.experimental import pallas as pl
from jax.experimental.pallas import tpu as pltpu


def basic_block_kernel(x_ref, w1_ref, b1_ref, w2_ref, b2_ref, o_ref, pad_ref,
                       *, H, W, pad):
    """One image per grid step.

    x_ref:   (1, H*W, C)        f32   input rows (channels on lanes)
    w1_ref:  (9*C, C)           bf16  conv1 weight, bn1 scale folded in
    b1_ref:  (1, C)             f32   bn1 shift
    w2_ref:  (9*C, C)           bf16  conv2 weight, bn2 scale folded in
    b2_ref:  (1, C)             f32   bn2 shift
    o_ref:   (1, H*W, C)        f32   output rows
    pad_ref: (2*pad + H*W, C)   f32   scratch: zero halo rows around the image
    """
    HW = H * W
    C = pad_ref.shape[1]

    # Re-zero only the top/bottom halo rows; the interior rows are fully
    # overwritten below, so no full-buffer zero fill is needed.
    zeros_halo = jnp.zeros((pad, C), jnp.float32)
    pad_ref[0:pad, :] = zeros_halo
    pad_ref[pad + HW:2 * pad + HW, :] = zeros_halo

    # Masks killing horizontally wrapped taps (left / right image border).
    col = jax.lax.broadcasted_iota(jnp.int32, (HW, 1), 0) % W
    not_left = col != 0
    not_right = col != W - 1

    def conv3x3_bias(w_ref, b_ref):
        # pad_ref interior holds the conv input (rows = pixels, lanes = chans).
        taps = []
        for dh in range(3):
            for dw in range(3):
                start = pad + (dh - 1) * W + (dw - 1)
                patch = pad_ref[start:start + HW, :]           # (HW, C) f32
                if dw == 0:
                    patch = jnp.where(not_left, patch, 0.0)
                elif dw == 2:
                    patch = jnp.where(not_right, patch, 0.0)
                taps.append(patch)
        lhs = jnp.concatenate(taps, axis=-1).astype(jnp.bfloat16)   # (HW, 9C)
        acc = jnp.dot(lhs, w_ref[...], preferred_element_type=jnp.float32)
        return acc + b_ref[...]                                 # (HW, C) f32

    # conv1 -> bn1 -> relu
    pad_ref[pad:pad + HW, :] = x_ref[0]
    h1 = jnp.maximum(conv3x3_bias(w1_ref, b1_ref), 0.0)

    # conv2 -> bn2
    pad_ref[pad:pad + HW, :] = h1
    h2 = conv3x3_bias(w2_ref, b2_ref)

    # residual add + relu (re-read x_ref here to keep its live range short)
    o_ref[0] = jnp.maximum(h2 + x_ref[0], 0.0).astype(o_ref.dtype)


def basic_block_forward(x_nchw, w1, s1, b1, w2, s2, b2):
    """BasicBlock forward (stride=1, downsample=None).

    x_nchw : (N, C, H, W) f32
    w1, w2 : (3, 3, C, C) f32 conv weights laid out (kh, kw, cin, cout)
             (== PyTorch (cout, cin, kh, kw) transposed by (2, 3, 1, 0))
    s?, b? : (C,) folded BatchNorm2d (eval-mode) scale / shift
    """
    N, Cin, H, W = x_nchw.shape
    C = w1.shape[-1]
    # TODO(synk): stride>1 / downsample branch of BasicBlock not implemented
    # (module defaults stride=1, downsample=None => Cin == planes required).
    assert Cin == C and w1.shape == (3, 3, Cin, C) and w2.shape == (3, 3, C, C)

    HW = H * W
    pad = ((W + 1 + 7) // 8) * 8          # halo rows, >= W+1, sublane-aligned
    R = 2 * pad + HW

    # Fold BN scales into conv output channels; only the shift stays in-kernel.
    # Weights are bf16 MXU operands (accumulation stays f32 in the kernel).
    w1m = (w1 * s1).reshape(9 * Cin, C).astype(jnp.bfloat16)
    w2m = (w2 * s2).reshape(9 * C, C).astype(jnp.bfloat16)
    b1m = b1.reshape(1, C).astype(jnp.float32)
    b2m = b2.reshape(1, C).astype(jnp.float32)

    # NCHW -> channels-last pixel rows (N, H*W, C)
    x_rows = jnp.transpose(x_nchw, (0, 2, 3, 1)).reshape(N, HW, Cin)
    x_rows = x_rows.astype(jnp.float32)

    kernel = functools.partial(basic_block_kernel, H=H, W=W, pad=pad)

    out_rows = pl.pallas_call(
        kernel,
        out_shape=jax.ShapeDtypeStruct((N, HW, C), jnp.float32),
        grid_spec=pltpu.PrefetchScalarGridSpec(
            num_scalar_prefetch=0,
            grid=(N,),
            in_specs=[
                pl.BlockSpec((1, HW, Cin), lambda n: (n, 0, 0)),
                pl.BlockSpec((9 * Cin, C), lambda n: (0, 0)),
                pl.BlockSpec((1, C), lambda n: (0, 0)),
                pl.BlockSpec((9 * C, C), lambda n: (0, 0)),
                pl.BlockSpec((1, C), lambda n: (0, 0)),
            ],
            out_specs=pl.BlockSpec((1, HW, C), lambda n: (n, 0, 0)),
            scratch_shapes=[pltpu.VMEM((R, C), jnp.float32)],
        ),
        compiler_params=pltpu.CompilerParams(
            dimension_semantics=("parallel",)),
    )(x_rows, w1m, b1m, w2m, b2m)

    return jnp.transpose(out_rows.reshape(N, H, W, C), (0, 3, 1, 2))


def basic_block_reference(x_nchw, w1, s1, b1, w2, s2, b2):
    """Pure-JAX f32 reference (unfolded BN, NHWC internally)."""
    x = jnp.transpose(x_nchw, (0, 2, 3, 1)).astype(jnp.float32)

    def conv3x3(h, w):
        N, H, W_, _ = h.shape
        hp = jnp.pad(h, ((0, 0), (1, 1), (1, 1), (0, 0)))
        acc = jnp.zeros((N, H, W_, w.shape[-1]), jnp.float32)
        for dh in range(3):
            for dw in range(3):
                acc = acc + jnp.einsum('nhwc,cd->nhwd',
                                       hp[:, dh:dh + H, dw:dw + W_, :], w[dh, dw])
        return acc

    h = jnp.maximum(conv3x3(x, w1) * s1 + b1, 0.0)
    h = conv3x3(h, w2) * s2 + b2
    out = jnp.maximum(h + x, 0.0)
    return jnp.transpose(out, (0, 3, 1, 2))


def fold_bn(gamma, beta, running_mean, running_var, eps=1e-5):
    """BatchNorm2d (eval mode) folded into per-channel scale/shift, shape (C,)."""
    scale = gamma / jnp.sqrt(running_var + eps)
    shift = beta - running_mean * scale
    return scale, shift


if __name__ == "__main__":
    # BasicBlock(inplanes=128, planes=128), stride=1, downsample=None.
    # C=128 keeps every load/store lane-dense (full 128-lane last dim).
    N, C, H, W = 2, 128, 16, 16

    key = jax.random.PRNGKey(0)
    keys = jax.random.split(key, 5)

    x = jax.random.normal(keys[0], (N, C, H, W), jnp.float32)

    # conv3x3 weights (bias=False), stored as (kh, kw, cin, cout).
    w1 = 0.1 * jax.random.normal(keys[1], (3, 3, C, C), jnp.float32)
    w2 = 0.1 * jax.random.normal(keys[2], (3, 3, C, C), jnp.float32)

    def bn_params(k, c):
        g = 1.0 + 0.1 * jax.random.normal(jax.random.fold_in(k, 0), (c,), jnp.float32)
        b = 0.1 * jax.random.normal(jax.random.fold_in(k, 1), (c,), jnp.float32)
        m = 0.05 * jax.random.normal(jax.random.fold_in(k, 2), (c,), jnp.float32)
        v = 1.0 + jax.nn.softplus(
            jax.random.normal(jax.random.fold_in(k, 3), (c,), jnp.float32))
        return fold_bn(g, b, m, v)

    s1, b1 = bn_params(keys[3], C)
    s2, b2 = bn_params(keys[4], C)

    out = basic_block_forward(x, w1, s1, b1, w2, s2, b2)
    out = jax.block_until_ready(out)

    ref = basic_block_reference(x, w1, s1, b1, w2, s2, b2)
    assert out.shape == (N, C, H, W)

    # bf16 MXU operands (f32 accumulation) => compare at bf16-level tolerance.
    err = jnp.max(jnp.abs(out - ref))
    tol = 3e-2 * (jnp.max(jnp.abs(ref)) + 1.0)
    assert err <= tol, f"max abs err {err} > tol {tol}"

    print("KERNEL_OK")
</pallas_src>

<mosaic_0001>
module attributes {stable_mosaic.version = 11 : i64} {
  func.func @basic_block_kernel(%arg0: i32, %arg1: memref<1x256x128xf32, #tpu.memory_space<vmem>>, %arg2: memref<1152x128xbf16, #tpu.memory_space<vmem>>, %arg3: memref<1x128xf32, #tpu.memory_space<vmem>>, %arg4: memref<1152x128xbf16, #tpu.memory_space<vmem>>, %arg5: memref<1x128xf32, #tpu.memory_space<vmem>>, %arg6: memref<1x256x128xf32, #tpu.memory_space<vmem>>, %arg7: memref<304x128xf32, #tpu.memory_space<vmem>>) attributes {dimension_semantics = [#tpu.dimension_semantics<parallel>], iteration_bounds = array<i64: 2>, scalar_prefetch = 0 : i64, scratch_operands = 1 : i64, tpu.core_type = #tpu.core_type<tc>, window_params = [{transform_indices = @transform_0, window_bounds = array<i64: 1, 256, 128>}, {pipeline_mode = #tpu.pipeline_mode<synchronous>, transform_indices = @transform_1, window_bounds = array<i64: 1152, 128>}, {pipeline_mode = #tpu.pipeline_mode<synchronous>, transform_indices = @transform_2, window_bounds = array<i64: 1, 128>}, {pipeline_mode = #tpu.pipeline_mode<synchronous>, transform_indices = @transform_3, window_bounds = array<i64: 1152, 128>}, {pipeline_mode = #tpu.pipeline_mode<synchronous>, transform_indices = @transform_4, window_bounds = array<i64: 1, 128>}, {transform_indices = @transform_5, window_bounds = array<i64: 1, 256, 128>}]} {
    %cst = arith.constant 0.000000e+00 : f32
    %0 = vector.broadcast %cst : f32 to vector<24x128xf32>
    %c0 = arith.constant 0 : index
    %c0_0 = arith.constant 0 : index
    %1 = vector.load %arg7[%c0, %c0_0] : memref<304x128xf32, #tpu.memory_space<vmem>>, vector<24x128xf32>
    tpu.vector_store %arg7[%c0, %c0_0], %0 {strides = array<i32>} : memref<304x128xf32, #tpu.memory_space<vmem>>, vector<24x128xf32>,
    %c280 = arith.constant 280 : index
    %c0_1 = arith.constant 0 : index
    %2 = vector.load %arg7[%c280, %c0_1] : memref<304x128xf32, #tpu.memory_space<vmem>>, vector<24x128xf32>
    tpu.vector_store %arg7[%c280, %c0_1], %0 {strides = array<i32>} : memref<304x128xf32, #tpu.memory_space<vmem>>, vector<24x128xf32>,
    %3 = tpu.iota {dimensions = array<i32: 0>} : vector<256x1xi32>
    %c16_i32 = arith.constant 16 : i32
    %c0_i32 = arith.constant 0 : i32
    %4 = arith.cmpi eq, %c16_i32, %c0_i32 : i32
    %c1_i32 = arith.constant 1 : i32
    %5 = arith.select %4, %c1_i32, %c16_i32 : i32
    %6 = vector.broadcast %5 : i32 to vector<256x1xi32>
    %7 = arith.remsi %3, %6 : vector<256x1xi32>
    %c0_i32_2 = arith.constant 0 : i32
    %8 = vector.broadcast %c0_i32_2 : i32 to vector<256x1xi32>
    %9 = arith.cmpi ne, %7, %8 : vector<256x1xi32>
    %c0_i32_3 = arith.constant 0 : i32
    %10 = vector.broadcast %c0_i32_3 : i32 to vector<256x1xi32>
    %11 = arith.cmpi slt, %7, %10 : vector<256x1xi32>
    %c0_i32_4 = arith.constant 0 : i32
    %12 = arith.cmpi slt, %5, %c0_i32_4 : i32
    %13 = vector.broadcast %12 : i1 to vector<256x1xi1>
    %14 = vector.broadcast %13 : vector<256x1xi1> to vector<256x1xi1>
    %15 = arith.xori %11, %14 : vector<256x1xi1>
    %16 = arith.andi %15, %9 : vector<256x1xi1>
    %17 = vector.broadcast %5 : i32 to vector<256x1xi32>
    %18 = arith.addi %7, %17 : vector<256x1xi32>
    %19 = arith.select %16, %18, %7 : vector<256x1xi1>, vector<256x1xi32>
    %c0_i32_5 = arith.constant 0 : i32
    %20 = vector.broadcast %c0_i32_5 : i32 to vector<256x1xi32>
    %21 = arith.cmpi ne, %19, %20 : vector<256x1xi32>
    %c15_i32 = arith.constant 15 : i32
    %22 = vector.broadcast %c15_i32 : i32 to vector<256x1xi32>
    %23 = arith.cmpi ne, %19, %22 : vector<256x1xi32>
    %c0_6 = arith.constant 0 : index
    %c0_7 = arith.constant 0 : index
    %c0_8 = arith.constant 0 : index
    %24 = vector.load %arg1[%c0_6, %c0_7, %c0_8] : memref<1x256x128xf32, #tpu.memory_space<vmem>>, vector<1x256x128xf32>
    %25 = vector.shape_cast %24 : vector<1x256x128xf32> to vector<256x128xf32>
    %c24 = arith.constant 24 : index
    %c0_9 = arith.constant 0 : index
    %26 = vector.load %arg7[%c24, %c0_9] : memref<304x128xf32, #tpu.memory_space<vmem>>, vector<256x128xf32>
    tpu.vector_store %arg7[%c24, %c0_9], %25 {strides = array<i32>} : memref<304x128xf32, #tpu.memory_space<vmem>>, vector<256x128xf32>,
    %c7 = arith.constant 7 : index
    %c0_10 = arith.constant 0 : index
    %27 = vector.load %arg7[%c7, %c0_10] : memref<304x128xf32, #tpu.memory_space<vmem>>, vector<256x128xf32>
    %cst_11 = arith.constant 0.000000e+00 : f32
    %28 = vector.shape_cast %21 : vector<256x1xi1> to vector<256x1xi1>
    %29 = vector.broadcast %28 : vector<256x1xi1> to vector<256x128xi1>
    %30 = vector.broadcast %cst_11 : f32 to vector<256x128xf32>
    %31 = arith.select %29, %27, %30 : vector<256x128xi1>, vector<256x128xf32>
    %c8 = arith.constant 8 : index
    %c0_12 = arith.constant 0 : index
    %32 = vector.load %arg7[%c8, %c0_12] : memref<304x128xf32, #tpu.memory_space<vmem>>, vector<256x128xf32>
    %c9 = arith.constant 9 : index
    %c0_13 = arith.constant 0 : index
    %33 = vector.load %arg7[%c9, %c0_13] : memref<304x128xf32, #tpu.memory_space<vmem>>, vector<256x128xf32>
    %cst_14 = arith.constant 0.000000e+00 : f32
    %34 = vector.shape_cast %23 : vector<256x1xi1> to vector<256x1xi1>
    %35 = vector.broadcast %34 : vector<256x1xi1> to vector<256x128xi1>
    %36 = vector.broadcast %cst_14 : f32 to vector<256x128xf32>
    %37 = arith.select %35, %33, %36 : vector<256x128xi1>, vector<256x128xf32>
    %c23 = arith.constant 23 : index
    %c0_15 = arith.constant 0 : index
    %38 = vector.load %arg7[%c23, %c0_15] : memref<304x128xf32, #tpu.memory_space<vmem>>, vector<256x128xf32>
    %cst_16 = arith.constant 0.000000e+00 : f32
    %39 = vector.shape_cast %21 : vector<256x1xi1> to vector<256x1xi1>
    %40 = vector.broadcast %39 : vector<256x1xi1> to vector<256x128xi1>
    %41 = vector.broadcast %cst_16 : f32 to vector<256x128xf32>
    %42 = arith.select %40, %38, %41 : vector<256x128xi1>, vector<256x128xf32>
    %c24_17 = arith.constant 24 : index
    %c0_18 = arith.constant 0 : index
    %43 = vector.load %arg7[%c24_17, %c0_18] : memref<304x128xf32, #tpu.memory_space<vmem>>, vector<256x128xf32>
    %c25 = arith.constant 25 : index
    %c0_19 = arith.constant 0 : index
    %44 = vector.load %arg7[%c25, %c0_19] : memref<304x128xf32, #tpu.memory_space<vmem>>, vector<256x128xf32>
    %cst_20 = arith.constant 0.000000e+00 : f32
    %45 = vector.shape_cast %23 : vector<256x1xi1> to vector<256x1xi1>
    %46 = vector.broadcast %45 : vector<256x1xi1> to vector<256x128xi1>
    %47 = vector.broadcast %cst_20 : f32 to vector<256x128xf32>
    %48 = arith.select %46, %44, %47 : vector<256x128xi1>, vector<256x128xf32>
    %c39 = arith.constant 39 : index
    %c0_21 = arith.constant 0 : index
    %49 = vector.load %arg7[%c39, %c0_21] : memref<304x128xf32, #tpu.memory_space<vmem>>, vector<256x128xf32>
    %cst_22 = arith.constant 0.000000e+00 : f32
    %50 = vector.shape_cast %21 : vector<256x1xi1> to vector<256x1xi1>
    %51 = vector.broadcast %50 : vector<256x1xi1> to vector<256x128xi1>
    %52 = vector.broadcast %cst_22 : f32 to vector<256x128xf32>
    %53 = arith.select %51, %49, %52 : vector<256x128xi1>, vector<256x128xf32>
    %c40 = arith.constant 40 : index
    %c0_23 = arith.constant 0 : index
    %54 = vector.load %arg7[%c40, %c0_23] : memref<304x128xf32, #tpu.memory_space<vmem>>, vector<256x128xf32>
    %c41 = arith.constant 41 : index
    %c0_24 = arith.constant 0 : index
    %55 = vector.load %arg7[%c41, %c0_24] : memref<304x128xf32, #tpu.memory_space<vmem>>, vector<256x128xf32>
    %cst_25 = arith.constant 0.000000e+00 : f32
    %56 = vector.shape_cast %23 : vector<256x1xi1> to vector<256x1xi1>
    %57 = vector.broadcast %56 : vector<256x1xi1> to vector<256x128xi1>
    %58 = vector.broadcast %cst_25 : f32 to vector<256x128xf32>
    %59 = arith.select %57, %55, %58 : vector<256x128xi1>, vector<256x128xf32>
    %60 = tpu.concatenate %31, %32, %37, %42, %43, %48, %53, %54, %59 in 1 : vector<256x128xf32>, vector<256x128xf32>, vector<256x128xf32>, vector<256x128xf32>, vector<256x128xf32>, vector<256x128xf32>, vector<256x128xf32>, vector<256x128xf32>, vector<256x128xf32> -> vector<256x1152xf32>
    %61 = arith.truncf %60 : vector<256x1152xf32> to vector<256x1152xbf16>
    %c0_26 = arith.constant 0 : index
    %c0_27 = arith.constant 0 : index
    %62 = vector.load %arg2[%c0_26, %c0_27] : memref<1152x128xbf16, #tpu.memory_space<vmem>>, vector<1152x128xbf16>
    %cst_28 = arith.constant dense<0.000000e+00> : vector<256x128xf32>
    %63 = tpu.matmul %61, %62, %cst_28 {dimension_numbers = #tpu.dot_dimension_numbers<[1], [0], [0], [1], [0, 0, 1, 1], [], []>} : vector<256x1152xbf16>, vector<1152x128xbf16>, vector<256x128xf32> -> vector<256x128xf32>
    %c0_29 = arith.constant 0 : index
    %c0_30 = arith.constant 0 : index
    %64 = vector.load %arg3[%c0_29, %c0_30] : memref<1x128xf32, #tpu.memory_space<vmem>>, vector<1x128xf32>
    %65 = vector.broadcast %64 : vector<1x128xf32> to vector<256x128xf32>
    %66 = arith.addf %63, %65 : vector<256x128xf32>
    %cst_31 = arith.constant 0.000000e+00 : f32
    %67 = vector.broadcast %cst_31 : f32 to vector<256x128xf32>
    %68 = arith.maximumf %66, %67 : vector<256x128xf32>
    %c24_32 = arith.constant 24 : index
    %c0_33 = arith.constant 0 : index
    %69 = vector.load %arg7[%c24_32, %c0_33] : memref<304x128xf32, #tpu.memory_space<vmem>>, vector<256x128xf32>
    tpu.vector_store %arg7[%c24_32, %c0_33], %68 {strides = array<i32>} : memref<304x128xf32, #tpu.memory_space<vmem>>, vector<256x128xf32>,
    %c7_34 = arith.constant 7 : index
    %c0_35 = arith.constant 0 : index
    %70 = vector.load %arg7[%c7_34, %c0_35] : memref<304x128xf32, #tpu.memory_space<vmem>>, vector<256x128xf32>
    %cst_36 = arith.constant 0.000000e+00 : f32
    %71 = vector.shape_cast %21 : vector<256x1xi1> to vector<256x1xi1>
    %72 = vector.broadcast %71 : vector<256x1xi1> to vector<256x128xi1>
    %73 = vector.broadcast %cst_36 : f32 to vector<256x128xf32>
    %74 = arith.select %72, %70, %73 : vector<256x128xi1>, vector<256x128xf32>
    %c8_37 = arith.constant 8 : index
    %c0_38 = arith.constant 0 : index
    %75 = vector.load %arg7[%c8_37, %c0_38] : memref<304x128xf32, #tpu.memory_space<vmem>>, vector<256x128xf32>
    %c9_39 = arith.constant 9 : index
    %c0_40 = arith.constant 0 : index
    %76 = vector.load %arg7[%c9_39, %c0_40] : memref<304x128xf32, #tpu.memory_space<vmem>>, vector<256x128xf32>
    %cst_41 = arith.constant 0.000000e+00 : f32
    %77 = vector.shape_cast %23 : vector<256x1xi1> to vector<256x1xi1>
    %78 = vector.broadcast %77 : vector<256x1xi1> to vector<256x128xi1>
    %79 = vector.broadcast %cst_41 : f32 to vector<256x128xf32>
    %80 = arith.select %78, %76, %79 : vector<256x128xi1>, vector<256x128xf32>
    %c23_42 = arith.constant 23 : index
    %c0_43 = arith.constant 0 : index
    %81 = vector.load %arg7[%c23_42, %c0_43] : memref<304x128xf32, #tpu.memory_space<vmem>>, vector<256x128xf32>
    %cst_44 = arith.constant 0.000000e+00 : f32
    %82 = vector.shape_cast %21 : vector<256x1xi1> to vector<256x1xi1>
    %83 = vector.broadcast %82 : vector<256x1xi1> to vector<256x128xi1>
    %84 = vector.broadcast %cst_44 : f32 to vector<256x128xf32>
    %85 = arith.select %83, %81, %84 : vector<256x128xi1>, vector<256x128xf32>
    %c24_45 = arith.constant 24 : index
    %c0_46 = arith.constant 0 : index
    %86 = vector.load %arg7[%c24_45, %c0_46] : memref<304x128xf32, #tpu.memory_space<vmem>>, vector<256x128xf32>
    %c25_47 = arith.constant 25 : index
    %c0_48 = arith.constant 0 : index
    %87 = vector.load %arg7[%c25_47, %c0_48] : memref<304x128xf32, #tpu.memory_space<vmem>>, vector<256x128xf32>
    %cst_49 = arith.constant 0.000000e+00 : f32
    %88 = vector.shape_cast %23 : vector<256x1xi1> to vector<256x1xi1>
    %89 = vector.broadcast %88 : vector<256x1xi1> to vector<256x128xi1>
    %90 = vector.broadcast %cst_49 : f32 to vector<256x128xf32>
    %91 = arith.select %89, %87, %90 : vector<256x128xi1>, vector<256x128xf32>
    %c39_50 = arith.constant 39 : index
    %c0_51 = arith.constant 0 : index
    %92 = vector.load %arg7[%c39_50, %c0_51] : memref<304x128xf32, #tpu.memory_space<vmem>>, vector<256x128xf32>
    %cst_52 = arith.constant 0.000000e+00 : f32
    %93 = vector.shape_cast %21 : vector<256x1xi1> to vector<256x1xi1>
    %94 = vector.broadcast %93 : vector<256x1xi1> to vector<256x128xi1>
    %95 = vector.broadcast %cst_52 : f32 to vector<256x128xf32>
    %96 = arith.select %94, %92, %95 : vector<256x128xi1>, vector<256x128xf32>
    %c40_53 = arith.constant 40 : index
    %c0_54 = arith.constant 0 : index
    %97 = vector.load %arg7[%c40_53, %c0_54] : memref<304x128xf32, #tpu.memory_space<vmem>>, vector<256x128xf32>
    %c41_55 = arith.constant 41 : index
    %c0_56 = arith.constant 0 : index
    %98 = vector.load %arg7[%c41_55, %c0_56] : memref<304x128xf32, #tpu.memory_space<vmem>>, vector<256x128xf32>
    %cst_57 = arith.constant 0.000000e+00 : f32
    %99 = vector.shape_cast %23 : vector<256x1xi1> to vector<256x1xi1>
    %100 = vector.broadcast %99 : vector<256x1xi1> to vector<256x128xi1>
    %101 = vector.broadcast %cst_57 : f32 to vector<256x128xf32>
    %102 = arith.select %100, %98, %101 : vector<256x128xi1>, vector<256x128xf32>
    %103 = tpu.concatenate %74, %75, %80, %85, %86, %91, %96, %97, %102 in 1 : vector<256x128xf32>, vector<256x128xf32>, vector<256x128xf32>, vector<256x128xf32>, vector<256x128xf32>, vector<256x128xf32>, vector<256x128xf32>, vector<256x128xf32>, vector<256x128xf32> -> vector<256x1152xf32>
    %104 = arith.truncf %103 : vector<256x1152xf32> to vector<256x1152xbf16>
    %c0_58 = arith.constant 0 : index
    %c0_59 = arith.constant 0 : index
    %105 = vector.load %arg4[%c0_58, %c0_59] : memref<1152x128xbf16, #tpu.memory_space<vmem>>, vector<1152x128xbf16>
    %cst_60 = arith.constant dense<0.000000e+00> : vector<256x128xf32>
    %106 = tpu.matmul %104, %105, %cst_60 {dimension_numbers = #tpu.dot_dimension_numbers<[1], [0], [0], [1], [0, 0, 1, 1], [], []>} : vector<256x1152xbf16>, vector<1152x128xbf16>, vector<256x128xf32> -> vector<256x128xf32>
    %c0_61 = arith.constant 0 : index
    %c0_62 = arith.constant 0 : index
    %107 = vector.load %arg5[%c0_61, %c0_62] : memref<1x128xf32, #tpu.memory_space<vmem>>, vector<1x128xf32>
    %108 = vector.broadcast %107 : vector<1x128xf32> to vector<256x128xf32>
    %109 = arith.addf %106, %108 : vector<256x128xf32>
    %c0_63 = arith.constant 0 : index
    %c0_64 = arith.constant 0 : index
    %c0_65 = arith.constant 0 : index
    %110 = vector.load %arg1[%c0_63, %c0_64, %c0_65] : memref<1x256x128xf32, #tpu.memory_space<vmem>>, vector<1x256x128xf32>
    %111 = vector.shape_cast %110 : vector<1x256x128xf32> to vector<256x128xf32>
    %112 = arith.addf %109, %111 : vector<256x128xf32>
    %cst_66 = arith.constant 0.000000e+00 : f32
    %113 = vector.broadcast %cst_66 : f32 to vector<256x128xf32>
    %114 = arith.maximumf %112, %113 : vector<256x128xf32>
    %c0_67 = arith.constant 0 : index
    %c0_68 = arith.constant 0 : index
    %c0_69 = arith.constant 0 : index
    %115 = vector.load %arg6[%c0_67, %c0_68, %c0_69] : memref<1x256x128xf32, #tpu.memory_space<vmem>>, vector<1x256x128xf32>
    %116 = vector.shape_cast %115 : vector<1x256x128xf32> to vector<256x128xf32>
    %117 = vector.shape_cast %114 : vector<256x128xf32> to vector<1x256x128xf32>
    tpu.vector_store %arg6[%c0_67, %c0_68, %c0_69], %117 {strides = array<i32>} : memref<1x256x128xf32, #tpu.memory_space<vmem>>, vector<1x256x128xf32>,
    return
  }
  func.func @transform_0(%arg0: i32) -> (i32, i32, i32) {
    %c0_i32 = arith.constant 0 : i32
    %c0_i32_0 = arith.constant 0 : i32
    %c0_i32_1 = arith.constant 0 : i32
    return %arg0, %c0_i32, %c0_i32_0 : i32, i32, i32
  }
  func.func @transform_1(%arg0: i32) -> (i32, i32) {
    %c0_i32 = arith.constant 0 : i32
    %c0_i32_0 = arith.constant 0 : i32
    %c0_i32_1 = arith.constant 0 : i32
    return %c0_i32, %c0_i32_0 : i32, i32
  }
  func.func @transform_2(%arg0: i32) -> (i32, i32) {
    %c0_i32 = arith.constant 0 : i32
    %c0_i32_0 = arith.constant 0 : i32
    %c0_i32_1 = arith.constant 0 : i32
    return %c0_i32, %c0_i32_0 : i32, i32
  }
  func.func @transform_3(%arg0: i32) -> (i32, i32) {
    %c0_i32 = arith.constant 0 : i32
    %c0_i32_0 = arith.constant 0 : i32
    %c0_i32_1 = arith.constant 0 : i32
    return %c0_i32, %c0_i32_0 : i32, i32
  }
  func.func @transform_4(%arg0: i32) -> (i32, i32) {
    %c0_i32 = arith.constant 0 : i32
    %c0_i32_0 = arith.constant 0 : i32
    %c0_i32_1 = arith.constant 0 : i32
    return %c0_i32, %c0_i32_0 : i32, i32
  }
  func.func @transform_5(%arg0: i32) -> (i32, i32, i32) {
    %c0_i32 = arith.constant 0 : i32
    %c0_i32_0 = arith.constant 0 : i32
    %c0_i32_1 = arith.constant 0 : i32
    return %arg0, %c0_i32, %c0_i32_0 : i32, i32, i32
  }
}

</mosaic_0001>

<llo_original>
// kernel: tpu_custom_call.1
$region0: #{tpu_custom_call.1}
  #allocation0 [shape = 'u32[]', space=smem, size = 0x4, offset = 0x4, fixed_abs, tag = 'smem constant byte address 0x4 - core index']
  #allocation1 [shape = 'u32[72,128]{1,0:T(1,128)}', space=vmem, size = 0x9000, scoped, tag = 'internal scratch']
  #allocation2 [shape = 'f32[304,128]{1,0:T(8,128)}', space=vmem, size = 0x26000, scoped, tag = 'scratch operand']
  %s0 = inlined_call_operand.hbm [shape: f32[2,256,128], index: 0, kind: input, shape index: {}]
  %s1 = inlined_call_operand.hbm [shape: bf16[1152,128], index: 1, kind: input, shape index: {}]
  %s2 = inlined_call_operand.vmem [shape: f32[1,128], index: 2, kind: input, shape index: {}]
  %s3 = inlined_call_operand.hbm [shape: bf16[1152,128], index: 3, kind: input, shape index: {}]
  %s4 = inlined_call_operand.vmem [shape: f32[1,128], index: 4, kind: input, shape index: {}]
  %s5 = inlined_call_operand.hbm [shape: f32[2,256,128], index: 5, kind: output, shape index: {}]
  %s6 = sld [smem:[#allocation0]]
  $region65: #{tpu_custom_call.1} parent=0
    _
  %s8 = ssub.s32 1, %s6
  %s9 = scalar_select 0, %s8, %s6
  $region1: #{tpu_custom_call.1} parent=0
    #allocation3 [shape = 'u8[262144]{0}', space=vmem, size = 0x40000, scoped, tag = 'input window, operand 0']
    #allocation4 [shape = 's32[2]{0}', space=sflag, size = 0x8, scoped, tag = 'scoped memory for tpu_custom_call.1']
    #allocation5 [shape = 's32[2]{0}', space=sflag, size = 0x8, scoped, tag = 'scoped memory for tpu_custom_call.1']
    #allocation6 [shape = 'u8[294912]{0}', space=vmem, size = 0x48000, scoped, tag = 'input window, operand 1, single buffered']
    #allocation7 [shape = 's32[1]{0}', space=sflag, size = 0x4, scoped, tag = 'scoped memory for tpu_custom_call.1']
    #allocation8 [shape = 'u8[294912]{0}', space=vmem, size = 0x48000, scoped, tag = 'input window, operand 3, single buffered']
    #allocation9 [shape = 'u8[262144]{0}', space=vmem, size = 0x40000, scoped, tag = 'output window, operand 0']
    %10 = vsyncpa [#allocation4], 0
    %s11 = scalar_lea.sflag [#allocation4], 1
    %12 = vsyncpa %s11, 0
    %13 = vsyncpa [#allocation7], 0
    %14 = vsyncpa [#allocation5], 0
    %s15 = scalar_lea.sflag [#allocation5], 1
    %16 = vsyncpa %s15, 0
    loop: start=0, step=1, limit=4
    $region2: #{tpu_custom_call.1} parent=1 // loop_pre_header
      _
    $region3: #{tpu_custom_call.1} parent=1 // loop_header
      %s18 = sphi 0, %s22
      %p19 = scmp.ge.s32.totalorder %s18, 4
      %s28 = sphi 0, %s30
      %s31 = sphi 0, %s28
      %s32 = sphi 0, %s31
      %s48 = sphi 0, %s32
      %s52 = sphi 0, %s52
      %s54 = sphi 0, %s52
      %s55 = sphi 0, %s54
      %s69 = sphi 0, %s55
      %s73 = sphi 0, %s73
      %s75 = sphi 0, %s73
      %s76 = sphi 0, %s75
      %s90 = sphi 0, %s76
      %s94 = sphi 0, %s94
      %s96 = sphi 0, %s94
      %s97 = sphi 0, %s96
      %s111 = sphi 0, %s97
      %s115 = sphi 0, %s115
      %s117 = sphi 0, %s115
      %s118 = sphi 0, %s117
      %s132 = sphi 0, %s118
      %s138 = sphi 0, %s140
      %s141 = sphi 0, %s138
      %s142 = sphi 0, %s141
      %s158 = sphi 0, %s142
    $region4: #{tpu_custom_call.1} parent=1 // loop_header_branch
      %21 = sbr.rel (%p19) target = $region8
    $region5: #{tpu_custom_call.1} parent=1 // loop_body
      %s23 = ssub.s32 %s18, 1
      %s24 = ssub.s32 %s18, 2
      %s25 = sadd.s32 %s18, 1
      %s26 = ssub.s32 %s18, %s25
      %p27 = scmp.eq.s32.totalorder %s26, 0
      %s29 = sadd.s32 %s28, 1
      %s30 = scalar_select %p27, %s28, %s29
      %p33 = pneg %p27
      %p34 = scmp.eq.s32.totalorder %s18, 1
      %p35 = por %p33, %p34
      %p36 = scmp.ne.s32.totalorder %s28, %s31
      %p37 = scmp.eq.s32.totalorder %s18, 0
      %p38 = por %p36, %p37
      %p39 = scmp.ne.s32.totalorder %s28, %s31
      %p40 = scmp.eq.s32.totalorder %s23, 1
      %p41 = por %p39, %p40
      %p42 = scmp.ne.s32.totalorder %s31, %s32
      %p43 = scmp.eq.s32.totalorder %s23, 0
      %p44 = por %p42, %p43
      %p45 = scmp.ne.s32.totalorder %s31, %s32
      %p46 = scmp.eq.s32.totalorder %s24, 1
      %p47 = por %p45, %p46
      %p49 = scmp.ne.s32.totalorder %s32, %s48
      %p50 = scmp.eq.s32.totalorder %s24, 0
      %p51 = por %p49, %p50
      %s53 = sadd.s32 %s52, 1
      %p56 = scmp.eq.s32.totalorder %s18, 1
      %p57 = scmp.ne.s32.totalorder %s52, %s54
      %p58 = scmp.eq.s32.totalorder %s18, 0
      %p59 = por %p57, %p58
      %p60 = scmp.ne.s32.totalorder %s52, %s54
      %p61 = scmp.eq.s32.totalorder %s23, 1
      %p62 = por %p60, %p61
      %p63 = scmp.ne.s32.totalorder %s54, %s55
      %p64 = scmp.eq.s32.totalorder %s23, 0
      %p65 = por %p63, %p64
      %p66 = scmp.ne.s32.totalorder %s54, %s55
      %p67 = scmp.eq.s32.totalorder %s24, 1
      %p68 = por %p66, %p67
      %p70 = scmp.ne.s32.totalorder %s55, %s69
      %p71 = scmp.eq.s32.totalorder %s24, 0
      %p72 = por %p70, %p71
      %s74 = sadd.s32 %s73, 1
      %p77 = scmp.eq.s32.totalorder %s18, 1
      %p78 = scmp.ne.s32.totalorder %s73, %s75
      %p79 = scmp.eq.s32.totalorder %s18, 0
      %p80 = por %p78, %p79
      %p81 = scmp.ne.s32.totalorder %s73, %s75
      %p82 = scmp.eq.s32.totalorder %s23, 1
      %p83 = por %p81, %p82
      %p84 = scmp.ne.s32.totalorder %s75, %s76
      %p85 = scmp.eq.s32.totalorder %s23, 0
      %p86 = por %p84, %p85
      %p87 = scmp.ne.s32.totalorder %s75, %s76
      %p88 = scmp.eq.s32.totalorder %s24, 1
      %p89 = por %p87, %p88
      %p91 = scmp.ne.s32.totalorder %s76, %s90
      %p92 = scmp.eq.s32.totalorder %s24, 0
      %p93 = por %p91, %p92
      %s95 = sadd.s32 %s94, 1
      %p98 = scmp.eq.s32.totalorder %s18, 1
      %p99 = scmp.ne.s32.totalorder %s94, %s96
      %p100 = scmp.eq.s32.totalorder %s18, 0
      %p101 = por %p99, %p100
      %p102 = scmp.ne.s32.totalorder %s94, %s96
      %p103 = scmp.eq.s32.totalorder %s23, 1
      %p104 = por %p102, %p103
      %p105 = scmp.ne.s32.totalorder %s96, %s97
      %p106 = scmp.eq.s32.totalorder %s23, 0
      %p107 = por %p105, %p106
      %p108 = scmp.ne.s32.totalorder %s96, %s97
      %p109 = scmp.eq.s32.totalorder %s24, 1
      %p110 = por %p108, %p109
      %p112 = scmp.ne.s32.totalorder %s97, %s111
      %p113 = scmp.eq.s32.totalorder %s24, 0
      %p114 = por %p112, %p113
      %s116 = sadd.s32 %s115, 1
      %p119 = scmp.eq.s32.totalorder %s18, 1
      %p120 = scmp.ne.s32.totalorder %s115, %s117
      %p121 = scmp.eq.s32.totalorder %s18, 0
      %p122 = por %p120, %p121
      %p123 = scmp.ne.s32.totalorder %s115, %s117
      %p124 = scmp.eq.s32.totalorder %s23, 1
      %p125 = por %p123, %p124
      %p126 = scmp.ne.s32.totalorder %s117, %s118
      %p127 = scmp.eq.s32.totalorder %s23, 0
      %p128 = por %p126, %p127
      %p129 = scmp.ne.s32.totalorder %s117, %s118
      %p130 = scmp.eq.s32.totalorder %s24, 1
      %p131 = por %p129, %p130
      %p133 = scmp.ne.s32.totalorder %s118, %s132
      %p134 = scmp.eq.s32.totalorder %s24, 0
      %p135 = por %p133, %p134
      %s136 = ssub.s32 %s18, %s25
      %p137 = scmp.eq.s32.totalorder %s136, 0
      %s139 = sadd.s32 %s138, 1
      %s140 = scalar_select %p137, %s138, %s139
      %p143 = pneg %p137
      %p144 = scmp.eq.s32.totalorder %s18, 1
      %p145 = por %p143, %p144
      %p146 = scmp.ne.s32.totalorder %s138, %s141
      %p147 = scmp.eq.s32.totalorder %s18, 0
      %p148 = por %p146, %p147
      %p149 = scmp.ne.s32.totalorder %s138, %s141
      %p150 = scmp.eq.s32.totalorder %s23, 1
      %p151 = por %p149, %p150
      %p152 = scmp.ne.s32.totalorder %s141, %s142
      %p153 = scmp.eq.s32.totalorder %s23, 0
      %p154 = por %p152, %p153
      %p155 = scmp.ne.s32.totalorder %s141, %s142
      %p156 = scmp.eq.s32.totalorder %s24, 1
      %p157 = por %p155, %p156
      %p159 = scmp.ne.s32.totalorder %s142, %s158
      %p160 = scmp.eq.s32.totalorder %s24, 0
      %p161 = por %p159, %p160
      %p162 = scmp.le.s32.totalorder 1, %s18
      %p163 = scmp.lt.s32.totalorder %s18, 3
      %p164 = pnand %p162, %p163
      %p165 = pneg %p164
      // Predicated region
      $region9: #{tpu_custom_call.1} parent=5 // pred_check
        _
      $region10: #{tpu_custom_call.1} parent=5 // pred_check_branch
        %167 = sbr.rel (%p164) target = $region12
      $region11: #{tpu_custom_call.1} parent=5 // pred_region
        %s168 = ssub.s32 %s18, 1
        // Predicated region
        $region13: #{tpu_custom_call.1} parent=11 // pred_check
          %p169 = pneg %p65
        $region14: #{tpu_custom_call.1} parent=11 // pred_check_branch
          %171 = sbr.rel (%p169) target = $region16
        $region15: #{tpu_custom_call.1} parent=11 // pred_region
          %173 = vsyncadd [#allocation7], 0
          %s174 = sshll.u32 %s1, 4
          %s175 = int_to_ptr.hbm [resolvable:$true] %s174
          %s176 = sshll.u32 [#allocation6], 4
          %s177 = int_to_ptr.vmem [resolvable:$true] %s176
          %182 = dma.hbm_to_vmem [thread:$0]  %s175, 9216, %s177, [#allocation7], 64, 64, 4
        $region16: #{tpu_custom_call.1} parent=11 // pred_fallthru
          _
        // Predicated region
        $region17: #{tpu_custom_call.1} parent=11 // pred_check
          %p183 = pneg %p86
        $region18: #{tpu_custom_call.1} parent=11 // pred_check_branch
          %185 = sbr.rel (%p183) target = $region20
        $region19: #{tpu_custom_call.1} parent=11 // pred_region
          _
        $region20: #{tpu_custom_call.1} parent=11 // pred_fallthru
          _
        // Predicated region
        $region21: #{tpu_custom_call.1} parent=11 // pred_check
          %p186 = pneg %p107
        $region22: #{tpu_custom_call.1} parent=11 // pred_check_branch
          %188 = sbr.rel (%p186) target = $region24
        $region23: #{tpu_custom_call.1} parent=11 // pred_region
          %190 = vsyncadd [#allocation7], 0
          %s191 = sshll.u32 %s3, 4
          %s192 = int_to_ptr.hbm [resolvable:$true] %s191
          %s193 = sshll.u32 [#allocation8], 4
          %s194 = int_to_ptr.vmem [resolvable:$true] %s193
          %199 = dma.hbm_to_vmem [thread:$0]  %s192, 9216, %s194, [#allocation7], 64, 64, 4
        $region24: #{tpu_custom_call.1} parent=11 // pred_fallthru
          _
        // Predicated region
        $region25: #{tpu_custom_call.1} parent=11 // pred_check
          %p200 = pneg %p128
        $region26: #{tpu_custom_call.1} parent=11 // pred_check_branch
          %202 = sbr.rel (%p200) target = $region28
        $region27: #{tpu_custom_call.1} parent=11 // pred_region
          _
        $region28: #{tpu_custom_call.1} parent=11 // pred_fallthru
          _
      $region12: #{tpu_custom_call.1} parent=5 // pred_fallthru
        _
      %p203 = scmp.lt.s32.totalorder %s18, 2
      // Predicated region
      $region29: #{tpu_custom_call.1} parent=5 // pred_check
        %p204 = pneg %p203
      $region30: #{tpu_custom_call.1} parent=5 // pred_check_branch
        %206 = sbr.rel (%p204) target = $region32
      $region31: #{tpu_custom_call.1} parent=5 // pred_region
        // Predicated region
        $region33: #{tpu_custom_call.1} parent=31 // pred_check
          %p207 = pneg %p38
        $region34: #{tpu_custom_call.1} parent=31 // pred_check_branch
          %209 = sbr.rel (%p207) target = $region36
        $region35: #{tpu_custom_call.1} parent=31 // pred_region
          %s210 = sand.u32 %s28, 1
          %s211 = scalar_lea.sflag [#allocation4], %s210
          %s212 = sand.u32 %s28, 1
          %s213 = smul.addr %s212, 256
          %s214 = scalar_lea.vmem [#allocation3], %s213
          %216 = vsyncadd %s211, 0
          %s217 = smul.addr %s18, 32
          %s218 = smul.addr %s217, 8
          %s219 = scalar_lea.hbm %s0, %s218
          %s220 = sshll.u32 %s219, 4
          %s221 = int_to_ptr.hbm [resolvable:$true] %s220
          %s222 = sshll.u32 %s214, 4
          %s223 = int_to_ptr.vmem [resolvable:$true] %s222
          %228 = dma.hbm_to_vmem [thread:$0]  %s221, 4096, %s223, %s211, 128, 128, 8
        $region36: #{tpu_custom_call.1} parent=31 // pred_fallthru
          _
      $region32: #{tpu_custom_call.1} parent=5 // pred_fallthru
        _
      %p229 = scmp.le.s32.totalorder 1, %s18
      %p230 = scmp.lt.s32.totalorder %s18, 3
      %p231 = pnand %p229, %p230
      %p232 = pneg %p231
      // Predicated region
      $region37: #{tpu_custom_call.1} parent=5 // pred_check
        _
      $region38: #{tpu_custom_call.1} parent=5 // pred_check_branch
        %234 = sbr.rel (%p231) target = $region40
      $region39: #{tpu_custom_call.1} parent=5 // pred_region
        %s235 = ssub.s32 %s18, 1
        %s236 = sand.u32 %s31, 1
        %s237 = scalar_lea.sflag [#allocation4], %s236
        %s238 = sand.u32 %s31, 1
        %s239 = smul.addr %s238, 256
        %s240 = scalar_lea.vmem [#allocation3], %s239
        // Predicated region
        $region41: #{tpu_custom_call.1} parent=39 // pred_check
          %p241 = pneg %p44
        $region42: #{tpu_custom_call.1} parent=39 // pred_check_branch
          %243 = sbr.rel (%p241) target = $region44
        $region43: #{tpu_custom_call.1} parent=39 // pred_region
          %245 = dma.done %s237, 4096
        $region44: #{tpu_custom_call.1} parent=39 // pred_fallthru
          _
        // Predicated region
        $region45: #{tpu_custom_call.1} parent=39 // pred_check
          %p246 = pneg %p65
        $region46: #{tpu_custom_call.1} parent=39 // pred_check_branch
          %248 = sbr.rel (%p246) target = $region48
        $region47: #{tpu_custom_call.1} parent=39 // pred_region
          %250 = dma.done [#allocation7], 9216
        $region48: #{tpu_custom_call.1} parent=39 // pred_fallthru
          _
        // Predicated region
        $region49: #{tpu_custom_call.1} parent=39 // pred_check
          %p251 = pneg %p107
        $region50: #{tpu_custom_call.1} parent=39 // pred_check_branch
          %253 = sbr.rel (%p251) target = $region52
        $region51: #{tpu_custom_call.1} parent=39 // pred_region
          %255 = dma.done [#allocation7], 9216
        $region52: #{tpu_custom_call.1} parent=39 // pred_fallthru
          _
        %s256 = sand.u32 %s31, 1
        %s257 = scalar_lea.sflag [#allocation4], %s256
        %s258 = sand.u32 %s31, 1
        %s259 = smul.addr %s258, 256
        %s260 = scalar_lea.vmem [#allocation3], %s259
        %p261 = pneg %p44
        %p262 = pneg %p41
        %p263 = pneg %p65
        %p264 = pneg %p62
        %p265 = pneg %p86
        %p266 = pneg %p83
        %p267 = pneg %p107
        %p268 = pneg %p104
        %p269 = pneg %p128
        %p270 = pneg %p125
        %p271 = pneg %p154
        %p272 = pneg %p151
        %s273 = sand.u32 %s141, 1
        %s274 = scalar_lea.sflag [#allocation5], %s273
        %s275 = sand.u32 %s141, 1
        %s276 = smul.addr %s275, 256
        %s277 = scalar_lea.vmem [#allocation9], %s276
        %278 = vst [vmem:[#allocation2] sm:$0xff] 0.0
        %279 = vst [vmem:[#allocation2 + $0x8] sm:$0xff] 0.0
        %280 = vst [vmem:[#allocation2 + $0x10] sm:$0xff] 0.0
        %281 = vst [vmem:[#allocation2 + $0x118] sm:$0xff] 0.0
        %282 = vst [vmem:[#allocation2 + $0x120] sm:$0xff] 0.0
        %283 = vst [vmem:[#allocation2 + $0x128] sm:$0xff] 0.0
        %v284 = vlaneseq
        %v285 = vshrl.u32 %v284, 7
        %v286 = vadd.s32 %v285, 8
        %v287 = vadd.s32 %v285, 16
        %v288 = vadd.s32 %v285, 24
        %v289 = vadd.s32 %v285, 32
        %v290 = vadd.s32 %v285, 40
        %v291 = vadd.s32 %v285, 48
        %v292 = vadd.s32 %v285, 56
        %v293 = vadd.s32 %v285, 64
        %v294 = vadd.s32 %v285, 72
        %v295 = vadd.s32 %v285, 80
        %v296 = vadd.s32 %v285, 88
        %v297 = vadd.s32 %v285, 96
        %v298 = vadd.s32 %v285, 104
        %v299 = vadd.s32 %v285, 112
        %v300 = vadd.s32 %v285, 120
        %v301 = vadd.s32 %v285, 128
        %v302 = vadd.s32 %v285, 136
        %v303 = vadd.s32 %v285, 144
        %v304 = vadd.s32 %v285, 152
        %v305 = vadd.s32 %v285, 160
        %v306 = vadd.s32 %v285, 168
        %v307 = vadd.s32 %v285, 176
        %v308 = vadd.s32 %v285, 184
        %v309 = vadd.s32 %v285, 192
        %v310 = vadd.s32 %v285, 200
        %v311 = vadd.s32 %v285, 208
        %v312 = vadd.s32 %v285, 216
        %v313 = vadd.s32 %v285, 224
        %v314 = vadd.s32 %v285, 232
        %v315 = vadd.s32 %v285, 240
        %v316 = vadd.s32 %v285, 248
        %vm317 = vcmp.lt.s32.totalorder %v285, 0
        %v318 = vsub.s32 0, %v285
        %v319 = vsel %vm317, %v318, %v285
        %v320 = vshrl.u32 %v319, 4
        %v321 = vand.u32 %v319, 15
        %v322 = vsub.s32 0, %v321
        %v323 = vsel %vm317, %v322, %v321
        %vm324 = vcmp.lt.s32.totalorder %v286, 0
        %v325 = vsub.s32 0, %v286
        %v326 = vsel %vm324, %v325, %v286
        %v327 = vshrl.u32 %v326, 4
        %v328 = vand.u32 %v326, 15
        %v329 = vsub.s32 0, %v328
        %v330 = vsel %vm324, %v329, %v328
        %vm331 = vcmp.lt.s32.totalorder %v287, 0
        %v332 = vsub.s32 0, %v287
        %v333 = vsel %vm331, %v332, %v287
        %v334 = vshrl.u32 %v333, 4
        %v335 = vand.u32 %v333, 15
        %v336 = vsub.s32 0, %v335
        %v337 = vsel %vm331, %v336, %v335
        %vm338 = vcmp.lt.s32.totalorder %v288, 0
        %v339 = vsub.s32 0, %v288
        %v340 = vsel %vm338, %v339, %v288
        %v341 = vshrl.u32 %v340, 4
        %v342 = vand.u32 %v340, 15
        %v343 = vsub.s32 0, %v342
        %v344 = vsel %vm338, %v343, %v342
        %vm345 = vcmp.lt.s32.totalorder %v289, 0
        %v346 = vsub.s32 0, %v289
        %v347 = vsel %vm345, %v346, %v289
        %v348 = vshrl.u32 %v347, 4
        %v349 = vand.u32 %v347, 15
        %v350 = vsub.s32 0, %v349
        %v351 = vsel %vm345, %v350, %v349
        %vm352 = vcmp.lt.s32.totalorder %v290, 0
        %v353 = vsub.s32 0, %v290
        %v354 = vsel %vm352, %v353, %v290
        %v355 = vshrl.u32 %v354, 4
        %v356 = vand.u32 %v354, 15
        %v357 = vsub.s32 0, %v356
        %v358 = vsel %vm352, %v357, %v356
        %vm359 = vcmp.lt.s32.totalorder %v291, 0
        %v360 = vsub.s32 0, %v291
        %v361 = vsel %vm359, %v360, %v291
        %v362 = vshrl.u32 %v361, 4
        %v363 = vand.u32 %v361, 15
        %v364 = vsub.s32 0, %v363
        %v365 = vsel %vm359, %v364, %v363
        %vm366 = vcmp.lt.s32.totalorder %v292, 0
        %v367 = vsub.s32 0, %v292
        %v368 = vsel %vm366, %v367, %v292
        %v369 = vshrl.u32 %v368, 4
        %v370 = vand.u32 %v368, 15
        %v371 = vsub.s32 0, %v370
        %v372 = vsel %vm366, %v371, %v370
        %vm373 = vcmp.lt.s32.totalorder %v293, 0
        %v374 = vsub.s32 0, %v293
        %v375 = vsel %vm373, %v374, %v293
        %v376 = vshrl.u32 %v375, 4
        %v377 = vand.u32 %v375, 15
        %v378 = vsub.s32 0, %v377
        %v379 = vsel %vm373, %v378, %v377
        %vm380 = vcmp.lt.s32.totalorder %v294, 0
        %v381 = vsub.s32 0, %v294
        %v382 = vsel %vm380, %v381, %v294
        %v383 = vshrl.u32 %v382, 4
        %v384 = vand.u32 %v382, 15
        %v385 = vsub.s32 0, %v384
        %v386 = vsel %vm380, %v385, %v384
        %vm387 = vcmp.lt.s32.totalorder %v295, 0
        %v388 = vsub.s32 0, %v295
        %v389 = vsel %vm387, %v388, %v295
        %v390 = vshrl.u32 %v389, 4
        %v391 = vand.u32 %v389, 15
        %v392 = vsub.s32 0, %v391
        %v393 = vsel %vm387, %v392, %v391
        %vm394 = vcmp.lt.s32.totalorder %v296, 0
        %v395 = vsub.s32 0, %v296
        %v396 = vsel %vm394, %v395, %v296
        %v397 = vshrl.u32 %v396, 4
        %v398 = vand.u32 %v396, 15
        %v399 = vsub.s32 0, %v398
        %v400 = vsel %vm394, %v399, %v398
        %vm401 = vcmp.lt.s32.totalorder %v297, 0
        %v402 = vsub.s32 0, %v297
        %v403 = vsel %vm401, %v402, %v297
        %v404 = vshrl.u32 %v403, 4
        %v405 = vand.u32 %v403, 15
        %v406 = vsub.s32 0, %v405
        %v407 = vsel %vm401, %v406, %v405
        %vm408 = vcmp.lt.s32.totalorder %v298, 0
        %v409 = vsub.s32 0, %v298
        %v410 = vsel %vm408, %v409, %v298
        %v411 = vshrl.u32 %v410, 4
        %v412 = vand.u32 %v410, 15
        %v413 = vsub.s32 0, %v412
        %v414 = vsel %vm408, %v413, %v412
        %vm415 = vcmp.lt.s32.totalorder %v299, 0
        %v416 = vsub.s32 0, %v299
        %v417 = vsel %vm415, %v416, %v299
        %v418 = vshrl.u32 %v417, 4
        %v419 = vand.u32 %v417, 15
        %v420 = vsub.s32 0, %v419
        %v421 = vsel %vm415, %v420, %v419
        %vm422 = vcmp.lt.s32.totalorder %v300, 0
        %v423 = vsub.s32 0, %v300
        %v424 = vsel %vm422, %v423, %v300
        %v425 = vshrl.u32 %v424, 4
        %v426 = vand.u32 %v424, 15
        %v427 = vsub.s32 0, %v426
        %v428 = vsel %vm422, %v427, %v426
        %vm429 = vcmp.lt.s32.totalorder %v301, 0
        %v430 = vsub.s32 0, %v301
        %v431 = vsel %vm429, %v430, %v301
        %v432 = vshrl.u32 %v431, 4
        %v433 = vand.u32 %v431, 15
        %v434 = vsub.s32 0, %v433
        %v435 = vsel %vm429, %v434, %v433
        %vm436 = vcmp.lt.s32.totalorder %v302, 0
        %v437 = vsub.s32 0, %v302
        %v438 = vsel %vm436, %v437, %v302
        %v439 = vshrl.u32 %v438, 4
        %v440 = vand.u32 %v438, 15
        %v441 = vsub.s32 0, %v440
        %v442 = vsel %vm436, %v441, %v440
        %vm443 = vcmp.lt.s32.totalorder %v303, 0
        %v444 = vsub.s32 0, %v303
        %v445 = vsel %vm443, %v444, %v303
        %v446 = vshrl.u32 %v445, 4
        %v447 = vand.u32 %v445, 15
        %v448 = vsub.s32 0, %v447
        %v449 = vsel %vm443, %v448, %v447
        %vm450 = vcmp.lt.s32.totalorder %v304, 0
        %v451 = vsub.s32 0, %v304
        %v452 = vsel %vm450, %v451, %v304
        %v453 = vshrl.u32 %v452, 4
        %v454 = vand.u32 %v452, 15
        %v455 = vsub.s32 0, %v454
        %v456 = vsel %vm450, %v455, %v454
        %vm457 = vcmp.lt.s32.totalorder %v305, 0
        %v458 = vsub.s32 0, %v305
        %v459 = vsel %vm457, %v458, %v305
        %v460 = vshrl.u32 %v459, 4
        %v461 = vand.u32 %v459, 15
        %v462 = vsub.s32 0, %v461
        %v463 = vsel %vm457, %v462, %v461
        %vm464 = vcmp.lt.s32.totalorder %v306, 0
        %v465 = vsub.s32 0, %v306
        %v466 = vsel %vm464, %v465, %v306
        %v467 = vshrl.u32 %v466, 4
        %v468 = vand.u32 %v466, 15
        %v469 = vsub.s32 0, %v468
        %v470 = vsel %vm464, %v469, %v468
        %vm471 = vcmp.lt.s32.totalorder %v307, 0
        %v472 = vsub.s32 0, %v307
        %v473 = vsel %vm471, %v472, %v307
        %v474 = vshrl.u32 %v473, 4
        %v475 = vand.u32 %v473, 15
        %v476 = vsub.s32 0, %v475
        %v477 = vsel %vm471, %v476, %v475
        %vm478 = vcmp.lt.s32.totalorder %v308, 0
        %v479 = vsub.s32 0, %v308
        %v480 = vsel %vm478, %v479, %v308
        %v481 = vshrl.u32 %v480, 4
        %v482 = vand.u32 %v480, 15
        %v483 = vsub.s32 0, %v482
        %v484 = vsel %vm478, %v483, %v482
        %vm485 = vcmp.lt.s32.totalorder %v309, 0
        %v486 = vsub.s32 0, %v309
        %v487 = vsel %vm485, %v486, %v309
        %v488 = vshrl.u32 %v487, 4
        %v489 = vand.u32 %v487, 15
        %v490 = vsub.s32 0, %v489
        %v491 = vsel %vm485, %v490, %v489
        %vm492 = vcmp.lt.s32.totalorder %v310, 0
        %v493 = vsub.s32 0, %v310
        %v494 = vsel %vm492, %v493, %v310
        %v495 = vshrl.u32 %v494, 4
        %v496 = vand.u32 %v494, 15
        %v497 = vsub.s32 0, %v496
        %v498 = vsel %vm492, %v497, %v496
        %vm499 = vcmp.lt.s32.totalorder %v311, 0
        %v500 = vsub.s32 0, %v311
        %v501 = vsel %vm499, %v500, %v311
        %v502 = vshrl.u32 %v501, 4
        %v503 = vand.u32 %v501, 15
        %v504 = vsub.s32 0, %v503
        %v505 = vsel %vm499, %v504, %v503
        %vm506 = vcmp.lt.s32.totalorder %v312, 0
        %v507 = vsub.s32 0, %v312
        %v508 = vsel %vm506, %v507, %v312
        %v509 = vshrl.u32 %v508, 4
        %v510 = vand.u32 %v508, 15
        %v511 = vsub.s32 0, %v510
        %v512 = vsel %vm506, %v511, %v510
        %vm513 = vcmp.lt.s32.totalorder %v313, 0
        %v514 = vsub.s32 0, %v313
        %v515 = vsel %vm513, %v514, %v313
        %v516 = vshrl.u32 %v515, 4
        %v517 = vand.u32 %v515, 15
        %v518 = vsub.s32 0, %v517
        %v519 = vsel %vm513, %v518, %v517
        %vm520 = vcmp.lt.s32.totalorder %v314, 0
        %v521 = vsub.s32 0, %v314
        %v522 = vsel %vm520, %v521, %v314
        %v523 = vshrl.u32 %v522, 4
        %v524 = vand.u32 %v522, 15
        %v525 = vsub.s32 0, %v524
        %v526 = vsel %vm520, %v525, %v524
        %vm527 = vcmp.lt.s32.totalorder %v315, 0
        %v528 = vsub.s32 0, %v315
        %v529 = vsel %vm527, %v528, %v315
        %v530 = vshrl.u32 %v529, 4
        %v531 = vand.u32 %v529, 15
        %v532 = vsub.s32 0, %v531
        %v533 = vsel %vm527, %v532, %v531
        %vm534 = vcmp.lt.s32.totalorder %v316, 0
        %v535 = vsub.s32 0, %v316
        %v536 = vsel %vm534, %v535, %v316
        %v537 = vshrl.u32 %v536, 4
        %v538 = vand.u32 %v536, 15
        %v539 = vsub.s32 0, %v538
        %v540 = vsel %vm534, %v539, %v538
        %vm541 = vcmp.ne.s32.totalorder %v323, 0
        %vm542 = vcmp.ne.s32.totalorder %v330, 0
        %vm543 = vcmp.ne.s32.totalorder %v337, 0
        %vm544 = vcmp.ne.s32.totalorder %v344, 0
        %vm545 = vcmp.ne.s32.totalorder %v351, 0
        %vm546 = vcmp.ne.s32.totalorder %v358, 0
        %vm547 = vcmp.ne.s32.totalorder %v365, 0
        %vm548 = vcmp.ne.s32.totalorder %v372, 0
        %vm549 = vcmp.ne.s32.totalorder %v379, 0
        %vm550 = vcmp.ne.s32.totalorder %v386, 0
        %vm551 = vcmp.ne.s32.totalorder %v393, 0
        %vm552 = vcmp.ne.s32.totalorder %v400, 0
        %vm553 = vcmp.ne.s32.totalorder %v407, 0
        %vm554 = vcmp.ne.s32.totalorder %v414, 0
        %vm555 = vcmp.ne.s32.totalorder %v421, 0
        %vm556 = vcmp.ne.s32.totalorder %v428, 0
        %vm557 = vcmp.ne.s32.totalorder %v435, 0
        %vm558 = vcmp.ne.s32.totalorder %v442, 0
        %vm559 = vcmp.ne.s32.totalorder %v449, 0
        %vm560 = vcmp.ne.s32.totalorder %v456, 0
        %vm561 = vcmp.ne.s32.totalorder %v463, 0
        %vm562 = vcmp.ne.s32.totalorder %v470, 0
        %vm563 = vcmp.ne.s32.totalorder %v477, 0
        %vm564 = vcmp.ne.s32.totalorder %v484, 0
        %vm565 = vcmp.ne.s32.totalorder %v491, 0
        %vm566 = vcmp.ne.s32.totalorder %v498, 0
        %vm567 = vcmp.ne.s32.totalorder %v505, 0
        %vm568 = vcmp.ne.s32.totalorder %v512, 0
        %vm569 = vcmp.ne.s32.totalorder %v519, 0
        %vm570 = vcmp.ne.s32.totalorder %v526, 0
        %vm571 = vcmp.ne.s32.totalorder %v533, 0
        %vm572 = vcmp.ne.s32.totalorder %v540, 0
        %vm573 = vcmp.lt.s32.totalorder %v323, 0
        %vm574 = vcmp.lt.s32.totalorder %v330, 0
        %vm575 = vcmp.lt.s32.totalorder %v337, 0
        %vm576 = vcmp.lt.s32.totalorder %v344, 0
        %vm577 = vcmp.lt.s32.totalorder %v351, 0
        %vm578 = vcmp.lt.s32.totalorder %v358, 0
        %vm579 = vcmp.lt.s32.totalorder %v365, 0
        %vm580 = vcmp.lt.s32.totalorder %v372, 0
        %vm581 = vcmp.lt.s32.totalorder %v379, 0
        %vm582 = vcmp.lt.s32.totalorder %v386, 0
        %vm583 = vcmp.lt.s32.totalorder %v393, 0
        %vm584 = vcmp.lt.s32.totalorder %v400, 0
        %vm585 = vcmp.lt.s32.totalorder %v407, 0
        %vm586 = vcmp.lt.s32.totalorder %v414, 0
        %vm587 = vcmp.lt.s32.totalorder %v421, 0
        %vm588 = vcmp.lt.s32.totalorder %v428, 0
        %vm589 = vcmp.lt.s32.totalorder %v435, 0
        %vm590 = vcmp.lt.s32.totalorder %v442, 0
        %vm591 = vcmp.lt.s32.totalorder %v449, 0
        %vm592 = vcmp.lt.s32.totalorder %v456, 0
        %vm593 = vcmp.lt.s32.totalorder %v463, 0
        %vm594 = vcmp.lt.s32.totalorder %v470, 0
        %vm595 = vcmp.lt.s32.totalorder %v477, 0
        %vm596 = vcmp.lt.s32.totalorder %v484, 0
        %vm597 = vcmp.lt.s32.totalorder %v491, 0
        %vm598 = vcmp.lt.s32.totalorder %v498, 0
        %vm599 = vcmp.lt.s32.totalorder %v505, 0
        %vm600 = vcmp.lt.s32.totalorder %v512, 0
        %vm601 = vcmp.lt.s32.totalorder %v519, 0
        %vm602 = vcmp.lt.s32.totalorder %v526, 0
        %vm603 = vcmp.lt.s32.totalorder %v533, 0
        %vm604 = vcmp.lt.s32.totalorder %v540, 0
        %vm605 = vmand %vm573, %vm541
        %vm606 = vmand %vm574, %vm542
        %vm607 = vmand %vm575, %vm543
        %vm608 = vmand %vm576, %vm544
        %vm609 = vmand %vm577, %vm545
        %vm610 = vmand %vm578, %vm546
        %vm611 = vmand %vm579, %vm547
        %vm612 = vmand %vm580, %vm548
        %vm613 = vmand %vm581, %vm549
        %vm614 = vmand %vm582, %vm550
        %vm615 = vmand %vm583, %vm551
        %vm616 = vmand %vm584, %vm552
        %vm617 = vmand %vm585, %vm553
        %vm618 = vmand %vm586, %vm554
        %vm619 = vmand %vm587, %vm555
        %vm620 = vmand %vm588, %vm556
        %vm621 = vmand %vm589, %vm557
        %vm622 = vmand %vm590, %vm558
        %vm623 = vmand %vm591, %vm559
        %vm624 = vmand %vm592, %vm560
        %vm625 = vmand %vm593, %vm561
        %vm626 = vmand %vm594, %vm562
        %vm627 = vmand %vm595, %vm563
        %vm628 = vmand %vm596, %vm564
        %vm629 = vmand %vm597, %vm565
        %vm630 = vmand %vm598, %vm566
        %vm631 = vmand %vm599, %vm567
        %vm632 = vmand %vm600, %vm568
        %vm633 = vmand %vm601, %vm569
        %vm634 = vmand %vm602, %vm570
        %vm635 = vmand %vm603, %vm571
        %vm636 = vmand %vm604, %vm572
        %v637 = vadd.s32 %v323, 16
        %v638 = vadd.s32 %v330, 16
        %v639 = vadd.s32 %v337, 16
        %v640 = vadd.s32 %v344, 16
        %v641 = vadd.s32 %v351, 16
        %v642 = vadd.s32 %v358, 16
        %v643 = vadd.s32 %v365, 16
        %v644 = vadd.s32 %v372, 16
        %v645 = vadd.s32 %v379, 16
        %v646 = vadd.s32 %v386, 16
        %v647 = vadd.s32 %v393, 16
        %v648 = vadd.s32 %v400, 16
        %v649 = vadd.s32 %v407, 16
        %v650 = vadd.s32 %v414, 16
        %v651 = vadd.s32 %v421, 16
        %v652 = vadd.s32 %v428, 16
        %v653 = vadd.s32 %v435, 16
        %v654 = vadd.s32 %v442, 16
        %v655 = vadd.s32 %v449, 16
        %v656 = vadd.s32 %v456, 16
        %v657 = vadd.s32 %v463, 16
        %v658 = vadd.s32 %v470, 16
        %v659 = vadd.s32 %v477, 16
        %v660 = vadd.s32 %v484, 16
        %v661 = vadd.s32 %v491, 16
        %v662 = vadd.s32 %v498, 16
        %v663 = vadd.s32 %v505, 16
        %v664 = vadd.s32 %v512, 16
        %v665 = vadd.s32 %v519, 16
        %v666 = vadd.s32 %v526, 16
        %v667 = vadd.s32 %v533, 16
        %v668 = vadd.s32 %v540, 16
        %v669 = vsel %vm605, %v637, %v323
        %v670 = vsel %vm606, %v638, %v330
        %v671 = vsel %vm607, %v639, %v337
        %v672 = vsel %vm608, %v640, %v344
        %v673 = vsel %vm609, %v641, %v351
        %v674 = vsel %vm610, %v642, %v358
        %v675 = vsel %vm611, %v643, %v365
        %v676 = vsel %vm612, %v644, %v372
        %v677 = vsel %vm613, %v645, %v379
        %v678 = vsel %vm614, %v646, %v386
        %v679 = vsel %vm615, %v647, %v393
        %v680 = vsel %vm616, %v648, %v400
        %v681 = vsel %vm617, %v649, %v407
        %v682 = vsel %vm618, %v650, %v414
        %v683 = vsel %vm619, %v651, %v421
        %v684 = vsel %vm620, %v652, %v428
        %v685 = vsel %vm621, %v653, %v435
        %v686 = vsel %vm622, %v654, %v442
        %v687 = vsel %vm623, %v655, %v449
        %v688 = vsel %vm624, %v656, %v456
        %v689 = vsel %vm625, %v657, %v463
        %v690 = vsel %vm626, %v658, %v470
        %v691 = vsel %vm627, %v659, %v477
        %v692 = vsel %vm628, %v660, %v484
        %v693 = vsel %vm629, %v661, %v491
        %v694 = vsel %vm630, %v662, %v498
        %v695 = vsel %vm631, %v663, %v505
        %v696 = vsel %vm632, %v664, %v512
        %v697 = vsel %vm633, %v665, %v519
        %v698 = vsel %vm634, %v666, %v526
        %v699 = vsel %vm635, %v667, %v533
        %v700 = vsel %vm636, %v668, %v540
        %vm701 = vcmp.ne.s32.totalorder %v669, 0
        %vm702 = vcmp.ne.s32.totalorder %v670, 0
        %vm703 = vcmp.ne.s32.totalorder %v671, 0
        %vm704 = vcmp.ne.s32.totalorder %v672, 0
        %vm705 = vcmp.ne.s32.totalorder %v673, 0
        %vm706 = vcmp.ne.s32.totalorder %v674, 0
        %vm707 = vcmp.ne.s32.totalorder %v675, 0
        %vm708 = vcmp.ne.s32.totalorder %v676, 0
        %vm709 = vcmp.ne.s32.totalorder %v677, 0
        %vm710 = vcmp.ne.s32.totalorder %v678, 0
        %vm711 = vcmp.ne.s32.totalorder %v679, 0
        %vm712 = vcmp.ne.s32.totalorder %v680, 0
        %vm713 = vcmp.ne.s32.totalorder %v681, 0
        %vm714 = vcmp.ne.s32.totalorder %v682, 0
        %vm715 = vcmp.ne.s32.totalorder %v683, 0
        %vm716 = vcmp.ne.s32.totalorder %v684, 0
        %vm717 = vcmp.ne.s32.totalorder %v685, 0
        %vm718 = vcmp.ne.s32.totalorder %v686, 0
        %vm719 = vcmp.ne.s32.totalorder %v687, 0
        %vm720 = vcmp.ne.s32.totalorder %v688, 0
        %vm721 = vcmp.ne.s32.totalorder %v689, 0
        %vm722 = vcmp.ne.s32.totalorder %v690, 0
        %vm723 = vcmp.ne.s32.totalorder %v691, 0
        %vm724 = vcmp.ne.s32.totalorder %v692, 0
        %vm725 = vcmp.ne.s32.totalorder %v693, 0
        %vm726 = vcmp.ne.s32.totalorder %v694, 0
        %vm727 = vcmp.ne.s32.totalorder %v695, 0
        %vm728 = vcmp.ne.s32.totalorder %v696, 0
        %vm729 = vcmp.ne.s32.totalorder %v697, 0
        %vm730 = vcmp.ne.s32.totalorder %v698, 0
        %vm731 = vcmp.ne.s32.totalorder %v699, 0
        %vm732 = vcmp.ne.s32.totalorder %v700, 0
        %vm733 = vcmp.ne.s32.totalorder %v669, 15
        %vm734 = vcmp.ne.s32.totalorder %v670, 15
        %vm735 = vcmp.ne.s32.totalorder %v671, 15
        %vm736 = vcmp.ne.s32.totalorder %v672, 15
        %vm737 = vcmp.ne.s32.totalorder %v673, 15
        %vm738 = vcmp.ne.s32.totalorder %v674, 15
        %vm739 = vcmp.ne.s32.totalorder %v675, 15
        %vm740 = vcmp.ne.s32.totalorder %v676, 15
        %vm741 = vcmp.ne.s32.totalorder %v677, 15
        %vm742 = vcmp.ne.s32.totalorder %v678, 15
        %vm743 = vcmp.ne.s32.totalorder %v679, 15
        %vm744 = vcmp.ne.s32.totalorder %v680, 15
        %vm745 = vcmp.ne.s32.totalorder %v681, 15
        %vm746 = vcmp.ne.s32.totalorder %v682, 15
        %vm747 = vcmp.ne.s32.totalorder %v683, 15
        %vm748 = vcmp.ne.s32.totalorder %v684, 15
        %vm749 = vcmp.ne.s32.totalorder %v685, 15
        %vm750 = vcmp.ne.s32.totalorder %v686, 15
        %vm751 = vcmp.ne.s32.totalorder %v687, 15
        %vm752 = vcmp.ne.s32.totalorder %v688, 15
        %vm753 = vcmp.ne.s32.totalorder %v689, 15
        %vm754 = vcmp.ne.s32.totalorder %v690, 15
        %vm755 = vcmp.ne.s32.totalorder %v691, 15
        %vm756 = vcmp.ne.s32.totalorder %v692, 15
        %vm757 = vcmp.ne.s32.totalorder %v693, 15
        %vm758 = vcmp.ne.s32.totalorder %v694, 15
        %vm759 = vcmp.ne.s32.totalorder %v695, 15
        %vm760 = vcmp.ne.s32.totalorder %v696, 15
        %vm761 = vcmp.ne.s32.totalorder %v697, 15
        %vm762 = vcmp.ne.s32.totalorder %v698, 15
        %vm763 = vcmp.ne.s32.totalorder %v699, 15
        %vm764 = vcmp.ne.s32.totalorder %v700, 15
        %v765 = vld [vmem:[%s240] sm:$0xff]
        %v766 = vld [vmem:[%s240 + $0x8] sm:$0xff]
        %v767 = vld [vmem:[%s240 + $0x10] sm:$0xff]
        %v768 = vld [vmem:[%s240 + $0x18] sm:$0xff]
        %v769 = vld [vmem:[%s240 + $0x20] sm:$0xff]
        %v770 = vld [vmem:[%s240 + $0x28] sm:$0xff]
        %v771 = vld [vmem:[%s240 + $0x30] sm:$0xff]
        %v772 = vld [vmem:[%s240 + $0x38] sm:$0xff]
        %v773 = vld [vmem:[%s240 + $0x40] sm:$0xff]
        %v774 = vld [vmem:[%s240 + $0x48] sm:$0xff]
        %v775 = vld [vmem:[%s240 + $0x50] sm:$0xff]
        %v776 = vld [vmem:[%s240 + $0x58] sm:$0xff]
        %v777 = vld [vmem:[%s240 + $0x60] sm:$0xff]
        %v778 = vld [vmem:[%s240 + $0x68] sm:$0xff]
        %v779 = vld [vmem:[%s240 + $0x70] sm:$0xff]
        %v780 = vld [vmem:[%s240 + $0x78] sm:$0xff]
        %v781 = vld [vmem:[%s240 + $0x80] sm:$0xff]
        %v782 = vld [vmem:[%s240 + $0x88] sm:$0xff]
        %v783 = vld [vmem:[%s240 + $0x90] sm:$0xff]
        %v784 = vld [vmem:[%s240 + $0x98] sm:$0xff]
        %v785 = vld [vmem:[%s240 + $0xa0] sm:$0xff]
        %v786 = vld [vmem:[%s240 + $0xa8] sm:$0xff]
        %v787 = vld [vmem:[%s240 + $0xb0] sm:$0xff]
        %v788 = vld [vmem:[%s240 + $0xb8] sm:$0xff]
        %v789 = vld [vmem:[%s240 + $0xc0] sm:$0xff]
        %v790 = vld [vmem:[%s240 + $0xc8] sm:$0xff]
        %v791 = vld [vmem:[%s240 + $0xd0] sm:$0xff]
        %v792 = vld [vmem:[%s240 + $0xd8] sm:$0xff]
        %v793 = vld [vmem:[%s240 + $0xe0] sm:$0xff]
        %v794 = vld [vmem:[%s240 + $0xe8] sm:$0xff]
        %v795 = vld [vmem:[%s240 + $0xf0] sm:$0xff]
        %v796 = vld [vmem:[%s240 + $0xf8] sm:$0xff]
        %797 = vst [vmem:[#allocation2 + $0x18] sm:$0xff] %v765
        %798 = vst [vmem:[#allocation2 + $0x20] sm:$0xff] %v766
        %799 = vst [vmem:[#allocation2 + $0x28] sm:$0xff] %v767
        %800 = vst [vmem:[#allocation2 + $0x30] sm:$0xff] %v768
        %801 = vst [vmem:[#allocation2 + $0x38] sm:$0xff] %v769
        %802 = vst [vmem:[#allocation2 + $0x40] sm:$0xff] %v770
        %803 = vst [vmem:[#allocation2 + $0x48] sm:$0xff] %v771
        %804 = vst [vmem:[#allocation2 + $0x50] sm:$0xff] %v772
        %805 = vst [vmem:[#allocation2 + $0x58] sm:$0xff] %v773
        %806 = vst [vmem:[#allocation2 + $0x60] sm:$0xff] %v774
        %807 = vst [vmem:[#allocation2 + $0x68] sm:$0xff] %v775
        %808 = vst [vmem:[#allocation2 + $0x70] sm:$0xff] %v776
        %809 = vst [vmem:[#allocation2 + $0x78] sm:$0xff] %v777
        %810 = vst [vmem:[#allocation2 + $0x80] sm:$0xff] %v778
        %811 = vst [vmem:[#allocation2 + $0x88] sm:$0xff] %v779
        %812 = vst [vmem:[#allocation2 + $0x90] sm:$0xff] %v780
        %813 = vst [vmem:[#allocation2 + $0x98] sm:$0xff] %v781
        %814 = vst [vmem:[#allocation2 + $0xa0] sm:$0xff] %v782
        %815 = vst [vmem:[#allocation2 + $0xa8] sm:$0xff] %v783
        %816 = vst [vmem:[#allocation2 + $0xb0] sm:$0xff] %v784
        %817 = vst [vmem:[#allocation2 + $0xb8] sm:$0xff] %v785
        %818 = vst [vmem:[#allocation2 + $0xc0] sm:$0xff] %v786
        %819 = vst [vmem:[#allocation2 + $0xc8] sm:$0xff] %v787
        %820 = vst [vmem:[#allocation2 + $0xd0] sm:$0xff] %v788
        %821 = vst [vmem:[#allocation2 + $0xd8] sm:$0xff] %v789
        %822 = vst [vmem:[#allocation2 + $0xe0] sm:$0xff] %v790
        %823 = vst [vmem:[#allocation2 + $0xe8] sm:$0xff] %v791
        %824 = vst [vmem:[#allocation2 + $0xf0] sm:$0xff] %v792
        %825 = vst [vmem:[#allocation2 + $0xf8] sm:$0xff] %v793
        %826 = vst [vmem:[#allocation2 + $0x100] sm:$0xff] %v794
        %827 = vst [vmem:[#allocation2 + $0x108] sm:$0xff] %v795
        %828 = vst [vmem:[#allocation2 + $0x110] sm:$0xff] %v796
        %v829 = vld [vmem:[#allocation2 + $0x7] sm:$0xff]
        %v830 = vld [vmem:[#allocation2 + $0xf] sm:$0xff]
        %v831 = vld [vmem:[#allocation2 + $0x17] sm:$0xff]
        %v832 = vld [vmem:[#allocation2 + $0x1f] sm:$0xff]
        %v833 = vld [vmem:[#allocation2 + $0x27] sm:$0xff]
        %v834 = vld [vmem:[#allocation2 + $0x2f] sm:$0xff]
        %v835 = vld [vmem:[#allocation2 + $0x37] sm:$0xff]
        %v836 = vld [vmem:[#allocation2 + $0x3f] sm:$0xff]
        %v837 = vld [vmem:[#allocation2 + $0x47] sm:$0xff]
        %v838 = vld [vmem:[#allocation2 + $0x4f] sm:$0xff]
        %v839 = vld [vmem:[#allocation2 + $0x57] sm:$0xff]
        %v840 = vld [vmem:[#allocation2 + $0x5f] sm:$0xff]
        %v841 = vld [vmem:[#allocation2 + $0x67] sm:$0xff]
        %v842 = vld [vmem:[#allocation2 + $0x6f] sm:$0xff]
        %v843 = vld [vmem:[#allocation2 + $0x77] sm:$0xff]
        %v844 = vld [vmem:[#allocation2 + $0x7f] sm:$0xff]
        %v845 = vld [vmem:[#allocation2 + $0x87] sm:$0xff]
        %v846 = vld [vmem:[#allocation2 + $0x8f] sm:$0xff]
        %v847 = vld [vmem:[#allocation2 + $0x97] sm:$0xff]
        %v848 = vld [vmem:[#allocation2 + $0x9f] sm:$0xff]
        %v849 = vld [vmem:[#allocation2 + $0xa7] sm:$0xff]
        %v850 = vld [vmem:[#allocation2 + $0xaf] sm:$0xff]
        %v851 = vld [vmem:[#allocation2 + $0xb7] sm:$0xff]
        %v852 = vld [vmem:[#allocation2 + $0xbf] sm:$0xff]
        %v853 = vld [vmem:[#allocation2 + $0xc7] sm:$0xff]
        %v854 = vld [vmem:[#allocation2 + $0xcf] sm:$0xff]
        %v855 = vld [vmem:[#allocation2 + $0xd7] sm:$0xff]
        %v856 = vld [vmem:[#allocation2 + $0xdf] sm:$0xff]
        %v857 = vld [vmem:[#allocation2 + $0xe7] sm:$0xff]
        %v858 = vld [vmem:[#allocation2 + $0xef] sm:$0xff]
        %v859 = vld [vmem:[#allocation2 + $0xf7] sm:$0xff]
        %v860 = vld [vmem:[#allocation2 + $0xff] sm:$0xff]
        %v861 = vsel %vm701, 1, 0
        %v862 = vsel %vm702, 1, 0
        %v863 = vsel %vm703, 1, 0
        %v864 = vsel %vm704, 1, 0
        %v865 = vsel %vm705, 1, 0
        %v866 = vsel %vm706, 1, 0
        %v867 = vsel %vm707, 1, 0
        %v868 = vsel %vm708, 1, 0
        %v869 = vsel %vm709, 1, 0
        %v870 = vsel %vm710, 1, 0
        %v871 = vsel %vm711, 1, 0
        %v872 = vsel %vm712, 1, 0
        %v873 = vsel %vm713, 1, 0
        %v874 = vsel %vm714, 1, 0
        %v875 = vsel %vm715, 1, 0
        %v876 = vsel %vm716, 1, 0
        %v877 = vsel %vm717, 1, 0
        %v878 = vsel %vm718, 1, 0
        %v879 = vsel %vm719, 1, 0
        %v880 = vsel %vm720, 1, 0
        %v881 = vsel %vm721, 1, 0
        %v882 = vsel %vm722, 1, 0
        %v883 = vsel %vm723, 1, 0
        %v884 = vsel %vm724, 1, 0
        %v885 = vsel %vm725, 1, 0
        %v886 = vsel %vm726, 1, 0
        %v887 = vsel %vm727, 1, 0
        %v888 = vsel %vm728, 1, 0
        %v889 = vsel %vm729, 1, 0
        %v890 = vsel %vm730, 1, 0
        %v891 = vsel %vm731, 1, 0
        %v892 = vsel %vm732, 1, 0
        %vm893 = vcmp.eq.s32.totalorder %v861, 1
        %vm894 = vcmp.eq.s32.totalorder %v862, 1
        %vm895 = vcmp.eq.s32.totalorder %v863, 1
        %vm896 = vcmp.eq.s32.totalorder %v864, 1
        %vm897 = vcmp.eq.s32.totalorder %v865, 1
        %vm898 = vcmp.eq.s32.totalorder %v866, 1
        %vm899 = vcmp.eq.s32.totalorder %v867, 1
        %vm900 = vcmp.eq.s32.totalorder %v868, 1
        %vm901 = vcmp.eq.s32.totalorder %v869, 1
        %vm902 = vcmp.eq.s32.totalorder %v870, 1
        %vm903 = vcmp.eq.s32.totalorder %v871, 1
        %vm904 = vcmp.eq.s32.totalorder %v872, 1
        %vm905 = vcmp.eq.s32.totalorder %v873, 1
        %vm906 = vcmp.eq.s32.totalorder %v874, 1
        %vm907 = vcmp.eq.s32.totalorder %v875, 1
        %vm908 = vcmp.eq.s32.totalorder %v876, 1
        %vm909 = vcmp.eq.s32.totalorder %v877, 1
        %vm910 = vcmp.eq.s32.totalorder %v878, 1
        %vm911 = vcmp.eq.s32.totalorder %v879, 1
        %vm912 = vcmp.eq.s32.totalorder %v880, 1
        %vm913 = vcmp.eq.s32.totalorder %v881, 1
        %vm914 = vcmp.eq.s32.totalorder %v882, 1
        %vm915 = vcmp.eq.s32.totalorder %v883, 1
        %vm916 = vcmp.eq.s32.totalorder %v884, 1
        %vm917 = vcmp.eq.s32.totalorder %v885, 1
        %vm918 = vcmp.eq.s32.totalorder %v886, 1
        %vm919 = vcmp.eq.s32.totalorder %v887, 1
        %vm920 = vcmp.eq.s32.totalorder %v888, 1
        %vm921 = vcmp.eq.s32.totalorder %v889, 1
        %vm922 = vcmp.eq.s32.totalorder %v890, 1
        %vm923 = vcmp.eq.s32.totalorder %v891, 1
        %vm924 = vcmp.eq.s32.totalorder %v892, 1
        %v925 = vsel %vm893, %v829, 0.0
        %v926 = vsel %vm894, %v830, 0.0
        %v927 = vsel %vm895, %v831, 0.0
        %v928 = vsel %vm896, %v832, 0.0
        %v929 = vsel %vm897, %v833, 0.0
        %v930 = vsel %vm898, %v834, 0.0
        %v931 = vsel %vm899, %v835, 0.0
        %v932 = vsel %vm900, %v836, 0.0
        %v933 = vsel %vm901, %v837, 0.0
        %v934 = vsel %vm902, %v838, 0.0
        %v935 = vsel %vm903, %v839, 0.0
        %v936 = vsel %vm904, %v840, 0.0
        %v937 = vsel %vm905, %v841, 0.0
        %v938 = vsel %vm906, %v842, 0.0
        %v939 = vsel %vm907, %v843, 0.0
        %v940 = vsel %vm908, %v844, 0.0
        %v941 = vsel %vm909, %v845, 0.0
        %v942 = vsel %vm910, %v846, 0.0
        %v943 = vsel %vm911, %v847, 0.0
        %v944 = vsel %vm912, %v848, 0.0
        %v945 = vsel %vm913, %v849, 0.0
        %v946 = vsel %vm914, %v850, 0.0
        %v947 = vsel %vm915, %v851, 0.0
        %v948 = vsel %vm916, %v852, 0.0
        %v949 = vsel %vm917, %v853, 0.0
        %v950 = vsel %vm918, %v854, 0.0
        %v951 = vsel %vm919, %v855, 0.0
        %v952 = vsel %vm920, %v856, 0.0
        %v953 = vsel %vm921, %v857, 0.0
        %v954 = vsel %vm922, %v858, 0.0
        %v955 = vsel %vm923, %v859, 0.0
        %v956 = vsel %vm924, %v860, 0.0
        %v957 = vld [vmem:[#allocation2 + $0x8] sm:$0xff]
        %v958 = vld [vmem:[#allocation2 + $0x10] sm:$0xff]
        %v959 = vld [vmem:[#allocation2 + $0x18] sm:$0xff]
        %v960 = vld [vmem:[#allocation2 + $0x20] sm:$0xff]
        %v961 = vld [vmem:[#allocation2 + $0x28] sm:$0xff]
        %v962 = vld [vmem:[#allocation2 + $0x30] sm:$0xff]
        %v963 = vld [vmem:[#allocation2 + $0x38] sm:$0xff]
        %v964 = vld [vmem:[#allocation2 + $0x40] sm:$0xff]
        %v965 = vld [vmem:[#allocation2 + $0x48] sm:$0xff]
        %v966 = vld [vmem:[#allocation2 + $0x50] sm:$0xff]
        %v967 = vld [vmem:[#allocation2 + $0x58] sm:$0xff]
        %v968 = vld [vmem:[#allocation2 + $0x60] sm:$0xff]
        %v969 = vld [vmem:[#allocation2 + $0x68] sm:$0xff]
        %v970 = vld [vmem:[#allocation2 + $0x70] sm:$0xff]
        %v971 = vld [vmem:[#allocation2 + $0x78] sm:$0xff]
        %v972 = vld [vmem:[#allocation2 + $0x80] sm:$0xff]
        %v973 = vld [vmem:[#allocation2 + $0x88] sm:$0xff]
        %v974 = vld [vmem:[#allocation2 + $0x90] sm:$0xff]
        %v975 = vld [vmem:[#allocation2 + $0x98] sm:$0xff]
        %v976 = vld [vmem:[#allocation2 + $0xa0] sm:$0xff]
        %v977 = vld [vmem:[#allocation2 + $0xa8] sm:$0xff]
        %v978 = vld [vmem:[#allocation2 + $0xb0] sm:$0xff]
        %v979 = vld [vmem:[#allocation2 + $0xb8] sm:$0xff]
        %v980 = vld [vmem:[#allocation2 + $0xc0] sm:$0xff]
        %v981 = vld [vmem:[#allocation2 + $0xc8] sm:$0xff]
        %v982 = vld [vmem:[#allocation2 + $0xd0] sm:$0xff]
        %v983 = vld [vmem:[#allocation2 + $0xd8] sm:$0xff]
        %v984 = vld [vmem:[#allocation2 + $0xe0] sm:$0xff]
        %v985 = vld [vmem:[#allocation2 + $0xe8] sm:$0xff]
        %v986 = vld [vmem:[#allocation2 + $0xf0] sm:$0xff]
        %v987 = vld [vmem:[#allocation2 + $0xf8] sm:$0xff]
        %v988 = vld [vmem:[#allocation2 + $0x100] sm:$0xff]
        %v989 = vld [vmem:[#allocation2 + $0x9] sm:$0xff]
        %v990 = vld [vmem:[#allocation2 + $0x11] sm:$0xff]
        %v991 = vld [vmem:[#allocation2 + $0x19] sm:$0xff]
        %v992 = vld [vmem:[#allocation2 + $0x21] sm:$0xff]
        %v993 = vld [vmem:[#allocation2 + $0x29] sm:$0xff]
        %v994 = vld [vmem:[#allocation2 + $0x31] sm:$0xff]
        %v995 = vld [vmem:[#allocation2 + $0x39] sm:$0xff]
        %v996 = vld [vmem:[#allocation2 + $0x41] sm:$0xff]
        %v997 = vld [vmem:[#allocation2 + $0x49] sm:$0xff]
        %v998 = vld [vmem:[#allocation2 + $0x51] sm:$0xff]
        %v999 = vld [vmem:[#allocation2 + $0x59] sm:$0xff]
        %v1000 = vld [vmem:[#allocation2 + $0x61] sm:$0xff]
        %v1001 = vld [vmem:[#allocation2 + $0x69] sm:$0xff]
        %v1002 = vld [vmem:[#allocation2 + $0x71] sm:$0xff]
        %v1003 = vld [vmem:[#allocation2 + $0x79] sm:$0xff]
        %v1004 = vld [vmem:[#allocation2 + $0x81] sm:$0xff]
        %v1005 = vld [vmem:[#allocation2 + $0x89] sm:$0xff]
        %v1006 = vld [vmem:[#allocation2 + $0x91] sm:$0xff]
        %v1007 = vld [vmem:[#allocation2 + $0x99] sm:$0xff]
        %v1008 = vld [vmem:[#allocation2 + $0xa1] sm:$0xff]
        %v1009 = vld [vmem:[#allocation2 + $0xa9] sm:$0xff]
        %v1010 = vld [vmem:[#allocation2 + $0xb1] sm:$0xff]
        %v1011 = vld [vmem:[#allocation2 + $0xb9] sm:$0xff]
        %v1012 = vld [vmem:[#allocation2 + $0xc1] sm:$0xff]
        %v1013 = vld [vmem:[#allocation2 + $0xc9] sm:$0xff]
        %v1014 = vld [vmem:[#allocation2 + $0xd1] sm:$0xff]
        %v1015 = vld [vmem:[#allocation2 + $0xd9] sm:$0xff]
        %v1016 = vld [vmem:[#allocation2 + $0xe1] sm:$0xff]
        %v1017 = vld [vmem:[#allocation2 + $0xe9] sm:$0xff]
        %v1018 = vld [vmem:[#allocation2 + $0xf1] sm:$0xff]
        %v1019 = vld [vmem:[#allocation2 + $0xf9] sm:$0xff]
        %v1020 = vld [vmem:[#allocation2 + $0x101] sm:$0xff]
        %v1021 = vsel %vm733, 1, 0
        %v1022 = vsel %vm734, 1, 0
        %v1023 = vsel %vm735, 1, 0
        %v1024 = vsel %vm736, 1, 0
        %v1025 = vsel %vm737, 1, 0
        %v1026 = vsel %vm738, 1, 0
        %v1027 = vsel %vm739, 1, 0
        %v1028 = vsel %vm740, 1, 0
        %v1029 = vsel %vm741, 1, 0
        %v1030 = vsel %vm742, 1, 0
        %v1031 = vsel %vm743, 1, 0
        %v1032 = vsel %vm744, 1, 0
        %v1033 = vsel %vm745, 1, 0
        %v1034 = vsel %vm746, 1, 0
        %v1035 = vsel %vm747, 1, 0
        %v1036 = vsel %vm748, 1, 0
        %v1037 = vsel %vm749, 1, 0
        %v1038 = vsel %vm750, 1, 0
        %v1039 = vsel %vm751, 1, 0
        %v1040 = vsel %vm752, 1, 0
        %v1041 = vsel %vm753, 1, 0
        %v1042 = vsel %vm754, 1, 0
        %v1043 = vsel %vm755, 1, 0
        %v1044 = vsel %vm756, 1, 0
        %v1045 = vsel %vm757, 1, 0
        %v1046 = vsel %vm758, 1, 0
        %v1047 = vsel %vm759, 1, 0
        %v1048 = vsel %vm760, 1, 0
        %v1049 = vsel %vm761, 1, 0
        %v1050 = vsel %vm762, 1, 0
        %v1051 = vsel %vm763, 1, 0
        %v1052 = vsel %vm764, 1, 0
        %vm1053 = vcmp.eq.s32.totalorder %v1021, 1
        %vm1054 = vcmp.eq.s32.totalorder %v1022, 1
        %vm1055 = vcmp.eq.s32.totalorder %v1023, 1
        %vm1056 = vcmp.eq.s32.totalorder %v1024, 1
        %vm1057 = vcmp.eq.s32.totalorder %v1025, 1
        %vm1058 = vcmp.eq.s32.totalorder %v1026, 1
        %vm1059 = vcmp.eq.s32.totalorder %v1027, 1
        %vm1060 = vcmp.eq.s32.totalorder %v1028, 1
        %vm1061 = vcmp.eq.s32.totalorder %v1029, 1
        %vm1062 = vcmp.eq.s32.totalorder %v1030, 1
        %vm1063 = vcmp.eq.s32.totalorder %v1031, 1
        %vm1064 = vcmp.eq.s32.totalorder %v1032, 1
        %vm1065 = vcmp.eq.s32.totalorder %v1033, 1
        %vm1066 = vcmp.eq.s32.totalorder %v1034, 1
        %vm1067 = vcmp.eq.s32.totalorder %v1035, 1
        %vm1068 = vcmp.eq.s32.totalorder %v1036, 1
        %vm1069 = vcmp.eq.s32.totalorder %v1037, 1
        %vm1070 = vcmp.eq.s32.totalorder %v1038, 1
        %vm1071 = vcmp.eq.s32.totalorder %v1039, 1
        %vm1072 = vcmp.eq.s32.totalorder %v1040, 1
        %vm1073 = vcmp.eq.s32.totalorder %v1041, 1
        %vm1074 = vcmp.eq.s32.totalorder %v1042, 1
        %vm1075 = vcmp.eq.s32.totalorder %v1043, 1
        %vm1076 = vcmp.eq.s32.totalorder %v1044, 1
        %vm1077 = vcmp.eq.s32.totalorder %v1045, 1
        %vm1078 = vcmp.eq.s32.totalorder %v1046, 1
        %vm1079 = vcmp.eq.s32.totalorder %v1047, 1
        %vm1080 = vcmp.eq.s32.totalorder %v1048, 1
        %vm1081 = vcmp.eq.s32.totalorder %v1049, 1
        %vm1082 = vcmp.eq.s32.totalorder %v1050, 1
        %vm1083 = vcmp.eq.s32.totalorder %v1051, 1
        %vm1084 = vcmp.eq.s32.totalorder %v1052, 1
        %v1085 = vsel %vm1053, %v989, 0.0
        %v1086 = vsel %vm1054, %v990, 0.0
        %v1087 = vsel %vm1055, %v991, 0.0
        %v1088 = vsel %vm1056, %v992, 0.0
        %v1089 = vsel %vm1057, %v993, 0.0
        %v1090 = vsel %vm1058, %v994, 0.0
        %v1091 = vsel %vm1059, %v995, 0.0
        %v1092 = vsel %vm1060, %v996, 0.0
        %v1093 = vsel %vm1061, %v997, 0.0
        %v1094 = vsel %vm1062, %v998, 0.0
        %v1095 = vsel %vm1063, %v999, 0.0
        %v1096 = vsel %vm1064, %v1000, 0.0
        %v1097 = vsel %vm1065, %v1001, 0.0
        %v1098 = vsel %vm1066, %v1002, 0.0
        %v1099 = vsel %vm1067, %v1003, 0.0
        %v1100 = vsel %vm1068, %v1004, 0.0
        %v1101 = vsel %vm1069, %v1005, 0.0
        %v1102 = vsel %vm1070, %v1006, 0.0
        %v1103 = vsel %vm1071, %v1007, 0.0
        %v1104 = vsel %vm1072, %v1008, 0.0
        %v1105 = vsel %vm1073, %v1009, 0.0
        %v1106 = vsel %vm1074, %v1010, 0.0
        %v1107 = vsel %vm1075, %v1011, 0.0
        %v1108 = vsel %vm1076, %v1012, 0.0
        %v1109 = vsel %vm1077, %v1013, 0.0
        %v1110 = vsel %vm1078, %v1014, 0.0
        %v1111 = vsel %vm1079, %v1015, 0.0
        %v1112 = vsel %vm1080, %v1016, 0.0
        %v1113 = vsel %vm1081, %v1017, 0.0
        %v1114 = vsel %vm1082, %v1018, 0.0
        %v1115 = vsel %vm1083, %v1019, 0.0
        %v1116 = vsel %vm1084, %v1020, 0.0
        %v1117 = vld [vmem:[#allocation2 + $0x107] sm:$0xff]
        %v1118 = vld [vmem:[#allocation2 + $0x10f] sm:$0xff]
        %v1119 = vsel %vm893, %v831, 0.0
        %v1120 = vsel %vm894, %v832, 0.0
        %v1121 = vsel %vm895, %v833, 0.0
        %v1122 = vsel %vm896, %v834, 0.0
        %v1123 = vsel %vm897, %v835, 0.0
        %v1124 = vsel %vm898, %v836, 0.0
        %v1125 = vsel %vm899, %v837, 0.0
        %v1126 = vsel %vm900, %v838, 0.0
        %v1127 = vsel %vm901, %v839, 0.0
        %v1128 = vsel %vm902, %v840, 0.0
        %v1129 = vsel %vm903, %v841, 0.0
        %v1130 = vsel %vm904, %v842, 0.0
        %v1131 = vsel %vm905, %v843, 0.0
        %v1132 = vsel %vm906, %v844, 0.0
        %v1133 = vsel %vm907, %v845, 0.0
        %v1134 = vsel %vm908, %v846, 0.0
        %v1135 = vsel %vm909, %v847, 0.0
        %v1136 = vsel %vm910, %v848, 0.0
        %v1137 = vsel %vm911, %v849, 0.0
        %v1138 = vsel %vm912, %v850, 0.0
        %v1139 = vsel %vm913, %v851, 0.0
        %v1140 = vsel %vm914, %v852, 0.0
        %v1141 = vsel %vm915, %v853, 0.0
        %v1142 = vsel %vm916, %v854, 0.0
        %v1143 = vsel %vm917, %v855, 0.0
        %v1144 = vsel %vm918, %v856, 0.0
        %v1145 = vsel %vm919, %v857, 0.0
        %v1146 = vsel %vm920, %v858, 0.0
        %v1147 = vsel %vm921, %v859, 0.0
        %v1148 = vsel %vm922, %v860, 0.0
        %v1149 = vsel %vm923, %v1117, 0.0
        %v1150 = vsel %vm924, %v1118, 0.0
        %v1151 = vld [vmem:[#allocation2 + $0x108] sm:$0xff]
        %v1152 = vld [vmem:[#allocation2 + $0x110] sm:$0xff]
        %v1153 = vld [vmem:[#allocation2 + $0x109] sm:$0xff]
        %v1154 = vld [vmem:[#allocation2 + $0x111] sm:$0xff]
        %v1155 = vsel %vm1053, %v991, 0.0
        %v1156 = vsel %vm1054, %v992, 0.0
        %v1157 = vsel %vm1055, %v993, 0.0
        %v1158 = vsel %vm1056, %v994, 0.0
        %v1159 = vsel %vm1057, %v995, 0.0
        %v1160 = vsel %vm1058, %v996, 0.0
        %v1161 = vsel %vm1059, %v997, 0.0
        %v1162 = vsel %vm1060, %v998, 0.0
        %v1163 = vsel %vm1061, %v999, 0.0
        %v1164 = vsel %vm1062, %v1000, 0.0
        %v1165 = vsel %vm1063, %v1001, 0.0
        %v1166 = vsel %vm1064, %v1002, 0.0
        %v1167 = vsel %vm1065, %v1003, 0.0
        %v1168 = vsel %vm1066, %v1004, 0.0
        %v1169 = vsel %vm1067, %v1005, 0.0
        %v1170 = vsel %vm1068, %v1006, 0.0
        %v1171 = vsel %vm1069, %v1007, 0.0
        %v1172 = vsel %vm1070, %v1008, 0.0
        %v1173 = vsel %vm1071, %v1009, 0.0
        %v1174 = vsel %vm1072, %v1010, 0.0
        %v1175 = vsel %vm1073, %v1011, 0.0
        %v1176 = vsel %vm1074, %v1012, 0.0
        %v1177 = vsel %vm1075, %v1013, 0.0
        %v1178 = vsel %vm1076, %v1014, 0.0
        %v1179 = vsel %vm1077, %v1015, 0.0
        %v1180 = vsel %vm1078, %v1016, 0.0
        %v1181 = vsel %vm1079, %v1017, 0.0
        %v1182 = vsel %vm1080, %v1018, 0.0
        %v1183 = vsel %vm1081, %v1019, 0.0
        %v1184 = vsel %vm1082, %v1020, 0.0
        %v1185 = vsel %vm1083, %v1153, 0.0
        %v1186 = vsel %vm1084, %v1154, 0.0
        %v1187 = vld [vmem:[#allocation2 + $0x117] sm:$0xff]
        %v1188 = vld [vmem:[#allocation2 + $0x11f] sm:$0xff]
        %v1189 = vsel %vm893, %v833, 0.0
        %v1190 = vsel %vm894, %v834, 0.0
        %v1191 = vsel %vm895, %v835, 0.0
        %v1192 = vsel %vm896, %v836, 0.0
        %v1193 = vsel %vm897, %v837, 0.0
        %v1194 = vsel %vm898, %v838, 0.0
        %v1195 = vsel %vm899, %v839, 0.0
        %v1196 = vsel %vm900, %v840, 0.0
        %v1197 = vsel %vm901, %v841, 0.0
        %v1198 = vsel %vm902, %v842, 0.0
        %v1199 = vsel %vm903, %v843, 0.0
        %v1200 = vsel %vm904, %v844, 0.0
        %v1201 = vsel %vm905, %v845, 0.0
        %v1202 = vsel %vm906, %v846, 0.0
        %v1203 = vsel %vm907, %v847, 0.0
        %v1204 = vsel %vm908, %v848, 0.0
        %v1205 = vsel %vm909, %v849, 0.0
        %v1206 = vsel %vm910, %v850, 0.0
        %v1207 = vsel %vm911, %v851, 0.0
        %v1208 = vsel %vm912, %v852, 0.0
        %v1209 = vsel %vm913, %v853, 0.0
        %v1210 = vsel %vm914, %v854, 0.0
        %v1211 = vsel %vm915, %v855, 0.0
        %v1212 = vsel %vm916, %v856, 0.0
        %v1213 = vsel %vm917, %v857, 0.0
        %v1214 = vsel %vm918, %v858, 0.0
        %v1215 = vsel %vm919, %v859, 0.0
        %v1216 = vsel %vm920, %v860, 0.0
        %v1217 = vsel %vm921, %v1117, 0.0
        %v1218 = vsel %vm922, %v1118, 0.0
        %v1219 = vsel %vm923, %v1187, 0.0
        %v1220 = vsel %vm924, %v1188, 0.0
        %v1221 = vld [vmem:[#allocation2 + $0x118] sm:$0xff]
        %v1222 = vld [vmem:[#allocation2 + $0x120] sm:$0xff]
        %v1223 = vld [vmem:[#allocation2 + $0x119] sm:$0xff]
        %v1224 = vld [vmem:[#allocation2 + $0x121] sm:$0xff]
        %v1225 = vsel %vm1053, %v993, 0.0
        %v1226 = vsel %vm1054, %v994, 0.0
        %v1227 = vsel %vm1055, %v995, 0.0
        %v1228 = vsel %vm1056, %v996, 0.0
        %v1229 = vsel %vm1057, %v997, 0.0
        %v1230 = vsel %vm1058, %v998, 0.0
        %v1231 = vsel %vm1059, %v999, 0.0
        %v1232 = vsel %vm1060, %v1000, 0.0
        %v1233 = vsel %vm1061, %v1001, 0.0
        %v1234 = vsel %vm1062, %v1002, 0.0
        %v1235 = vsel %vm1063, %v1003, 0.0
        %v1236 = vsel %vm1064, %v1004, 0.0
        %v1237 = vsel %vm1065, %v1005, 0.0
        %v1238 = vsel %vm1066, %v1006, 0.0
        %v1239 = vsel %vm1067, %v1007, 0.0
        %v1240 = vsel %vm1068, %v1008, 0.0
        %v1241 = vsel %vm1069, %v1009, 0.0
        %v1242 = vsel %vm1070, %v1010, 0.0
        %v1243 = vsel %vm1071, %v1011, 0.0
        %v1244 = vsel %vm1072, %v1012, 0.0
        %v1245 = vsel %vm1073, %v1013, 0.0
        %v1246 = vsel %vm1074, %v1014, 0.0
        %v1247 = vsel %vm1075, %v1015, 0.0
        %v1248 = vsel %vm1076, %v1016, 0.0
        %v1249 = vsel %vm1077, %v1017, 0.0
        %v1250 = vsel %vm1078, %v1018, 0.0
        %v1251 = vsel %vm1079, %v1019, 0.0
        %v1252 = vsel %vm1080, %v1020, 0.0
        %v1253 = vsel %vm1081, %v1153, 0.0
        %v1254 = vsel %vm1082, %v1154, 0.0
        %v1255 = vsel %vm1083, %v1223, 0.0
        %v1256 = vsel %vm1084, %v1224, 0.0
        %v1257 = vpack.c.bf16 %v926, %v925
        %v1258 = vpack.c.bf16 %v958, %v957
        %v1259 = vpack.c.bf16 %v1086, %v1085
        %v1260 = vpack.c.bf16 %v1120, %v1119
        %v1261 = vpack.c.bf16 %v960, %v959
        %v1262 = vpack.c.bf16 %v1156, %v1155
        %v1263 = vpack.c.bf16 %v1190, %v1189
        %v1264 = vpack.c.bf16 %v962, %v961
        %v1265 = vpack.c.bf16 %v1226, %v1225
        %v1266 = vpack.c.bf16 %v928, %v927
        %v1267 = vpack.c.bf16 %v1088, %v1087
        %v1268 = vpack.c.bf16 %v1122, %v1121
        %v1269 = vpack.c.bf16 %v1158, %v1157
        %v1270 = vpack.c.bf16 %v1192, %v1191
        %v1271 = vpack.c.bf16 %v964, %v963
        %v1272 = vpack.c.bf16 %v1228, %v1227
        %v1273 = vpack.c.bf16 %v930, %v929
        %v1274 = vpack.c.bf16 %v1090, %v1089
        %v1275 = vpack.c.bf16 %v1124, %v1123
        %v1276 = vpack.c.bf16 %v1160, %v1159
        %v1277 = vpack.c.bf16 %v1194, %v1193
        %v1278 = vpack.c.bf16 %v966, %v965
        %v1279 = vpack.c.bf16 %v1230, %v1229
        %v1280 = vpack.c.bf16 %v932, %v931
        %v1281 = vpack.c.bf16 %v1092, %v1091
        %v1282 = vpack.c.bf16 %v1126, %v1125
        %v1283 = vpack.c.bf16 %v1162, %v1161
        %v1284 = vpack.c.bf16 %v1196, %v1195
        %v1285 = vpack.c.bf16 %v968, %v967
        %v1286 = vpack.c.bf16 %v1232, %v1231
        %v1287 = vpack.c.bf16 %v934, %v933
        %v1288 = vpack.c.bf16 %v1094, %v1093
        %v1289 = vpack.c.bf16 %v1128, %v1127
        %v1290 = vpack.c.bf16 %v1164, %v1163
        %v1291 = vpack.c.bf16 %v1198, %v1197
        %v1292 = vpack.c.bf16 %v970, %v969
        %v1293 = vpack.c.bf16 %v1234, %v1233
        %v1294 = vpack.c.bf16 %v936, %v935
        %v1295 = vpack.c.bf16 %v1096, %v1095
        %v1296 = vpack.c.bf16 %v1130, %v1129
        %v1297 = vpack.c.bf16 %v1166, %v1165
        %v1298 = vpack.c.bf16 %v1200, %v1199
        %v1299 = vpack.c.bf16 %v972, %v971
        %v1300 = vpack.c.bf16 %v1236, %v1235
        %v1301 = vpack.c.bf16 %v938, %v937
        %v1302 = vpack.c.bf16 %v1098, %v1097
        %v1303 = vpack.c.bf16 %v1132, %v1131
        %v1304 = vpack.c.bf16 %v1168, %v1167
        %v1305 = vpack.c.bf16 %v1202, %v1201
        %v1306 = vpack.c.bf16 %v974, %v973
        %v1307 = vpack.c.bf16 %v1238, %v1237
        %v1308 = vpack.c.bf16 %v940, %v939
        %v1309 = vpack.c.bf16 %v1100, %v1099
        %v1310 = vpack.c.bf16 %v1134, %v1133
        %v1311 = vpack.c.bf16 %v1170, %v1169
        %v1312 = vpack.c.bf16 %v1204, %v1203
        %v1313 = vpack.c.bf16 %v976, %v975
        %v1314 = vpack.c.bf16 %v1240, %v1239
        %v1315 = vpack.c.bf16 %v942, %v941
        %v1316 = vpack.c.bf16 %v1102, %v1101
        %v1317 = vpack.c.bf16 %v1136, %v1135
        %v1318 = vpack.c.bf16 %v1172, %v1171
        %v1319 = vpack.c.bf16 %v1206, %v1205
        %v1320 = vpack.c.bf16 %v978, %v977
        %v1321 = vpack.c.bf16 %v1242, %v1241
        %v1322 = vpack.c.bf16 %v944, %v943
        %v1323 = vpack.c.bf16 %v1104, %v1103
        %v1324 = vpack.c.bf16 %v1138, %v1137
        %v1325 = vpack.c.bf16 %v1174, %v1173
        %v1326 = vpack.c.bf16 %v1208, %v1207
        %v1327 = vpack.c.bf16 %v980, %v979
        %v1328 = vpack.c.bf16 %v1244, %v1243
        %v1329 = vpack.c.bf16 %v946, %v945
        %v1330 = vpack.c.bf16 %v1106, %v1105
        %v1331 = vpack.c.bf16 %v1140, %v1139
        %v1332 = vpack.c.bf16 %v1176, %v1175
        %v1333 = vpack.c.bf16 %v1210, %v1209
        %v1334 = vpack.c.bf16 %v982, %v981
        %v1335 = vpack.c.bf16 %v1246, %v1245
        %v1336 = vpack.c.bf16 %v948, %v947
        %v1337 = vpack.c.bf16 %v1108, %v1107
        %v1338 = vpack.c.bf16 %v1142, %v1141
        %v1339 = vpack.c.bf16 %v1178, %v1177
        %v1340 = vpack.c.bf16 %v1212, %v1211
        %v1341 = vpack.c.bf16 %v984, %v983
        %v1342 = vpack.c.bf16 %v1248, %v1247
        %v1343 = vpack.c.bf16 %v950, %v949
        %v1344 = vpack.c.bf16 %v1110, %v1109
        %v1345 = vpack.c.bf16 %v1144, %v1143
        %v1346 = vpack.c.bf16 %v1180, %v1179
        %v1347 = vpack.c.bf16 %v1214, %v1213
        %v1348 = vpack.c.bf16 %v986, %v985
        %v1349 = vpack.c.bf16 %v1250, %v1249
        %v1350 = vpack.c.bf16 %v952, %v951
        %v1351 = vpack.c.bf16 %v1112, %v1111
        %v1352 = vpack.c.bf16 %v1146, %v1145
        %v1353 = vpack.c.bf16 %v1182, %v1181
        %v1354 = vpack.c.bf16 %v1216, %v1215
        %v1355 = vpack.c.bf16 %v988, %v987
        %v1356 = vpack.c.bf16 %v1252, %v1251
        %v1357 = vpack.c.bf16 %v954, %v953
        %v1358 = vpack.c.bf16 %v1114, %v1113
        %v1359 = vpack.c.bf16 %v1148, %v1147
        %v1360 = vpack.c.bf16 %v1184, %v1183
        %v1361 = vpack.c.bf16 %v1218, %v1217
        %v1362 = vpack.c.bf16 %v1152, %v1151
        %v1363 = vpack.c.bf16 %v1254, %v1253
        %v1364 = vpack.c.bf16 %v956, %v955
        %v1365 = vpack.c.bf16 %v1116, %v1115
        %v1366 = vpack.c.bf16 %v1150, %v1149
        %v1367 = vpack.c.bf16 %v1186, %v1185
        %v1368 = vpack.c.bf16 %v1220, %v1219
        %v1369 = vpack.c.bf16 %v1222, %v1221
        %v1370 = vpack.c.bf16 %v1256, %v1255
        %v1371 = vld [vmem:[#allocation6] sm:$0xf]
        %v1372 = vld [vmem:[#allocation6 + $0x4] sm:$0xf]
        %v1373 = vld [vmem:[#allocation6 + $0x8] sm:$0xf]
        %v1374 = vld [vmem:[#allocation6 + $0xc] sm:$0xf]
        %v1375 = vld [vmem:[#allocation6 + $0x10] sm:$0xf]
        %v1376 = vld [vmem:[#allocation6 + $0x14] sm:$0xf]
        %v1377 = vld [vmem:[#allocation6 + $0x18] sm:$0xf]
        %v1378 = vld [vmem:[#allocation6 + $0x1c] sm:$0xf]
        %v1379 = vld [vmem:[#allocation6 + $0x20] sm:$0xf]
        %v1380 = vld [vmem:[#allocation6 + $0x24] sm:$0xf]
        %v1381 = vld [vmem:[#allocation6 + $0x28] sm:$0xf]
        %v1382 = vld [vmem:[#allocation6 + $0x2c] sm:$0xf]
        %v1383 = vld [vmem:[#allocation6 + $0x30] sm:$0xf]
        %v1384 = vld [vmem:[#allocation6 + $0x34] sm:$0xf]
        %v1385 = vld [vmem:[#allocation6 + $0x38] sm:$0xf]
        %v1386 = vld [vmem:[#allocation6 + $0x3c] sm:$0xf]
        %v1387 = vld [vmem:[#allocation6 + $0x40] sm:$0xf]
        %v1388 = vld [vmem:[#allocation6 + $0x44] sm:$0xf]
        %v1389 = vld [vmem:[#allocation6 + $0x48] sm:$0xf]
        %v1390 = vld [vmem:[#allocation6 + $0x4c] sm:$0xf]
        %v1391 = vld [vmem:[#allocation6 + $0x50] sm:$0xf]
        %v1392 = vld [vmem:[#allocation6 + $0x54] sm:$0xf]
        %v1393 = vld [vmem:[#allocation6 + $0x58] sm:$0xf]
        %v1394 = vld [vmem:[#allocation6 + $0x5c] sm:$0xf]
        %v1395 = vld [vmem:[#allocation6 + $0x60] sm:$0xf]
        %v1396 = vld [vmem:[#allocation6 + $0x64] sm:$0xf]
        %v1397 = vld [vmem:[#allocation6 + $0x68] sm:$0xf]
        %v1398 = vld [vmem:[#allocation6 + $0x6c] sm:$0xf]
        %v1399 = vld [vmem:[#allocation6 + $0x70] sm:$0xf]
        %v1400 = vld [vmem:[#allocation6 + $0x74] sm:$0xf]
        %v1401 = vld [vmem:[#allocation6 + $0x78] sm:$0xf]
        %v1402 = vld [vmem:[#allocation6 + $0x7c] sm:$0xf]
        %v1403 = vld [vmem:[#allocation6 + $0x80] sm:$0xf]
        %v1404 = vld [vmem:[#allocation6 + $0x84] sm:$0xf]
        %v1405 = vld [vmem:[#allocation6 + $0x88] sm:$0xf]
        %v1406 = vld [vmem:[#allocation6 + $0x8c] sm:$0xf]
        %v1407 = vld [vmem:[#allocation6 + $0x90] sm:$0xf]
        %v1408 = vld [vmem:[#allocation6 + $0x94] sm:$0xf]
        %v1409 = vld [vmem:[#allocation6 + $0x98] sm:$0xf]
        %v1410 = vld [vmem:[#allocation6 + $0x9c] sm:$0xf]
        %v1411 = vld [vmem:[#allocation6 + $0xa0] sm:$0xf]
        %v1412 = vld [vmem:[#allocation6 + $0xa4] sm:$0xf]
        %v1413 = vld [vmem:[#allocation6 + $0xa8] sm:$0xf]
        %v1414 = vld [vmem:[#allocation6 + $0xac] sm:$0xf]
        %v1415 = vld [vmem:[#allocation6 + $0xb0] sm:$0xf]
        %v1416 = vld [vmem:[#allocation6 + $0xb4] sm:$0xf]
        %v1417 = vld [vmem:[#allocation6 + $0xb8] sm:$0xf]
        %v1418 = vld [vmem:[#allocation6 + $0xbc] sm:$0xf]
        %v1419 = vld [vmem:[#allocation6 + $0xc0] sm:$0xf]
        %v1420 = vld [vmem:[#allocation6 + $0xc4] sm:$0xf]
        %v1421 = vld [vmem:[#allocation6 + $0xc8] sm:$0xf]
        %v1422 = vld [vmem:[#allocation6 + $0xcc] sm:$0xf]
        %v1423 = vld [vmem:[#allocation6 + $0xd0] sm:$0xf]
        %v1424 = vld [vmem:[#allocation6 + $0xd4] sm:$0xf]
        %v1425 = vld [vmem:[#allocation6 + $0xd8] sm:$0xf]
        %v1426 = vld [vmem:[#allocation6 + $0xdc] sm:$0xf]
        %v1427 = vld [vmem:[#allocation6 + $0xe0] sm:$0xf]
        %v1428 = vld [vmem:[#allocation6 + $0xe4] sm:$0xf]
        %v1429 = vld [vmem:[#allocation6 + $0xe8] sm:$0xf]
        %v1430 = vld [vmem:[#allocation6 + $0xec] sm:$0xf]
        %v1431 = vld [vmem:[#allocation6 + $0xf0] sm:$0xf]
        %v1432 = vld [vmem:[#allocation6 + $0xf4] sm:$0xf]
        %v1433 = vld [vmem:[#allocation6 + $0xf8] sm:$0xf]
        %v1434 = vld [vmem:[#allocation6 + $0xfc] sm:$0xf]
        %v1435 = vld [vmem:[#allocation6 + $0x100] sm:$0xf]
        %v1436 = vld [vmem:[#allocation6 + $0x104] sm:$0xf]
        %v1437 = vld [vmem:[#allocation6 + $0x108] sm:$0xf]
        %v1438 = vld [vmem:[#allocation6 + $0x10c] sm:$0xf]
        %v1439 = vld [vmem:[#allocation6 + $0x110] sm:$0xf]
        %v1440 = vld [vmem:[#allocation6 + $0x114] sm:$0xf]
        %v1441 = vld [vmem:[#allocation6 + $0x118] sm:$0xf]
        %v1442 = vld [vmem:[#allocation6 + $0x11c] sm:$0xf]
        %v1443 = vld [vmem:[#allocation6 + $0x120] sm:$0xf]
        %v1444 = vld [vmem:[#allocation6 + $0x124] sm:$0xf]
        %v1445 = vld [vmem:[#allocation6 + $0x128] sm:$0xf]
        %v1446 = vld [vmem:[#allocation6 + $0x12c] sm:$0xf]
        %v1447 = vld [vmem:[#allocation6 + $0x130] sm:$0xf]
        %v1448 = vld [vmem:[#allocation6 + $0x134] sm:$0xf]
        %v1449 = vld [vmem:[#allocation6 + $0x138] sm:$0xf]
        %v1450 = vld [vmem:[#allocation6 + $0x13c] sm:$0xf]
        %v1451 = vld [vmem:[#allocation6 + $0x140] sm:$0xf]
        %v1452 = vld [vmem:[#allocation6 + $0x144] sm:$0xf]
        %v1453 = vld [vmem:[#allocation6 + $0x148] sm:$0xf]
        %v1454 = vld [vmem:[#allocation6 + $0x14c] sm:$0xf]
        %v1455 = vld [vmem:[#allocation6 + $0x150] sm:$0xf]
        %v1456 = vld [vmem:[#allocation6 + $0x154] sm:$0xf]
        %v1457 = vld [vmem:[#allocation6 + $0x158] sm:$0xf]
        %v1458 = vld [vmem:[#allocation6 + $0x15c] sm:$0xf]
        %v1459 = vld [vmem:[#allocation6 + $0x160] sm:$0xf]
        %v1460 = vld [vmem:[#allocation6 + $0x164] sm:$0xf]
        %v1461 = vld [vmem:[#allocation6 + $0x168] sm:$0xf]
        %v1462 = vld [vmem:[#allocation6 + $0x16c] sm:$0xf]
        %v1463 = vld [vmem:[#allocation6 + $0x170] sm:$0xf]
        %v1464 = vld [vmem:[#allocation6 + $0x174] sm:$0xf]
        %v1465 = vld [vmem:[#allocation6 + $0x178] sm:$0xf]
        %v1466 = vld [vmem:[#allocation6 + $0x17c] sm:$0xf]
        %v1467 = vld [vmem:[#allocation6 + $0x180] sm:$0xf]
        %v1468 = vld [vmem:[#allocation6 + $0x184] sm:$0xf]
        %v1469 = vld [vmem:[#allocation6 + $0x188] sm:$0xf]
        %v1470 = vld [vmem:[#allocation6 + $0x18c] sm:$0xf]
        %v1471 = vld [vmem:[#allocation6 + $0x190] sm:$0xf]
        %v1472 = vld [vmem:[#allocation6 + $0x194] sm:$0xf]
        %v1473 = vld [vmem:[#allocation6 + $0x198] sm:$0xf]
        %v1474 = vld [vmem:[#allocation6 + $0x19c] sm:$0xf]
        %v1475 = vld [vmem:[#allocation6 + $0x1a0] sm:$0xf]
        %v1476 = vld [vmem:[#allocation6 + $0x1a4] sm:$0xf]
        %v1477 = vld [vmem:[#allocation6 + $0x1a8] sm:$0xf]
        %v1478 = vld [vmem:[#allocation6 + $0x1ac] sm:$0xf]
        %v1479 = vld [vmem:[#allocation6 + $0x1b0] sm:$0xf]
        %v1480 = vld [vmem:[#allocation6 + $0x1b4] sm:$0xf]
        %v1481 = vld [vmem:[#allocation6 + $0x1b8] sm:$0xf]
        %v1482 = vld [vmem:[#allocation6 + $0x1bc] sm:$0xf]
        %v1483 = vld [vmem:[#allocation6 + $0x1c0] sm:$0xf]
        %v1484 = vld [vmem:[#allocation6 + $0x1c4] sm:$0xf]
        %v1485 = vld [vmem:[#allocation6 + $0x1c8] sm:$0xf]
        %v1486 = vld [vmem:[#allocation6 + $0x1cc] sm:$0xf]
        %v1487 = vld [vmem:[#allocation6 + $0x1d0] sm:$0xf]
        %v1488 = vld [vmem:[#allocation6 + $0x1d4] sm:$0xf]
        %v1489 = vld [vmem:[#allocation6 + $0x1d8] sm:$0xf]
        %v1490 = vld [vmem:[#allocation6 + $0x1dc] sm:$0xf]
        %v1491 = vld [vmem:[#allocation6 + $0x1e0] sm:$0xf]
        %v1492 = vld [vmem:[#allocation6 + $0x1e4] sm:$0xf]
        %v1493 = vld [vmem:[#allocation6 + $0x1e8] sm:$0xf]
        %v1494 = vld [vmem:[#allocation6 + $0x1ec] sm:$0xf]
        %v1495 = vld [vmem:[#allocation6 + $0x1f0] sm:$0xf]
        %v1496 = vld [vmem:[#allocation6 + $0x1f4] sm:$0xf]
        %v1497 = vld [vmem:[#allocation6 + $0x1f8] sm:$0xf]
        %v1498 = vld [vmem:[#allocation6 + $0x1fc] sm:$0xf]
        %v1499 = vld [vmem:[#allocation6 + $0x200] sm:$0xf]
        %v1500 = vld [vmem:[#allocation6 + $0x204] sm:$0xf]
        %v1501 = vld [vmem:[#allocation6 + $0x208] sm:$0xf]
        %v1502 = vld [vmem:[#allocation6 + $0x20c] sm:$0xf]
        %v1503 = vld [vmem:[#allocation6 + $0x210] sm:$0xf]
        %v1504 = vld [vmem:[#allocation6 + $0x214] sm:$0xf]
        %v1505 = vld [vmem:[#allocation6 + $0x218] sm:$0xf]
        %v1506 = vld [vmem:[#allocation6 + $0x21c] sm:$0xf]
        %v1507 = vld [vmem:[#allocation6 + $0x220] sm:$0xf]
        %v1508 = vld [vmem:[#allocation6 + $0x224] sm:$0xf]
        %v1509 = vld [vmem:[#allocation6 + $0x228] sm:$0xf]
        %v1510 = vld [vmem:[#allocation6 + $0x22c] sm:$0xf]
        %v1511 = vld [vmem:[#allocation6 + $0x230] sm:$0xf]
        %v1512 = vld [vmem:[#allocation6 + $0x234] sm:$0xf]
        %v1513 = vld [vmem:[#allocation6 + $0x238] sm:$0xf]
        %v1514 = vld [vmem:[#allocation6 + $0x23c] sm:$0xf]
        %v1515 = vld [vmem:[%s2] sm:$0x1]
        %v1517 = vperm.slane %v1515, 0
        %v1663 = vunpack.c.l.b16 %v1371
        %v1664 = vunpack.c.l.b16 %v1372
        %v1665 = vunpack.c.l.b16 %v1373
        %v1666 = vunpack.c.l.b16 %v1374
        %v1667 = vunpack.c.l.b16 %v1375
        %v1668 = vunpack.c.l.b16 %v1376
        %v1669 = vunpack.c.l.b16 %v1377
        %v1670 = vunpack.c.l.b16 %v1378
        %v1671 = vunpack.c.l.b16 %v1379
        %v1672 = vunpack.c.l.b16 %v1380
        %v1673 = vunpack.c.l.b16 %v1381
        %v1674 = vunpack.c.l.b16 %v1382
        %v1675 = vunpack.c.l.b16 %v1383
        %v1676 = vunpack.c.l.b16 %v1384
        %v1677 = vunpack.c.l.b16 %v1385
        %v1678 = vunpack.c.l.b16 %v1386
        %v1679 = vunpack.c.l.b16 %v1387
        %v1680 = vunpack.c.l.b16 %v1388
        %v1681 = vunpack.c.l.b16 %v1389
        %v1682 = vunpack.c.l.b16 %v1390
        %v1683 = vunpack.c.l.b16 %v1391
        %v1684 = vunpack.c.l.b16 %v1392
        %v1685 = vunpack.c.l.b16 %v1393
        %v1686 = vunpack.c.l.b16 %v1394
        %v1687 = vunpack.c.l.b16 %v1395
        %v1688 = vunpack.c.l.b16 %v1396
        %v1689 = vunpack.c.l.b16 %v1397
        %v1690 = vunpack.c.l.b16 %v1398
        %v1691 = vunpack.c.l.b16 %v1399
        %v1692 = vunpack.c.l.b16 %v1400
        %v1693 = vunpack.c.l.b16 %v1401
        %v1694 = vunpack.c.l.b16 %v1402
        %v1695 = vunpack.c.l.b16 %v1403
        %v1696 = vunpack.c.l.b16 %v1404
        %v1697 = vunpack.c.l.b16 %v1405
        %v1698 = vunpack.c.l.b16 %v1406
        %v1699 = vunpack.c.l.b16 %v1407
        %v1700 = vunpack.c.l.b16 %v1408
        %v1701 = vunpack.c.l.b16 %v1409
        %v1702 = vunpack.c.l.b16 %v1410
        %v1703 = vunpack.c.l.b16 %v1411
        %v1704 = vunpack.c.l.b16 %v1412
        %v1705 = vunpack.c.l.b16 %v1413
        %v1706 = vunpack.c.l.b16 %v1414
        %v1707 = vunpack.c.l.b16 %v1415
        %v1708 = vunpack.c.l.b16 %v1416
        %v1709 = vunpack.c.l.b16 %v1417
        %v1710 = vunpack.c.l.b16 %v1418
        %v1711 = vunpack.c.l.b16 %v1419
        %v1712 = vunpack.c.l.b16 %v1420
        %v1713 = vunpack.c.l.b16 %v1421
        %v1714 = vunpack.c.l.b16 %v1422
        %v1715 = vunpack.c.l.b16 %v1423
        %v1716 = vunpack.c.l.b16 %v1424
        %v1717 = vunpack.c.l.b16 %v1425
        %v1718 = vunpack.c.l.b16 %v1426
        %v1719 = vunpack.c.l.b16 %v1427
        %v1720 = vunpack.c.l.b16 %v1428
        %v1721 = vunpack.c.l.b16 %v1429
        %v1722 = vunpack.c.l.b16 %v1430
        %v1723 = vunpack.c.l.b16 %v1431
        %v1724 = vunpack.c.l.b16 %v1432
        %v1725 = vunpack.c.l.b16 %v1433
        %v1726 = vunpack.c.l.b16 %v1434
        %v1727 = vunpack.c.l.b16 %v1435
        %v1728 = vunpack.c.l.b16 %v1436
        %v1729 = vunpack.c.l.b16 %v1437
        %v1730 = vunpack.c.l.b16 %v1438
        %v1731 = vunpack.c.l.b16 %v1439
        %v1732 = vunpack.c.l.b16 %v1440
        %v1733 = vunpack.c.l.b16 %v1441
        %v1734 = vunpack.c.l.b16 %v1442
        %v1735 = vunpack.c.l.b16 %v1443
        %v1736 = vunpack.c.l.b16 %v1444
        %v1737 = vunpack.c.l.b16 %v1445
        %v1738 = vunpack.c.l.b16 %v1446
        %v1739 = vunpack.c.l.b16 %v1447
        %v1740 = vunpack.c.l.b16 %v1448
        %v1741 = vunpack.c.l.b16 %v1449
        %v1742 = vunpack.c.l.b16 %v1450
        %v1743 = vunpack.c.l.b16 %v1451
        %v1744 = vunpack.c.l.b16 %v1452
        %v1745 = vunpack.c.l.b16 %v1453
        %v1746 = vunpack.c.l.b16 %v1454
        %v1747 = vunpack.c.l.b16 %v1455
        %v1748 = vunpack.c.l.b16 %v1456
        %v1749 = vunpack.c.l.b16 %v1457
        %v1750 = vunpack.c.l.b16 %v1458
        %v1751 = vunpack.c.l.b16 %v1459
        %v1752 = vunpack.c.l.b16 %v1460
        %v1753 = vunpack.c.l.b16 %v1461
        %v1754 = vunpack.c.l.b16 %v1462
        %v1755 = vunpack.c.l.b16 %v1463
        %v1756 = vunpack.c.l.b16 %v1464
        %v1757 = vunpack.c.l.b16 %v1465
        %v1758 = vunpack.c.l.b16 %v1466
        %v1759 = vunpack.c.l.b16 %v1467
        %v1760 = vunpack.c.l.b16 %v1468
        %v1761 = vunpack.c.l.b16 %v1469
        %v1762 = vunpack.c.l.b16 %v1470
        %v1763 = vunpack.c.l.b16 %v1471
        %v1764 = vunpack.c.l.b16 %v1472
        %v1765 = vunpack.c.l.b16 %v1473
        %v1766 = vunpack.c.l.b16 %v1474
        %v1767 = vunpack.c.l.b16 %v1475
        %v1768 = vunpack.c.l.b16 %v1476
        %v1769 = vunpack.c.l.b16 %v1477
        %v1770 = vunpack.c.l.b16 %v1478
        %v1771 = vunpack.c.l.b16 %v1479
        %v1772 = vunpack.c.l.b16 %v1480
        %v1773 = vunpack.c.l.b16 %v1481
        %v1774 = vunpack.c.l.b16 %v1482
        %v1775 = vunpack.c.l.b16 %v1483
        %v1776 = vunpack.c.l.b16 %v1484
        %v1777 = vunpack.c.l.b16 %v1485
        %v1778 = vunpack.c.l.b16 %v1486
        %v1779 = vunpack.c.l.b16 %v1487
        %v1780 = vunpack.c.l.b16 %v1488
        %v1781 = vunpack.c.l.b16 %v1489
        %v1782 = vunpack.c.l.b16 %v1490
        %v1783 = vunpack.c.l.b16 %v1491
        %v1784 = vunpack.c.l.b16 %v1492
        %v1785 = vunpack.c.l.b16 %v1493
        %v1786 = vunpack.c.l.b16 %v1494
        %v1787 = vunpack.c.l.b16 %v1495
        %v1788 = vunpack.c.l.b16 %v1496
        %v1789 = vunpack.c.l.b16 %v1497
        %v1790 = vunpack.c.l.b16 %v1498
        %v1791 = vunpack.c.l.b16 %v1499
        %v1792 = vunpack.c.l.b16 %v1500
        %v1793 = vunpack.c.l.b16 %v1501
        %v1794 = vunpack.c.l.b16 %v1502
        %v1795 = vunpack.c.l.b16 %v1503
        %v1796 = vunpack.c.l.b16 %v1504
        %v1797 = vunpack.c.l.b16 %v1505
        %v1798 = vunpack.c.l.b16 %v1506
        %v1799 = vunpack.c.l.b16 %v1507
        %v1800 = vunpack.c.l.b16 %v1508
        %v1801 = vunpack.c.l.b16 %v1509
        %v1802 = vunpack.c.l.b16 %v1510
        %v1803 = vunpack.c.l.b16 %v1511
        %v1804 = vunpack.c.l.b16 %v1512
        %v1805 = vunpack.c.l.b16 %v1513
        %v1806 = vunpack.c.l.b16 %v1514
        %v1807 = vpack.c.b16 %v1664, %v1663
        %v1808 = vpack.c.b16 %v1666, %v1665
        %v1809 = vpack.c.b16 %v1668, %v1667
        %v1810 = vpack.c.b16 %v1670, %v1669
        %v1811 = vpack.c.b16 %v1672, %v1671
        %v1812 = vpack.c.b16 %v1674, %v1673
        %v1813 = vpack.c.b16 %v1676, %v1675
        %v1814 = vpack.c.b16 %v1678, %v1677
        %v1815 = vpack.c.b16 %v1680, %v1679
        %v1816 = vpack.c.b16 %v1682, %v1681
        %v1817 = vpack.c.b16 %v1684, %v1683
        %v1818 = vpack.c.b16 %v1686, %v1685
        %v1819 = vpack.c.b16 %v1688, %v1687
        %v1820 = vpack.c.b16 %v1690, %v1689
        %v1821 = vpack.c.b16 %v1692, %v1691
        %v1822 = vpack.c.b16 %v1694, %v1693
        %v1823 = vpack.c.b16 %v1696, %v1695
        %v1824 = vpack.c.b16 %v1698, %v1697
        %v1825 = vpack.c.b16 %v1700, %v1699
        %v1826 = vpack.c.b16 %v1702, %v1701
        %v1827 = vpack.c.b16 %v1704, %v1703
        %v1828 = vpack.c.b16 %v1706, %v1705
        %v1829 = vpack.c.b16 %v1708, %v1707
        %v1830 = vpack.c.b16 %v1710, %v1709
        %v1831 = vpack.c.b16 %v1712, %v1711
        %v1832 = vpack.c.b16 %v1714, %v1713
        %v1833 = vpack.c.b16 %v1716, %v1715
        %v1834 = vpack.c.b16 %v1718, %v1717
        %v1835 = vpack.c.b16 %v1720, %v1719
        %v1836 = vpack.c.b16 %v1722, %v1721
        %v1837 = vpack.c.b16 %v1724, %v1723
        %v1838 = vpack.c.b16 %v1726, %v1725
        %v1839 = vpack.c.b16 %v1728, %v1727
        %v1840 = vpack.c.b16 %v1730, %v1729
        %v1841 = vpack.c.b16 %v1732, %v1731
        %v1842 = vpack.c.b16 %v1734, %v1733
        %v1843 = vpack.c.b16 %v1736, %v1735
        %v1844 = vpack.c.b16 %v1738, %v1737
        %v1845 = vpack.c.b16 %v1740, %v1739
        %v1846 = vpack.c.b16 %v1742, %v1741
        %v1847 = vpack.c.b16 %v1744, %v1743
        %v1848 = vpack.c.b16 %v1746, %v1745
        %v1849 = vpack.c.b16 %v1748, %v1747
        %v1850 = vpack.c.b16 %v1750, %v1749
        %v1851 = vpack.c.b16 %v1752, %v1751
        %v1852 = vpack.c.b16 %v1754, %v1753
        %v1853 = vpack.c.b16 %v1756, %v1755
        %v1854 = vpack.c.b16 %v1758, %v1757
        %v1855 = vpack.c.b16 %v1760, %v1759
        %v1856 = vpack.c.b16 %v1762, %v1761
        %v1857 = vpack.c.b16 %v1764, %v1763
        %v1858 = vpack.c.b16 %v1766, %v1765
        %v1859 = vpack.c.b16 %v1768, %v1767
        %v1860 = vpack.c.b16 %v1770, %v1769
        %v1861 = vpack.c.b16 %v1772, %v1771
        %v1862 = vpack.c.b16 %v1774, %v1773
        %v1863 = vpack.c.b16 %v1776, %v1775
        %v1864 = vpack.c.b16 %v1778, %v1777
        %v1865 = vpack.c.b16 %v1780, %v1779
        %v1866 = vpack.c.b16 %v1782, %v1781
        %v1867 = vpack.c.b16 %v1784, %v1783
        %v1868 = vpack.c.b16 %v1786, %v1785
        %v1869 = vpack.c.b16 %v1788, %v1787
        %v1870 = vpack.c.b16 %v1790, %v1789
        %v1871 = vpack.c.b16 %v1792, %v1791
        %v1872 = vpack.c.b16 %v1794, %v1793
        %v1873 = vpack.c.b16 %v1796, %v1795
        %v1874 = vpack.c.b16 %v1798, %v1797
        %v1875 = vpack.c.b16 %v1800, %v1799
        %v1876 = vpack.c.b16 %v1802, %v1801
        %v1877 = vpack.c.b16 %v1804, %v1803
        %v1878 = vpack.c.b16 %v1806, %v1805
        %1951 = vmatpush.bf16.msra.mxu0 %v1814
        %1952 = vmatpush.bf16.msra.mxu0 %v1813
        %1953 = vmatpush.bf16.msra.mxu0 %v1812
        %1954 = vmatpush.bf16.msra.mxu0 %v1811
        %1955 = vmatpush.bf16.msra.mxu0 %v1810
        %1956 = vmatpush.bf16.msra.mxu0 %v1809
        %1957 = vmatpush.bf16.msra.mxu0 %v1808
        %1958 = vmatpush.bf16.msra.mxu0 %v1807
        %1959 = vmatmul.bf16.gmra.mxu0 %v1257
        %v1960 = vpop.f32.mrf.mxu0
        %v1961 = vadd.f32 %v1517, %v1960
        %v1962 = vpop.f32.mrf.mxu0
        %v1963 = vadd.f32 %v1517, %v1962
        %1964 = vmatmul.bf16.gmra.mxu0 %v1266
        %v1965 = vpop.f32.mrf.mxu0
        %v1966 = vadd.f32 %v1517, %v1965
        %v1967 = vpop.f32.mrf.mxu0
        %v1968 = vadd.f32 %v1517, %v1967
        %1969 = vmatmul.bf16.gmra.mxu0 %v1273
        %v1970 = vpop.f32.mrf.mxu0
        %v1971 = vadd.f32 %v1517, %v1970
        %v1972 = vpop.f32.mrf.mxu0
        %v1973 = vadd.f32 %v1517, %v1972
        %1974 = vmatmul.bf16.gmra.mxu0 %v1280
        %v1975 = vpop.f32.mrf.mxu0
        %v1976 = vadd.f32 %v1517, %v1975
        %v1977 = vpop.f32.mrf.mxu0
        %v1978 = vadd.f32 %v1517, %v1977
        %1979 = vmatmul.bf16.gmra.mxu0 %v1287
        %v1980 = vpop.f32.mrf.mxu0
        %v1981 = vadd.f32 %v1517, %v1980
        %v1982 = vpop.f32.mrf.mxu0
        %v1983 = vadd.f32 %v1517, %v1982
        %1984 = vmatmul.bf16.gmra.mxu0 %v1294
        %v1985 = vpop.f32.mrf.mxu0
        %v1986 = vadd.f32 %v1517, %v1985
        %v1987 = vpop.f32.mrf.mxu0
        %v1988 = vadd.f32 %v1517, %v1987
        %1989 = vmatmul.bf16.gmra.mxu0 %v1301
        %v1990 = vpop.f32.mrf.mxu0
        %v1991 = vadd.f32 %v1517, %v1990
        %v1992 = vpop.f32.mrf.mxu0
        %v1993 = vadd.f32 %v1517, %v1992
        %1994 = vmatmul.bf16.gmra.mxu0 %v1308
        %v1995 = vpop.f32.mrf.mxu0
        %v1996 = vadd.f32 %v1517, %v1995
        %v1997 = vpop.f32.mrf.mxu0
        %v1998 = vadd.f32 %v1517, %v1997
        %1999 = vmatmul.bf16.gmra.mxu0 %v1315
        %v2000 = vpop.f32.mrf.mxu0
        %v2001 = vadd.f32 %v1517, %v2000
        %v2002 = vpop.f32.mrf.mxu0
        %v2003 = vadd.f32 %v1517, %v2002
        %2004 = vmatmul.bf16.gmra.mxu0 %v1322
        %v2005 = vpop.f32.mrf.mxu0
        %v2006 = vadd.f32 %v1517, %v2005
        %v2007 = vpop.f32.mrf.mxu0
        %v2008 = vadd.f32 %v1517, %v2007
        %2009 = vmatmul.bf16.gmra.mxu0 %v1329
        %v2010 = vpop.f32.mrf.mxu0
        %v2011 = vadd.f32 %v1517, %v2010
        %v2012 = vpop.f32.mrf.mxu0
        %v2013 = vadd.f32 %v1517, %v2012
        %2014 = vmatmul.bf16.gmra.mxu0 %v1336
        %v2015 = vpop.f32.mrf.mxu0
        %v2016 = vadd.f32 %v1517, %v2015
        %v2017 = vpop.f32.mrf.mxu0
        %v2018 = vadd.f32 %v1517, %v2017
        %2019 = vmatmul.bf16.gmra.mxu0 %v1343
        %v2020 = vpop.f32.mrf.mxu0
        %v2021 = vadd.f32 %v1517, %v2020
        %v2022 = vpop.f32.mrf.mxu0
        %v2023 = vadd.f32 %v1517, %v2022
        %2024 = vmatmul.bf16.gmra.mxu0 %v1350
        %v2025 = vpop.f32.mrf.mxu0
        %v2026 = vadd.f32 %v1517, %v2025
        %v2027 = vpop.f32.mrf.mxu0
        %v2028 = vadd.f32 %v1517, %v2027
        %2029 = vmatmul.bf16.gmra.mxu0 %v1357
        %v2030 = vpop.f32.mrf.mxu0
        %v2031 = vadd.f32 %v1517, %v2030
        %v2032 = vpop.f32.mrf.mxu0
        %v2033 = vadd.f32 %v1517, %v2032
        %2034 = vmatmul.bf16.gmra.mxu0 %v1364
        %v2035 = vpop.f32.mrf.mxu0
        %v2036 = vadd.f32 %v1517, %v2035
        %v2037 = vpop.f32.mrf.mxu0
        %v2038 = vadd.f32 %v1517, %v2037
        %2039 = vdwg.mxu0
        %2040 = vmatpush.bf16.msra.mxu0 %v1822
        %2041 = vmatpush.bf16.msra.mxu0 %v1821
        %2042 = vmatpush.bf16.msra.mxu0 %v1820
        %2043 = vmatpush.bf16.msra.mxu0 %v1819
        %2044 = vmatpush.bf16.msra.mxu0 %v1818
        %2045 = vmatpush.bf16.msra.mxu0 %v1817
        %2046 = vmatpush.bf16.msra.mxu0 %v1816
        %2047 = vmatpush.bf16.msra.mxu0 %v1815
        %2048 = vmatmul.bf16.gmra.mxu0 %v1258
        %v2049 = vpop.f32.mrf.mxu0
        %v2050 = vadd.f32 %v1961, %v2049
        %v2051 = vpop.f32.mrf.mxu0
        %v2052 = vadd.f32 %v1963, %v2051
        %2053 = vmatmul.bf16.gmra.mxu0 %v1261
        %v2054 = vpop.f32.mrf.mxu0
        %v2055 = vadd.f32 %v1966, %v2054
        %v2056 = vpop.f32.mrf.mxu0
        %v2057 = vadd.f32 %v1968, %v2056
        %2058 = vmatmul.bf16.gmra.mxu0 %v1264
        %v2059 = vpop.f32.mrf.mxu0
        %v2060 = vadd.f32 %v1971, %v2059
        %v2061 = vpop.f32.mrf.mxu0
        %v2062 = vadd.f32 %v1973, %v2061
        %2063 = vmatmul.bf16.gmra.mxu0 %v1271
        %v2064 = vpop.f32.mrf.mxu0
        %v2065 = vadd.f32 %v1976, %v2064
        %v2066 = vpop.f32.mrf.mxu0
        %v2067 = vadd.f32 %v1978, %v2066
        %2068 = vmatmul.bf16.gmra.mxu0 %v1278
        %v2069 = vpop.f32.mrf.mxu0
        %v2070 = vadd.f32 %v1981, %v2069
        %v2071 = vpop.f32.mrf.mxu0
        %v2072 = vadd.f32 %v1983, %v2071
        %2073 = vmatmul.bf16.gmra.mxu0 %v1285
        %v2074 = vpop.f32.mrf.mxu0
        %v2075 = vadd.f32 %v1986, %v2074
        %v2076 = vpop.f32.mrf.mxu0
        %v2077 = vadd.f32 %v1988, %v2076
        %2078 = vmatmul.bf16.gmra.mxu0 %v1292
        %v2079 = vpop.f32.mrf.mxu0
        %v2080 = vadd.f32 %v1991, %v2079
        %v2081 = vpop.f32.mrf.mxu0
        %v2082 = vadd.f32 %v1993, %v2081
        %2083 = vmatmul.bf16.gmra.mxu0 %v1299
        %v2084 = vpop.f32.mrf.mxu0
        %v2085 = vadd.f32 %v1996, %v2084
        %v2086 = vpop.f32.mrf.mxu0
        %v2087 = vadd.f32 %v1998, %v2086
        %2088 = vmatmul.bf16.gmra.mxu0 %v1306
        %v2089 = vpop.f32.mrf.mxu0
        %v2090 = vadd.f32 %v2001, %v2089
        %v2091 = vpop.f32.mrf.mxu0
        %v2092 = vadd.f32 %v2003, %v2091
        %2093 = vmatmul.bf16.gmra.mxu0 %v1313
        %v2094 = vpop.f32.mrf.mxu0
        %v2095 = vadd.f32 %v2006, %v2094
        %v2096 = vpop.f32.mrf.mxu0
        %v2097 = vadd.f32 %v2008, %v2096
        %2098 = vmatmul.bf16.gmra.mxu0 %v1320
        %v2099 = vpop.f32.mrf.mxu0
        %v2100 = vadd.f32 %v2011, %v2099
        %v2101 = vpop.f32.mrf.mxu0
        %v2102 = vadd.f32 %v2013, %v2101
        %2103 = vmatmul.bf16.gmra.mxu0 %v1327
        %v2104 = vpop.f32.mrf.mxu0
        %v2105 = vadd.f32 %v2016, %v2104
        %v2106 = vpop.f32.mrf.mxu0
        %v2107 = vadd.f32 %v2018, %v2106
        %2108 = vmatmul.bf16.gmra.mxu0 %v1334
        %v2109 = vpop.f32.mrf.mxu0
        %v2110 = vadd.f32 %v2021, %v2109
        %v2111 = vpop.f32.mrf.mxu0
        %v2112 = vadd.f32 %v2023, %v2111
        %2113 = vmatmul.bf16.gmra.mxu0 %v1341
        %v2114 = vpop.f32.mrf.mxu0
        %v2115 = vadd.f32 %v2026, %v2114
        %v2116 = vpop.f32.mrf.mxu0
        %v2117 = vadd.f32 %v2028, %v2116
        %2118 = vmatmul.bf16.gmra.mxu0 %v1348
        %v2119 = vpop.f32.mrf.mxu0
        %v2120 = vadd.f32 %v2031, %v2119
        %v2121 = vpop.f32.mrf.mxu0
        %v2122 = vadd.f32 %v2033, %v2121
        %2123 = vmatmul.bf16.gmra.mxu0 %v1355
        %v2124 = vpop.f32.mrf.mxu0
        %v2125 = vadd.f32 %v2036, %v2124
        %v2126 = vpop.f32.mrf.mxu0
        %v2127 = vadd.f32 %v2038, %v2126
        %2128 = vdwg.mxu0
        %2129 = vmatpush.bf16.msra.mxu0 %v1830
        %2130 = vmatpush.bf16.msra.mxu0 %v1829
        %2131 = vmatpush.bf16.msra.mxu0 %v1828
        %2132 = vmatpush.bf16.msra.mxu0 %v1827
        %2133 = vmatpush.bf16.msra.mxu0 %v1826
        %2134 = vmatpush.bf16.msra.mxu0 %v1825
        %2135 = vmatpush.bf16.msra.mxu0 %v1824
        %2136 = vmatpush.bf16.msra.mxu0 %v1823
        %2137 = vmatmul.bf16.gmra.mxu0 %v1259
        %v2138 = vpop.f32.mrf.mxu0
        %v2139 = vadd.f32 %v2050, %v2138
        %v2140 = vpop.f32.mrf.mxu0
        %v2141 = vadd.f32 %v2052, %v2140
        %2142 = vmatmul.bf16.gmra.mxu0 %v1267
        %v2143 = vpop.f32.mrf.mxu0
        %v2144 = vadd.f32 %v2055, %v2143
        %v2145 = vpop.f32.mrf.mxu0
        %v2146 = vadd.f32 %v2057, %v2145
        %2147 = vmatmul.bf16.gmra.mxu0 %v1274
        %v2148 = vpop.f32.mrf.mxu0
        %v2149 = vadd.f32 %v2060, %v2148
        %v2150 = vpop.f32.mrf.mxu0
        %v2151 = vadd.f32 %v2062, %v2150
        %2152 = vmatmul.bf16.gmra.mxu0 %v1281
        %v2153 = vpop.f32.mrf.mxu0
        %v2154 = vadd.f32 %v2065, %v2153
        %v2155 = vpop.f32.mrf.mxu0
        %v2156 = vadd.f32 %v2067, %v2155
        %2157 = vmatmul.bf16.gmra.mxu0 %v1288
        %v2158 = vpop.f32.mrf.mxu0
        %v2159 = vadd.f32 %v2070, %v2158
        %v2160 = vpop.f32.mrf.mxu0
        %v2161 = vadd.f32 %v2072, %v2160
        %2162 = vmatmul.bf16.gmra.mxu0 %v1295
        %v2163 = vpop.f32.mrf.mxu0
        %v2164 = vadd.f32 %v2075, %v2163
        %v2165 = vpop.f32.mrf.mxu0
        %v2166 = vadd.f32 %v2077, %v2165
        %2167 = vmatmul.bf16.gmra.mxu0 %v1302
        %v2168 = vpop.f32.mrf.mxu0
        %v2169 = vadd.f32 %v2080, %v2168
        %v2170 = vpop.f32.mrf.mxu0
        %v2171 = vadd.f32 %v2082, %v2170
        %2172 = vmatmul.bf16.gmra.mxu0 %v1309
        %v2173 = vpop.f32.mrf.mxu0
        %v2174 = vadd.f32 %v2085, %v2173
        %v2175 = vpop.f32.mrf.mxu0
        %v2176 = vadd.f32 %v2087, %v2175
        %2177 = vmatmul.bf16.gmra.mxu0 %v1316
        %v2178 = vpop.f32.mrf.mxu0
        %v2179 = vadd.f32 %v2090, %v2178
        %v2180 = vpop.f32.mrf.mxu0
        %v2181 = vadd.f32 %v2092, %v2180
        %2182 = vmatmul.bf16.gmra.mxu0 %v1323
        %v2183 = vpop.f32.mrf.mxu0
        %v2184 = vadd.f32 %v2095, %v2183
        %v2185 = vpop.f32.mrf.mxu0
        %v2186 = vadd.f32 %v2097, %v2185
        %2187 = vmatmul.bf16.gmra.mxu0 %v1330
        %v2188 = vpop.f32.mrf.mxu0
        %v2189 = vadd.f32 %v2100, %v2188
        %v2190 = vpop.f32.mrf.mxu0
        %v2191 = vadd.f32 %v2102, %v2190
        %2192 = vmatmul.bf16.gmra.mxu0 %v1337
        %v2193 = vpop.f32.mrf.mxu0
        %v2194 = vadd.f32 %v2105, %v2193
        %v2195 = vpop.f32.mrf.mxu0
        %v2196 = vadd.f32 %v2107, %v2195
        %2197 = vmatmul.bf16.gmra.mxu0 %v1344
        %v2198 = vpop.f32.mrf.mxu0
        %v2199 = vadd.f32 %v2110, %v2198
        %v2200 = vpop.f32.mrf.mxu0
        %v2201 = vadd.f32 %v2112, %v2200
        %2202 = vmatmul.bf16.gmra.mxu0 %v1351
        %v2203 = vpop.f32.mrf.mxu0
        %v2204 = vadd.f32 %v2115, %v2203
        %v2205 = vpop.f32.mrf.mxu0
        %v2206 = vadd.f32 %v2117, %v2205
        %2207 = vmatmul.bf16.gmra.mxu0 %v1358
        %v2208 = vpop.f32.mrf.mxu0
        %v2209 = vadd.f32 %v2120, %v2208
        %v2210 = vpop.f32.mrf.mxu0
        %v2211 = vadd.f32 %v2122, %v2210
        %2212 = vmatmul.bf16.gmra.mxu0 %v1365
        %v2213 = vpop.f32.mrf.mxu0
        %v2214 = vadd.f32 %v2125, %v2213
        %v2215 = vpop.f32.mrf.mxu0
        %v2216 = vadd.f32 %v2127, %v2215
        %2217 = vdwg.mxu0
        %2218 = vmatpush.bf16.msra.mxu0 %v1838
        %2219 = vmatpush.bf16.msra.mxu0 %v1837
        %2220 = vmatpush.bf16.msra.mxu0 %v1836
        %2221 = vmatpush.bf16.msra.mxu0 %v1835
        %2222 = vmatpush.bf16.msra.mxu0 %v1834
        %2223 = vmatpush.bf16.msra.mxu0 %v1833
        %2224 = vmatpush.bf16.msra.mxu0 %v1832
        %2225 = vmatpush.bf16.msra.mxu0 %v1831
        %2226 = vmatmul.bf16.gmra.mxu0 %v1260
        %v2227 = vpop.f32.mrf.mxu0
        %v2228 = vadd.f32 %v2139, %v2227
        %v2229 = vpop.f32.mrf.mxu0
        %v2230 = vadd.f32 %v2141, %v2229
        %2231 = vmatmul.bf16.gmra.mxu0 %v1268
        %v2232 = vpop.f32.mrf.mxu0
        %v2233 = vadd.f32 %v2144, %v2232
        %v2234 = vpop.f32.mrf.mxu0
        %v2235 = vadd.f32 %v2146, %v2234
        %2236 = vmatmul.bf16.gmra.mxu0 %v1275
        %v2237 = vpop.f32.mrf.mxu0
        %v2238 = vadd.f32 %v2149, %v2237
        %v2239 = vpop.f32.mrf.mxu0
        %v2240 = vadd.f32 %v2151, %v2239
        %2241 = vmatmul.bf16.gmra.mxu0 %v1282
        %v2242 = vpop.f32.mrf.mxu0
        %v2243 = vadd.f32 %v2154, %v2242
        %v2244 = vpop.f32.mrf.mxu0
        %v2245 = vadd.f32 %v2156, %v2244
        %2246 = vmatmul.bf16.gmra.mxu0 %v1289
        %v2247 = vpop.f32.mrf.mxu0
        %v2248 = vadd.f32 %v2159, %v2247
        %v2249 = vpop.f32.mrf.mxu0
        %v2250 = vadd.f32 %v2161, %v2249
        %2251 = vmatmul.bf16.gmra.mxu0 %v1296
        %v2252 = vpop.f32.mrf.mxu0
        %v2253 = vadd.f32 %v2164, %v2252
        %v2254 = vpop.f32.mrf.mxu0
        %v2255 = vadd.f32 %v2166, %v2254
        %2256 = vmatmul.bf16.gmra.mxu0 %v1303
        %v2257 = vpop.f32.mrf.mxu0
        %v2258 = vadd.f32 %v2169, %v2257
        %v2259 = vpop.f32.mrf.mxu0
        %v2260 = vadd.f32 %v2171, %v2259
        %2261 = vmatmul.bf16.gmra.mxu0 %v1310
        %v2262 = vpop.f32.mrf.mxu0
        %v2263 = vadd.f32 %v2174, %v2262
        %v2264 = vpop.f32.mrf.mxu0
        %v2265 = vadd.f32 %v2176, %v2264
        %2266 = vmatmul.bf16.gmra.mxu0 %v1317
        %v2267 = vpop.f32.mrf.mxu0
        %v2268 = vadd.f32 %v2179, %v2267
        %v2269 = vpop.f32.mrf.mxu0
        %v2270 = vadd.f32 %v2181, %v2269
        %2271 = vmatmul.bf16.gmra.mxu0 %v1324
        %v2272 = vpop.f32.mrf.mxu0
        %v2273 = vadd.f32 %v2184, %v2272
        %v2274 = vpop.f32.mrf.mxu0
        %v2275 = vadd.f32 %v2186, %v2274
        %2276 = vmatmul.bf16.gmra.mxu0 %v1331
        %v2277 = vpop.f32.mrf.mxu0
        %v2278 = vadd.f32 %v2189, %v2277
        %v2279 = vpop.f32.mrf.mxu0
        %v2280 = vadd.f32 %v2191, %v2279
        %2281 = vmatmul.bf16.gmra.mxu0 %v1338
        %v2282 = vpop.f32.mrf.mxu0
        %v2283 = vadd.f32 %v2194, %v2282
        %v2284 = vpop.f32.mrf.mxu0
        %v2285 = vadd.f32 %v2196, %v2284
        %2286 = vmatmul.bf16.gmra.mxu0 %v1345
        %v2287 = vpop.f32.mrf.mxu0
        %v2288 = vadd.f32 %v2199, %v2287
        %v2289 = vpop.f32.mrf.mxu0
        %v2290 = vadd.f32 %v2201, %v2289
        %2291 = vmatmul.bf16.gmra.mxu0 %v1352
        %v2292 = vpop.f32.mrf.mxu0
        %v2293 = vadd.f32 %v2204, %v2292
        %v2294 = vpop.f32.mrf.mxu0
        %v2295 = vadd.f32 %v2206, %v2294
        %2296 = vmatmul.bf16.gmra.mxu0 %v1359
        %v2297 = vpop.f32.mrf.mxu0
        %v2298 = vadd.f32 %v2209, %v2297
        %v2299 = vpop.f32.mrf.mxu0
        %v2300 = vadd.f32 %v2211, %v2299
        %2301 = vmatmul.bf16.gmra.mxu0 %v1366
        %v2302 = vpop.f32.mrf.mxu0
        %v2303 = vadd.f32 %v2214, %v2302
        %v2304 = vpop.f32.mrf.mxu0
        %v2305 = vadd.f32 %v2216, %v2304
        %2306 = vdwg.mxu0
        %2307 = vmatpush.bf16.msra.mxu0 %v1846
        %2308 = vmatpush.bf16.msra.mxu0 %v1845
        %2309 = vmatpush.bf16.msra.mxu0 %v1844
        %2310 = vmatpush.bf16.msra.mxu0 %v1843
        %2311 = vmatpush.bf16.msra.mxu0 %v1842
        %2312 = vmatpush.bf16.msra.mxu0 %v1841
        %2313 = vmatpush.bf16.msra.mxu0 %v1840
        %2314 = vmatpush.bf16.msra.mxu0 %v1839
        %2315 = vmatmul.bf16.gmra.mxu0 %v1261
        %v2316 = vpop.f32.mrf.mxu0
        %v2317 = vadd.f32 %v2228, %v2316
        %v2318 = vpop.f32.mrf.mxu0
        %v2319 = vadd.f32 %v2230, %v2318
        %2320 = vmatmul.bf16.gmra.mxu0 %v1264
        %v2321 = vpop.f32.mrf.mxu0
        %v2322 = vadd.f32 %v2233, %v2321
        %v2323 = vpop.f32.mrf.mxu0
        %v2324 = vadd.f32 %v2235, %v2323
        %2325 = vmatmul.bf16.gmra.mxu0 %v1271
        %v2326 = vpop.f32.mrf.mxu0
        %v2327 = vadd.f32 %v2238, %v2326
        %v2328 = vpop.f32.mrf.mxu0
        %v2329 = vadd.f32 %v2240, %v2328
        %2330 = vmatmul.bf16.gmra.mxu0 %v1278
        %v2331 = vpop.f32.mrf.mxu0
        %v2332 = vadd.f32 %v2243, %v2331
        %v2333 = vpop.f32.mrf.mxu0
        %v2334 = vadd.f32 %v2245, %v2333
        %2335 = vmatmul.bf16.gmra.mxu0 %v1285
        %v2336 = vpop.f32.mrf.mxu0
        %v2337 = vadd.f32 %v2248, %v2336
        %v2338 = vpop.f32.mrf.mxu0
        %v2339 = vadd.f32 %v2250, %v2338
        %2340 = vmatmul.bf16.gmra.mxu0 %v1292
        %v2341 = vpop.f32.mrf.mxu0
        %v2342 = vadd.f32 %v2253, %v2341
        %v2343 = vpop.f32.mrf.mxu0
        %v2344 = vadd.f32 %v2255, %v2343
        %2345 = vmatmul.bf16.gmra.mxu0 %v1299
        %v2346 = vpop.f32.mrf.mxu0
        %v2347 = vadd.f32 %v2258, %v2346
        %v2348 = vpop.f32.mrf.mxu0
        %v2349 = vadd.f32 %v2260, %v2348
        %2350 = vmatmul.bf16.gmra.mxu0 %v1306
        %v2351 = vpop.f32.mrf.mxu0
        %v2352 = vadd.f32 %v2263, %v2351
        %v2353 = vpop.f32.mrf.mxu0
        %v2354 = vadd.f32 %v2265, %v2353
        %2355 = vmatmul.bf16.gmra.mxu0 %v1313
        %v2356 = vpop.f32.mrf.mxu0
        %v2357 = vadd.f32 %v2268, %v2356
        %v2358 = vpop.f32.mrf.mxu0
        %v2359 = vadd.f32 %v2270, %v2358
        %2360 = vmatmul.bf16.gmra.mxu0 %v1320
        %v2361 = vpop.f32.mrf.mxu0
        %v2362 = vadd.f32 %v2273, %v2361
        %v2363 = vpop.f32.mrf.mxu0
        %v2364 = vadd.f32 %v2275, %v2363
        %2365 = vmatmul.bf16.gmra.mxu0 %v1327
        %v2366 = vpop.f32.mrf.mxu0
        %v2367 = vadd.f32 %v2278, %v2366
        %v2368 = vpop.f32.mrf.mxu0
        %v2369 = vadd.f32 %v2280, %v2368
        %2370 = vmatmul.bf16.gmra.mxu0 %v1334
        %v2371 = vpop.f32.mrf.mxu0
        %v2372 = vadd.f32 %v2283, %v2371
        %v2373 = vpop.f32.mrf.mxu0
        %v2374 = vadd.f32 %v2285, %v2373
        %2375 = vmatmul.bf16.gmra.mxu0 %v1341
        %v2376 = vpop.f32.mrf.mxu0
        %v2377 = vadd.f32 %v2288, %v2376
        %v2378 = vpop.f32.mrf.mxu0
        %v2379 = vadd.f32 %v2290, %v2378
        %2380 = vmatmul.bf16.gmra.mxu0 %v1348
        %v2381 = vpop.f32.mrf.mxu0
        %v2382 = vadd.f32 %v2293, %v2381
        %v2383 = vpop.f32.mrf.mxu0
        %v2384 = vadd.f32 %v2295, %v2383
        %2385 = vmatmul.bf16.gmra.mxu0 %v1355
        %v2386 = vpop.f32.mrf.mxu0
        %v2387 = vadd.f32 %v2298, %v2386
        %v2388 = vpop.f32.mrf.mxu0
        %v2389 = vadd.f32 %v2300, %v2388
        %2390 = vmatmul.bf16.gmra.mxu0 %v1362
        %v2391 = vpop.f32.mrf.mxu0
        %v2392 = vadd.f32 %v2303, %v2391
        %v2393 = vpop.f32.mrf.mxu0
        %v2394 = vadd.f32 %v2305, %v2393
        %2395 = vdwg.mxu0
        %2396 = vmatpush.bf16.msra.mxu0 %v1854
        %2397 = vmatpush.bf16.msra.mxu0 %v1853
        %2398 = vmatpush.bf16.msra.mxu0 %v1852
        %2399 = vmatpush.bf16.msra.mxu0 %v1851
        %2400 = vmatpush.bf16.msra.mxu0 %v1850
        %2401 = vmatpush.bf16.msra.mxu0 %v1849
        %2402 = vmatpush.bf16.msra.mxu0 %v1848
        %2403 = vmatpush.bf16.msra.mxu0 %v1847
        %2404 = vmatmul.bf16.gmra.mxu0 %v1262
        %v2405 = vpop.f32.mrf.mxu0
        %v2406 = vadd.f32 %v2317, %v2405
        %v2407 = vpop.f32.mrf.mxu0
        %v2408 = vadd.f32 %v2319, %v2407
        %2409 = vmatmul.bf16.gmra.mxu0 %v1269
        %v2410 = vpop.f32.mrf.mxu0
        %v2411 = vadd.f32 %v2322, %v2410
        %v2412 = vpop.f32.mrf.mxu0
        %v2413 = vadd.f32 %v2324, %v2412
        %2414 = vmatmul.bf16.gmra.mxu0 %v1276
        %v2415 = vpop.f32.mrf.mxu0
        %v2416 = vadd.f32 %v2327, %v2415
        %v2417 = vpop.f32.mrf.mxu0
        %v2418 = vadd.f32 %v2329, %v2417
        %2419 = vmatmul.bf16.gmra.mxu0 %v1283
        %v2420 = vpop.f32.mrf.mxu0
        %v2421 = vadd.f32 %v2332, %v2420
        %v2422 = vpop.f32.mrf.mxu0
        %v2423 = vadd.f32 %v2334, %v2422
        %2424 = vmatmul.bf16.gmra.mxu0 %v1290
        %v2425 = vpop.f32.mrf.mxu0
        %v2426 = vadd.f32 %v2337, %v2425
        %v2427 = vpop.f32.mrf.mxu0
        %v2428 = vadd.f32 %v2339, %v2427
        %2429 = vmatmul.bf16.gmra.mxu0 %v1297
        %v2430 = vpop.f32.mrf.mxu0
        %v2431 = vadd.f32 %v2342, %v2430
        %v2432 = vpop.f32.mrf.mxu0
        %v2433 = vadd.f32 %v2344, %v2432
        %2434 = vmatmul.bf16.gmra.mxu0 %v1304
        %v2435 = vpop.f32.mrf.mxu0
        %v2436 = vadd.f32 %v2347, %v2435
        %v2437 = vpop.f32.mrf.mxu0
        %v2438 = vadd.f32 %v2349, %v2437
        %2439 = vmatmul.bf16.gmra.mxu0 %v1311
        %v2440 = vpop.f32.mrf.mxu0
        %v2441 = vadd.f32 %v2352, %v2440
        %v2442 = vpop.f32.mrf.mxu0
        %v2443 = vadd.f32 %v2354, %v2442
        %2444 = vmatmul.bf16.gmra.mxu0 %v1318
        %v2445 = vpop.f32.mrf.mxu0
        %v2446 = vadd.f32 %v2357, %v2445
        %v2447 = vpop.f32.mrf.mxu0
        %v2448 = vadd.f32 %v2359, %v2447
        %2449 = vmatmul.bf16.gmra.mxu0 %v1325
        %v2450 = vpop.f32.mrf.mxu0
        %v2451 = vadd.f32 %v2362, %v2450
        %v2452 = vpop.f32.mrf.mxu0
        %v2453 = vadd.f32 %v2364, %v2452
        %2454 = vmatmul.bf16.gmra.mxu0 %v1332
        %v2455 = vpop.f32.mrf.mxu0
        %v2456 = vadd.f32 %v2367, %v2455
        %v2457 = vpop.f32.mrf.mxu0
        %v2458 = vadd.f32 %v2369, %v2457
        %2459 = vmatmul.bf16.gmra.mxu0 %v1339
        %v2460 = vpop.f32.mrf.mxu0
        %v2461 = vadd.f32 %v2372, %v2460
        %v2462 = vpop.f32.mrf.mxu0
        %v2463 = vadd.f32 %v2374, %v2462
        %2464 = vmatmul.bf16.gmra.mxu0 %v1346
        %v2465 = vpop.f32.mrf.mxu0
        %v2466 = vadd.f32 %v2377, %v2465
        %v2467 = vpop.f32.mrf.mxu0
        %v2468 = vadd.f32 %v2379, %v2467
        %2469 = vmatmul.bf16.gmra.mxu0 %v1353
        %v2470 = vpop.f32.mrf.mxu0
        %v2471 = vadd.f32 %v2382, %v2470
        %v2472 = vpop.f32.mrf.mxu0
        %v2473 = vadd.f32 %v2384, %v2472
        %2474 = vmatmul.bf16.gmra.mxu0 %v1360
        %v2475 = vpop.f32.mrf.mxu0
        %v2476 = vadd.f32 %v2387, %v2475
        %v2477 = vpop.f32.mrf.mxu0
        %v2478 = vadd.f32 %v2389, %v2477
        %2479 = vmatmul.bf16.gmra.mxu0 %v1367
        %v2480 = vpop.f32.mrf.mxu0
        %v2481 = vadd.f32 %v2392, %v2480
        %v2482 = vpop.f32.mrf.mxu0
        %v2483 = vadd.f32 %v2394, %v2482
        %2484 = vdwg.mxu0
        %2485 = vmatpush.bf16.msra.mxu0 %v1862
        %2486 = vmatpush.bf16.msra.mxu0 %v1861
        %2487 = vmatpush.bf16.msra.mxu0 %v1860
        %2488 = vmatpush.bf16.msra.mxu0 %v1859
        %2489 = vmatpush.bf16.msra.mxu0 %v1858
        %2490 = vmatpush.bf16.msra.mxu0 %v1857
        %2491 = vmatpush.bf16.msra.mxu0 %v1856
        %2492 = vmatpush.bf16.msra.mxu0 %v1855
        %2493 = vmatmul.bf16.gmra.mxu0 %v1263
        %v2494 = vpop.f32.mrf.mxu0
        %v2495 = vadd.f32 %v2406, %v2494
        %v2496 = vpop.f32.mrf.mxu0
        %v2497 = vadd.f32 %v2408, %v2496
        %2498 = vmatmul.bf16.gmra.mxu0 %v1270
        %v2499 = vpop.f32.mrf.mxu0
        %v2500 = vadd.f32 %v2411, %v2499
        %v2501 = vpop.f32.mrf.mxu0
        %v2502 = vadd.f32 %v2413, %v2501
        %2503 = vmatmul.bf16.gmra.mxu0 %v1277
        %v2504 = vpop.f32.mrf.mxu0
        %v2505 = vadd.f32 %v2416, %v2504
        %v2506 = vpop.f32.mrf.mxu0
        %v2507 = vadd.f32 %v2418, %v2506
        %2508 = vmatmul.bf16.gmra.mxu0 %v1284
        %v2509 = vpop.f32.mrf.mxu0
        %v2510 = vadd.f32 %v2421, %v2509
        %v2511 = vpop.f32.mrf.mxu0
        %v2512 = vadd.f32 %v2423, %v2511
        %2513 = vmatmul.bf16.gmra.mxu0 %v1291
        %v2514 = vpop.f32.mrf.mxu0
        %v2515 = vadd.f32 %v2426, %v2514
        %v2516 = vpop.f32.mrf.mxu0
        %v2517 = vadd.f32 %v2428, %v2516
        %2518 = vmatmul.bf16.gmra.mxu0 %v1298
        %v2519 = vpop.f32.mrf.mxu0
        %v2520 = vadd.f32 %v2431, %v2519
        %v2521 = vpop.f32.mrf.mxu0
        %v2522 = vadd.f32 %v2433, %v2521
        %2523 = vmatmul.bf16.gmra.mxu0 %v1305
        %v2524 = vpop.f32.mrf.mxu0
        %v2525 = vadd.f32 %v2436, %v2524
        %v2526 = vpop.f32.mrf.mxu0
        %v2527 = vadd.f32 %v2438, %v2526
        %2528 = vmatmul.bf16.gmra.mxu0 %v1312
        %v2529 = vpop.f32.mrf.mxu0
        %v2530 = vadd.f32 %v2441, %v2529
        %v2531 = vpop.f32.mrf.mxu0
        %v2532 = vadd.f32 %v2443, %v2531
        %2533 = vmatmul.bf16.gmra.mxu0 %v1319
        %v2534 = vpop.f32.mrf.mxu0
        %v2535 = vadd.f32 %v2446, %v2534
        %v2536 = vpop.f32.mrf.mxu0
        %v2537 = vadd.f32 %v2448, %v2536
        %2538 = vmatmul.bf16.gmra.mxu0 %v1326
        %v2539 = vpop.f32.mrf.mxu0
        %v2540 = vadd.f32 %v2451, %v2539
        %v2541 = vpop.f32.mrf.mxu0
        %v2542 = vadd.f32 %v2453, %v2541
        %2543 = vmatmul.bf16.gmra.mxu0 %v1333
        %v2544 = vpop.f32.mrf.mxu0
        %v2545 = vadd.f32 %v2456, %v2544
        %v2546 = vpop.f32.mrf.mxu0
        %v2547 = vadd.f32 %v2458, %v2546
        %2548 = vmatmul.bf16.gmra.mxu0 %v1340
        %v2549 = vpop.f32.mrf.mxu0
        %v2550 = vadd.f32 %v2461, %v2549
        %v2551 = vpop.f32.mrf.mxu0
        %v2552 = vadd.f32 %v2463, %v2551
        %2553 = vmatmul.bf16.gmra.mxu0 %v1347
        %v2554 = vpop.f32.mrf.mxu0
        %v2555 = vadd.f32 %v2466, %v2554
        %v2556 = vpop.f32.mrf.mxu0
        %v2557 = vadd.f32 %v2468, %v2556
        %2558 = vmatmul.bf16.gmra.mxu0 %v1354
        %v2559 = vpop.f32.mrf.mxu0
        %v2560 = vadd.f32 %v2471, %v2559
        %v2561 = vpop.f32.mrf.mxu0
        %v2562 = vadd.f32 %v2473, %v2561
        %2563 = vmatmul.bf16.gmra.mxu0 %v1361
        %v2564 = vpop.f32.mrf.mxu0
        %v2565 = vadd.f32 %v2476, %v2564
        %v2566 = vpop.f32.mrf.mxu0
        %v2567 = vadd.f32 %v2478, %v2566
        %2568 = vmatmul.bf16.gmra.mxu0 %v1368
        %v2569 = vpop.f32.mrf.mxu0
        %v2570 = vadd.f32 %v2481, %v2569
        %v2571 = vpop.f32.mrf.mxu0
        %v2572 = vadd.f32 %v2483, %v2571
        %2573 = vdwg.mxu0
        %2574 = vmatpush.bf16.msra.mxu0 %v1870
        %2575 = vmatpush.bf16.msra.mxu0 %v1869
        %2576 = vmatpush.bf16.msra.mxu0 %v1868
        %2577 = vmatpush.bf16.msra.mxu0 %v1867
        %2578 = vmatpush.bf16.msra.mxu0 %v1866
        %2579 = vmatpush.bf16.msra.mxu0 %v1865
        %2580 = vmatpush.bf16.msra.mxu0 %v1864
        %2581 = vmatpush.bf16.msra.mxu0 %v1863
        %2582 = vmatmul.bf16.gmra.mxu0 %v1264
        %v2583 = vpop.f32.mrf.mxu0
        %v2584 = vadd.f32 %v2495, %v2583
        %v2585 = vpop.f32.mrf.mxu0
        %v2586 = vadd.f32 %v2497, %v2585
        %2587 = vmatmul.bf16.gmra.mxu0 %v1271
        %v2588 = vpop.f32.mrf.mxu0
        %v2589 = vadd.f32 %v2500, %v2588
        %v2590 = vpop.f32.mrf.mxu0
        %v2591 = vadd.f32 %v2502, %v2590
        %2592 = vmatmul.bf16.gmra.mxu0 %v1278
        %v2593 = vpop.f32.mrf.mxu0
        %v2594 = vadd.f32 %v2505, %v2593
        %v2595 = vpop.f32.mrf.mxu0
        %v2596 = vadd.f32 %v2507, %v2595
        %2597 = vmatmul.bf16.gmra.mxu0 %v1285
        %v2598 = vpop.f32.mrf.mxu0
        %v2599 = vadd.f32 %v2510, %v2598
        %v2600 = vpop.f32.mrf.mxu0
        %v2601 = vadd.f32 %v2512, %v2600
        %2602 = vmatmul.bf16.gmra.mxu0 %v1292
        %v2603 = vpop.f32.mrf.mxu0
        %v2604 = vadd.f32 %v2515, %v2603
        %v2605 = vpop.f32.mrf.mxu0
        %v2606 = vadd.f32 %v2517, %v2605
        %2607 = vmatmul.bf16.gmra.mxu0 %v1299
        %v2608 = vpop.f32.mrf.mxu0
        %v2609 = vadd.f32 %v2520, %v2608
        %v2610 = vpop.f32.mrf.mxu0
        %v2611 = vadd.f32 %v2522, %v2610
        %2612 = vmatmul.bf16.gmra.mxu0 %v1306
        %v2613 = vpop.f32.mrf.mxu0
        %v2614 = vadd.f32 %v2525, %v2613
        %v2615 = vpop.f32.mrf.mxu0
        %v2616 = vadd.f32 %v2527, %v2615
        %2617 = vmatmul.bf16.gmra.mxu0 %v1313
        %v2618 = vpop.f32.mrf.mxu0
        %v2619 = vadd.f32 %v2530, %v2618
        %v2620 = vpop.f32.mrf.mxu0
        %v2621 = vadd.f32 %v2532, %v2620
        %2622 = vmatmul.bf16.gmra.mxu0 %v1320
        %v2623 = vpop.f32.mrf.mxu0
        %v2624 = vadd.f32 %v2535, %v2623
        %v2625 = vpop.f32.mrf.mxu0
        %v2626 = vadd.f32 %v2537, %v2625
        %2627 = vmatmul.bf16.gmra.mxu0 %v1327
        %v2628 = vpop.f32.mrf.mxu0
        %v2629 = vadd.f32 %v2540, %v2628
        %v2630 = vpop.f32.mrf.mxu0
        %v2631 = vadd.f32 %v2542, %v2630
        %2632 = vmatmul.bf16.gmra.mxu0 %v1334
        %v2633 = vpop.f32.mrf.mxu0
        %v2634 = vadd.f32 %v2545, %v2633
        %v2635 = vpop.f32.mrf.mxu0
        %v2636 = vadd.f32 %v2547, %v2635
        %2637 = vmatmul.bf16.gmra.mxu0 %v1341
        %v2638 = vpop.f32.mrf.mxu0
        %v2639 = vadd.f32 %v2550, %v2638
        %v2640 = vpop.f32.mrf.mxu0
        %v2641 = vadd.f32 %v2552, %v2640
        %2642 = vmatmul.bf16.gmra.mxu0 %v1348
        %v2643 = vpop.f32.mrf.mxu0
        %v2644 = vadd.f32 %v2555, %v2643
        %v2645 = vpop.f32.mrf.mxu0
        %v2646 = vadd.f32 %v2557, %v2645
        %2647 = vmatmul.bf16.gmra.mxu0 %v1355
        %v2648 = vpop.f32.mrf.mxu0
        %v2649 = vadd.f32 %v2560, %v2648
        %v2650 = vpop.f32.mrf.mxu0
        %v2651 = vadd.f32 %v2562, %v2650
        %2652 = vmatmul.bf16.gmra.mxu0 %v1362
        %v2653 = vpop.f32.mrf.mxu0
        %v2654 = vadd.f32 %v2565, %v2653
        %v2655 = vpop.f32.mrf.mxu0
        %v2656 = vadd.f32 %v2567, %v2655
        %2657 = vmatmul.bf16.gmra.mxu0 %v1369
        %v2658 = vpop.f32.mrf.mxu0
        %v2659 = vadd.f32 %v2570, %v2658
        %v2660 = vpop.f32.mrf.mxu0
        %v2661 = vadd.f32 %v2572, %v2660
        %2662 = vdwg.mxu0
        %2663 = vmatpush.bf16.msra.mxu0 %v1878
        %2664 = vmatpush.bf16.msra.mxu0 %v1877
        %2665 = vmatpush.bf16.msra.mxu0 %v1876
        %2666 = vmatpush.bf16.msra.mxu0 %v1875
        %2667 = vmatpush.bf16.msra.mxu0 %v1874
        %2668 = vmatpush.bf16.msra.mxu0 %v1873
        %2669 = vmatpush.bf16.msra.mxu0 %v1872
        %2670 = vmatpush.bf16.msra.mxu0 %v1871
        %2671 = vmatmul.bf16.gmra.mxu0 %v1265
        %v2672 = vpop.f32.mrf.mxu0
        %v2673 = vadd.f32 %v2584, %v2672
        %v2674 = vpop.f32.mrf.mxu0
        %v2675 = vadd.f32 %v2586, %v2674
        %2676 = vmatmul.bf16.gmra.mxu0 %v1272
        %v2677 = vpop.f32.mrf.mxu0
        %v2678 = vadd.f32 %v2589, %v2677
        %v2679 = vpop.f32.mrf.mxu0
        %v2680 = vadd.f32 %v2591, %v2679
        %2681 = vmatmul.bf16.gmra.mxu0 %v1279
        %v2682 = vpop.f32.mrf.mxu0
        %v2683 = vadd.f32 %v2594, %v2682
        %v2684 = vpop.f32.mrf.mxu0
        %v2685 = vadd.f32 %v2596, %v2684
        %2686 = vmatmul.bf16.gmra.mxu0 %v1286
        %v2687 = vpop.f32.mrf.mxu0
        %v2688 = vadd.f32 %v2599, %v2687
        %v2689 = vpop.f32.mrf.mxu0
        %v2690 = vadd.f32 %v2601, %v2689
        %2691 = vmatmul.bf16.gmra.mxu0 %v1293
        %v2692 = vpop.f32.mrf.mxu0
        %v2693 = vadd.f32 %v2604, %v2692
        %v2694 = vpop.f32.mrf.mxu0
        %v2695 = vadd.f32 %v2606, %v2694
        %2696 = vmatmul.bf16.gmra.mxu0 %v1300
        %v2697 = vpop.f32.mrf.mxu0
        %v2698 = vadd.f32 %v2609, %v2697
        %v2699 = vpop.f32.mrf.mxu0
        %v2700 = vadd.f32 %v2611, %v2699
        %2701 = vmatmul.bf16.gmra.mxu0 %v1307
        %v2702 = vpop.f32.mrf.mxu0
        %v2703 = vadd.f32 %v2614, %v2702
        %v2704 = vpop.f32.mrf.mxu0
        %v2705 = vadd.f32 %v2616, %v2704
        %2706 = vmatmul.bf16.gmra.mxu0 %v1314
        %v2707 = vpop.f32.mrf.mxu0
        %v2708 = vadd.f32 %v2619, %v2707
        %v2709 = vpop.f32.mrf.mxu0
        %v2710 = vadd.f32 %v2621, %v2709
        %2711 = vmatmul.bf16.gmra.mxu0 %v1321
        %v2712 = vpop.f32.mrf.mxu0
        %v2713 = vadd.f32 %v2624, %v2712
        %v2714 = vpop.f32.mrf.mxu0
        %v2715 = vadd.f32 %v2626, %v2714
        %2716 = vmatmul.bf16.gmra.mxu0 %v1328
        %v2717 = vpop.f32.mrf.mxu0
        %v2718 = vadd.f32 %v2629, %v2717
        %v2719 = vpop.f32.mrf.mxu0
        %v2720 = vadd.f32 %v2631, %v2719
        %2721 = vmatmul.bf16.gmra.mxu0 %v1335
        %v2722 = vpop.f32.mrf.mxu0
        %v2723 = vadd.f32 %v2634, %v2722
        %v2724 = vpop.f32.mrf.mxu0
        %v2725 = vadd.f32 %v2636, %v2724
        %2726 = vmatmul.bf16.gmra.mxu0 %v1342
        %v2727 = vpop.f32.mrf.mxu0
        %v2728 = vadd.f32 %v2639, %v2727
        %v2729 = vpop.f32.mrf.mxu0
        %v2730 = vadd.f32 %v2641, %v2729
        %2731 = vmatmul.bf16.gmra.mxu0 %v1349
        %v2732 = vpop.f32.mrf.mxu0
        %v2733 = vadd.f32 %v2644, %v2732
        %v2734 = vpop.f32.mrf.mxu0
        %v2735 = vadd.f32 %v2646, %v2734
        %2736 = vmatmul.bf16.gmra.mxu0 %v1356
        %v2737 = vpop.f32.mrf.mxu0
        %v2738 = vadd.f32 %v2649, %v2737
        %v2739 = vpop.f32.mrf.mxu0
        %v2740 = vadd.f32 %v2651, %v2739
        %2741 = vmatmul.bf16.gmra.mxu0 %v1363
        %v2742 = vpop.f32.mrf.mxu0
        %v2743 = vadd.f32 %v2654, %v2742
        %v2744 = vpop.f32.mrf.mxu0
        %v2745 = vadd.f32 %v2656, %v2744
        %2746 = vmatmul.bf16.gmra.mxu0 %v1370
        %v2747 = vpop.f32.mrf.mxu0
        %v2748 = vadd.f32 %v2659, %v2747
        %v2749 = vpop.f32.mrf.mxu0
        %v2750 = vadd.f32 %v2661, %v2749
        %2751 = vdwg.mxu0
        %v2752 = vmax.f32 %v2673, 0.0
        %v2753 = vmax.f32 %v2675, 0.0
        %v2754 = vmax.f32 %v2678, 0.0
        %v2755 = vmax.f32 %v2680, 0.0
        %v2756 = vmax.f32 %v2683, 0.0
        %v2757 = vmax.f32 %v2685, 0.0
        %v2758 = vmax.f32 %v2688, 0.0
        %v2759 = vmax.f32 %v2690, 0.0
        %v2760 = vmax.f32 %v2693, 0.0
        %v2761 = vmax.f32 %v2695, 0.0
        %v2762 = vmax.f32 %v2698, 0.0
        %v2763 = vmax.f32 %v2700, 0.0
        %v2764 = vmax.f32 %v2703, 0.0
        %v2765 = vmax.f32 %v2705, 0.0
        %v2766 = vmax.f32 %v2708, 0.0
        %v2767 = vmax.f32 %v2710, 0.0
        %v2768 = vmax.f32 %v2713, 0.0
        %v2769 = vmax.f32 %v2715, 0.0
        %v2770 = vmax.f32 %v2718, 0.0
        %v2771 = vmax.f32 %v2720, 0.0
        %v2772 = vmax.f32 %v2723, 0.0
        %v2773 = vmax.f32 %v2725, 0.0
        %v2774 = vmax.f32 %v2728, 0.0
        %v2775 = vmax.f32 %v2730, 0.0
        %v2776 = vmax.f32 %v2733, 0.0
        %v2777 = vmax.f32 %v2735, 0.0
        %v2778 = vmax.f32 %v2738, 0.0
        %v2779 = vmax.f32 %v2740, 0.0
        %v2780 = vmax.f32 %v2743, 0.0
        %v2781 = vmax.f32 %v2745, 0.0
        %v2782 = vmax.f32 %v2748, 0.0
        %v2783 = vmax.f32 %v2750, 0.0
        %2784 = vst [vmem:[#allocation2 + $0x18] sm:$0xff] %v2752
        %2785 = vst [vmem:[#allocation2 + $0x20] sm:$0xff] %v2753
        %2786 = vst [vmem:[#allocation2 + $0x28] sm:$0xff] %v2754
        %2787 = vst [vmem:[#allocation2 + $0x30] sm:$0xff] %v2755
        %2788 = vst [vmem:[#allocation2 + $0x38] sm:$0xff] %v2756
        %2789 = vst [vmem:[#allocation2 + $0x40] sm:$0xff] %v2757
        %2790 = vst [vmem:[#allocation2 + $0x48] sm:$0xff] %v2758
        %2791 = vst [vmem:[#allocation2 + $0x50] sm:$0xff] %v2759
        %2792 = vst [vmem:[#allocation2 + $0x58] sm:$0xff] %v2760
        %2793 = vst [vmem:[#allocation2 + $0x60] sm:$0xff] %v2761
        %2794 = vst [vmem:[#allocation2 + $0x68] sm:$0xff] %v2762
        %2795 = vst [vmem:[#allocation2 + $0x70] sm:$0xff] %v2763
        %2796 = vst [vmem:[#allocation2 + $0x78] sm:$0xff] %v2764
        %2797 = vst [vmem:[#allocation2 + $0x80] sm:$0xff] %v2765
        %2798 = vst [vmem:[#allocation2 + $0x88] sm:$0xff] %v2766
        %2799 = vst [vmem:[#allocation2 + $0x90] sm:$0xff] %v2767
        %2800 = vst [vmem:[#allocation2 + $0x98] sm:$0xff] %v2768
        %2801 = vst [vmem:[#allocation2 + $0xa0] sm:$0xff] %v2769
        %2802 = vst [vmem:[#allocation2 + $0xa8] sm:$0xff] %v2770
        %2803 = vst [vmem:[#allocation2 + $0xb0] sm:$0xff] %v2771
        %2804 = vst [vmem:[#allocation2 + $0xb8] sm:$0xff] %v2772
        %2805 = vst [vmem:[#allocation2 + $0xc0] sm:$0xff] %v2773
        %2806 = vst [vmem:[#allocation2 + $0xc8] sm:$0xff] %v2774
        %2807 = vst [vmem:[#allocation2 + $0xd0] sm:$0xff] %v2775
        %2808 = vst [vmem:[#allocation2 + $0xd8] sm:$0xff] %v2776
        %2809 = vst [vmem:[#allocation2 + $0xe0] sm:$0xff] %v2777
        %2810 = vst [vmem:[#allocation2 + $0xe8] sm:$0xff] %v2778
        %2811 = vst [vmem:[#allocation2 + $0xf0] sm:$0xff] %v2779
        %2812 = vst [vmem:[#allocation2 + $0xf8] sm:$0xff] %v2780
        %2813 = vst [vmem:[#allocation2 + $0x100] sm:$0xff] %v2781
        %2814 = vst [vmem:[#allocation2 + $0x108] sm:$0xff] %v2782
        %2815 = vst [vmem:[#allocation2 + $0x110] sm:$0xff] %v2783
        %v2816 = vld [vmem:[#allocation2 + $0x7] sm:$0xff]
        %v2817 = vld [vmem:[#allocation2 + $0xf] sm:$0xff]
        %v2818 = vld [vmem:[#allocation2 + $0x17] sm:$0xff]
        %v2819 = vld [vmem:[#allocation2 + $0x1f] sm:$0xff]
        %v2820 = vld [vmem:[#allocation2 + $0x27] sm:$0xff]
        %v2821 = vld [vmem:[#allocation2 + $0x2f] sm:$0xff]
        %v2822 = vld [vmem:[#allocation2 + $0x37] sm:$0xff]
        %v2823 = vld [vmem:[#allocation2 + $0x3f] sm:$0xff]
        %v2824 = vld [vmem:[#allocation2 + $0x47] sm:$0xff]
        %v2825 = vld [vmem:[#allocation2 + $0x4f] sm:$0xff]
        %v2826 = vld [vmem:[#allocation2 + $0x57] sm:$0xff]
        %v2827 = vld [vmem:[#allocation2 + $0x5f] sm:$0xff]
        %v2828 = vld [vmem:[#allocation2 + $0x67] sm:$0xff]
        %v2829 = vld [vmem:[#allocation2 + $0x6f] sm:$0xff]
        %v2830 = vld [vmem:[#allocation2 + $0x77] sm:$0xff]
        %v2831 = vld [vmem:[#allocation2 + $0x7f] sm:$0xff]
        %v2832 = vld [vmem:[#allocation2 + $0x87] sm:$0xff]
        %v2833 = vld [vmem:[#allocation2 + $0x8f] sm:$0xff]
        %v2834 = vld [vmem:[#allocation2 + $0x97] sm:$0xff]
        %v2835 = vld [vmem:[#allocation2 + $0x9f] sm:$0xff]
        %v2836 = vld [vmem:[#allocation2 + $0xa7] sm:$0xff]
        %v2837 = vld [vmem:[#allocation2 + $0xaf] sm:$0xff]
        %v2838 = vld [vmem:[#allocation2 + $0xb7] sm:$0xff]
        %v2839 = vld [vmem:[#allocation2 + $0xbf] sm:$0xff]
        %v2840 = vld [vmem:[#allocation2 + $0xc7] sm:$0xff]
        %v2841 = vld [vmem:[#allocation2 + $0xcf] sm:$0xff]
        %v2842 = vld [vmem:[#allocation2 + $0xd7] sm:$0xff]
        %v2843 = vld [vmem:[#allocation2 + $0xdf] sm:$0xff]
        %v2844 = vld [vmem:[#allocation2 + $0xe7] sm:$0xff]
        %v2845 = vld [vmem:[#allocation2 + $0xef] sm:$0xff]
        %v2846 = vld [vmem:[#allocation2 + $0xf7] sm:$0xff]
        %v2847 = vld [vmem:[#allocation2 + $0xff] sm:$0xff]
        %v2848 = vsel %vm893, %v2816, 0.0
        %v2849 = vsel %vm894, %v2817, 0.0
        %v2850 = vsel %vm895, %v2818, 0.0
        %v2851 = vsel %vm896, %v2819, 0.0
        %v2852 = vsel %vm897, %v2820, 0.0
        %v2853 = vsel %vm898, %v2821, 0.0
        %v2854 = vsel %vm899, %v2822, 0.0
        %v2855 = vsel %vm900, %v2823, 0.0
        %v2856 = vsel %vm901, %v2824, 0.0
        %v2857 = vsel %vm902, %v2825, 0.0
        %v2858 = vsel %vm903, %v2826, 0.0
        %v2859 = vsel %vm904, %v2827, 0.0
        %v2860 = vsel %vm905, %v2828, 0.0
        %v2861 = vsel %vm906, %v2829, 0.0
        %v2862 = vsel %vm907, %v2830, 0.0
        %v2863 = vsel %vm908, %v2831, 0.0
        %v2864 = vsel %vm909, %v2832, 0.0
        %v2865 = vsel %vm910, %v2833, 0.0
        %v2866 = vsel %vm911, %v2834, 0.0
        %v2867 = vsel %vm912, %v2835, 0.0
        %v2868 = vsel %vm913, %v2836, 0.0
        %v2869 = vsel %vm914, %v2837, 0.0
        %v2870 = vsel %vm915, %v2838, 0.0
        %v2871 = vsel %vm916, %v2839, 0.0
        %v2872 = vsel %vm917, %v2840, 0.0
        %v2873 = vsel %vm918, %v2841, 0.0
        %v2874 = vsel %vm919, %v2842, 0.0
        %v2875 = vsel %vm920, %v2843, 0.0
        %v2876 = vsel %vm921, %v2844, 0.0
        %v2877 = vsel %vm922, %v2845, 0.0
        %v2878 = vsel %vm923, %v2846, 0.0
        %v2879 = vsel %vm924, %v2847, 0.0
        %v2880 = vld [vmem:[#allocation2 + $0x8] sm:$0xff]
        %v2881 = vld [vmem:[#allocation2 + $0x10] sm:$0xff]
        %v2882 = vld [vmem:[#allocation2 + $0x18] sm:$0xff]
        %v2883 = vld [vmem:[#allocation2 + $0x20] sm:$0xff]
        %v2884 = vld [vmem:[#allocation2 + $0x28] sm:$0xff]
        %v2885 = vld [vmem:[#allocation2 + $0x30] sm:$0xff]
        %v2886 = vld [vmem:[#allocation2 + $0x38] sm:$0xff]
        %v2887 = vld [vmem:[#allocation2 + $0x40] sm:$0xff]
        %v2888 = vld [vmem:[#allocation2 + $0x48] sm:$0xff]
        %v2889 = vld [vmem:[#allocation2 + $0x50] sm:$0xff]
        %v2890 = vld [vmem:[#allocation2 + $0x58] sm:$0xff]
        %v2891 = vld [vmem:[#allocation2 + $0x60] sm:$0xff]
        %v2892 = vld [vmem:[#allocation2 + $0x68] sm:$0xff]
        %v2893 = vld [vmem:[#allocation2 + $0x70] sm:$0xff]
        %v2894 = vld [vmem:[#allocation2 + $0x78] sm:$0xff]
        %v2895 = vld [vmem:[#allocation2 + $0x80] sm:$0xff]
        %v2896 = vld [vmem:[#allocation2 + $0x88] sm:$0xff]
        %v2897 = vld [vmem:[#allocation2 + $0x90] sm:$0xff]
        %v2898 = vld [vmem:[#allocation2 + $0x98] sm:$0xff]
        %v2899 = vld [vmem:[#allocation2 + $0xa0] sm:$0xff]
        %v2900 = vld [vmem:[#allocation2 + $0xa8] sm:$0xff]
        %v2901 = vld [vmem:[#allocation2 + $0xb0] sm:$0xff]
        %v2902 = vld [vmem:[#allocation2 + $0xb8] sm:$0xff]
        %v2903 = vld [vmem:[#allocation2 + $0xc0] sm:$0xff]
        %v2904 = vld [vmem:[#allocation2 + $0xc8] sm:$0xff]
        %v2905 = vld [vmem:[#allocation2 + $0xd0] sm:$0xff]
        %v2906 = vld [vmem:[#allocation2 + $0xd8] sm:$0xff]
        %v2907 = vld [vmem:[#allocation2 + $0xe0] sm:$0xff]
        %v2908 = vld [vmem:[#allocation2 + $0xe8] sm:$0xff]
        %v2909 = vld [vmem:[#allocation2 + $0xf0] sm:$0xff]
        %v2910 = vld [vmem:[#allocation2 + $0xf8] sm:$0xff]
        %v2911 = vld [vmem:[#allocation2 + $0x100] sm:$0xff]
        %v2912 = vld [vmem:[#allocation2 + $0x9] sm:$0xff]
        %v2913 = vld [vmem:[#allocation2 + $0x11] sm:$0xff]
        %v2914 = vld [vmem:[#allocation2 + $0x19] sm:$0xff]
        %v2915 = vld [vmem:[#allocation2 + $0x21] sm:$0xff]
        %v2916 = vld [vmem:[#allocation2 + $0x29] sm:$0xff]
        %v2917 = vld [vmem:[#allocation2 + $0x31] sm:$0xff]
        %v2918 = vld [vmem:[#allocation2 + $0x39] sm:$0xff]
        %v2919 = vld [vmem:[#allocation2 + $0x41] sm:$0xff]
        %v2920 = vld [vmem:[#allocation2 + $0x49] sm:$0xff]
        %v2921 = vld [vmem:[#allocation2 + $0x51] sm:$0xff]
        %v2922 = vld [vmem:[#allocation2 + $0x59] sm:$0xff]
        %v2923 = vld [vmem:[#allocation2 + $0x61] sm:$0xff]
        %v2924 = vld [vmem:[#allocation2 + $0x69] sm:$0xff]
        %v2925 = vld [vmem:[#allocation2 + $0x71] sm:$0xff]
        %v2926 = vld [vmem:[#allocation2 + $0x79] sm:$0xff]
        %v2927 = vld [vmem:[#allocation2 + $0x81] sm:$0xff]
        %v2928 = vld [vmem:[#allocation2 + $0x89] sm:$0xff]
        %v2929 = vld [vmem:[#allocation2 + $0x91] sm:$0xff]
        %v2930 = vld [vmem:[#allocation2 + $0x99] sm:$0xff]
        %v2931 = vld [vmem:[#allocation2 + $0xa1] sm:$0xff]
        %v2932 = vld [vmem:[#allocation2 + $0xa9] sm:$0xff]
        %v2933 = vld [vmem:[#allocation2 + $0xb1] sm:$0xff]
        %v2934 = vld [vmem:[#allocation2 + $0xb9] sm:$0xff]
        %v2935 = vld [vmem:[#allocation2 + $0xc1] sm:$0xff]
        %v2936 = vld [vmem:[#allocation2 + $0xc9] sm:$0xff]
        %v2937 = vld [vmem:[#allocation2 + $0xd1] sm:$0xff]
        %v2938 = vld [vmem:[#allocation2 + $0xd9] sm:$0xff]
        %v2939 = vld [vmem:[#allocation2 + $0xe1] sm:$0xff]
        %v2940 = vld [vmem:[#allocation2 + $0xe9] sm:$0xff]
        %v2941 = vld [vmem:[#allocation2 + $0xf1] sm:$0xff]
        %v2942 = vld [vmem:[#allocation2 + $0xf9] sm:$0xff]
        %v2943 = vld [vmem:[#allocation2 + $0x101] sm:$0xff]
        %v2944 = vsel %vm1053, %v2912, 0.0
        %v2945 = vsel %vm1054, %v2913, 0.0
        %v2946 = vsel %vm1055, %v2914, 0.0
        %v2947 = vsel %vm1056, %v2915, 0.0
        %v2948 = vsel %vm1057, %v2916, 0.0
        %v2949 = vsel %vm1058, %v2917, 0.0
        %v2950 = vsel %vm1059, %v2918, 0.0
        %v2951 = vsel %vm1060, %v2919, 0.0
        %v2952 = vsel %vm1061, %v2920, 0.0
        %v2953 = vsel %vm1062, %v2921, 0.0
        %v2954 = vsel %vm1063, %v2922, 0.0
        %v2955 = vsel %vm1064, %v2923, 0.0
        %v2956 = vsel %vm1065, %v2924, 0.0
        %v2957 = vsel %vm1066, %v2925, 0.0
        %v2958 = vsel %vm1067, %v2926, 0.0
        %v2959 = vsel %vm1068, %v2927, 0.0
        %v2960 = vsel %vm1069, %v2928, 0.0
        %v2961 = vsel %vm1070, %v2929, 0.0
        %v2962 = vsel %vm1071, %v2930, 0.0
        %v2963 = vsel %vm1072, %v2931, 0.0
        %v2964 = vsel %vm1073, %v2932, 0.0
        %v2965 = vsel %vm1074, %v2933, 0.0
        %v2966 = vsel %vm1075, %v2934, 0.0
        %v2967 = vsel %vm1076, %v2935, 0.0
        %v2968 = vsel %vm1077, %v2936, 0.0
        %v2969 = vsel %vm1078, %v2937, 0.0
        %v2970 = vsel %vm1079, %v2938, 0.0
        %v2971 = vsel %vm1080, %v2939, 0.0
        %v2972 = vsel %vm1081, %v2940, 0.0
        %v2973 = vsel %vm1082, %v2941, 0.0
        %v2974 = vsel %vm1083, %v2942, 0.0
        %v2975 = vsel %vm1084, %v2943, 0.0
        %v2976 = vld [vmem:[#allocation2 + $0x107] sm:$0xff]
        %v2977 = vld [vmem:[#allocation2 + $0x10f] sm:$0xff]
        %v2978 = vsel %vm893, %v2818, 0.0
        %v2979 = vsel %vm894, %v2819, 0.0
        %v2980 = vsel %vm895, %v2820, 0.0
        %v2981 = vsel %vm896, %v2821, 0.0
        %v2982 = vsel %vm897, %v2822, 0.0
        %v2983 = vsel %vm898, %v2823, 0.0
        %v2984 = vsel %vm899, %v2824, 0.0
        %v2985 = vsel %vm900, %v2825, 0.0
        %v2986 = vsel %vm901, %v2826, 0.0
        %v2987 = vsel %vm902, %v2827, 0.0
        %v2988 = vsel %vm903, %v2828, 0.0
        %v2989 = vsel %vm904, %v2829, 0.0
        %v2990 = vsel %vm905, %v2830, 0.0
        %v2991 = vsel %vm906, %v2831, 0.0
        %v2992 = vsel %vm907, %v2832, 0.0
        %v2993 = vsel %vm908, %v2833, 0.0
        %v2994 = vsel %vm909, %v2834, 0.0
        %v2995 = vsel %vm910, %v2835, 0.0
        %v2996 = vsel %vm911, %v2836, 0.0
        %v2997 = vsel %vm912, %v2837, 0.0
        %v2998 = vsel %vm913, %v2838, 0.0
        %v2999 = vsel %vm914, %v2839, 0.0
        %v3000 = vsel %vm915, %v2840, 0.0
        %v3001 = vsel %vm916, %v2841, 0.0
        %v3002 = vsel %vm917, %v2842, 0.0
        %v3003 = vsel %vm918, %v2843, 0.0
        %v3004 = vsel %vm919, %v2844, 0.0
        %v3005 = vsel %vm920, %v2845, 0.0
        %v3006 = vsel %vm921, %v2846, 0.0
        %v3007 = vsel %vm922, %v2847, 0.0
        %v3008 = vsel %vm923, %v2976, 0.0
        %v3009 = vsel %vm924, %v2977, 0.0
        %v3010 = vld [vmem:[#allocation2 + $0x108] sm:$0xff]
        %v3011 = vld [vmem:[#allocation2 + $0x110] sm:$0xff]
        %v3012 = vld [vmem:[#allocation2 + $0x109] sm:$0xff]
        %v3013 = vld [vmem:[#allocation2 + $0x111] sm:$0xff]
        %v3014 = vsel %vm1053, %v2914, 0.0
        %v3015 = vsel %vm1054, %v2915, 0.0
        %v3016 = vsel %vm1055, %v2916, 0.0
        %v3017 = vsel %vm1056, %v2917, 0.0
        %v3018 = vsel %vm1057, %v2918, 0.0
        %v3019 = vsel %vm1058, %v2919, 0.0
        %v3020 = vsel %vm1059, %v2920, 0.0
        %v3021 = vsel %vm1060, %v2921, 0.0
        %v3022 = vsel %vm1061, %v2922, 0.0
        %v3023 = vsel %vm1062, %v2923, 0.0
        %v3024 = vsel %vm1063, %v2924, 0.0
        %v3025 = vsel %vm1064, %v2925, 0.0
        %v3026 = vsel %vm1065, %v2926, 0.0
        %v3027 = vsel %vm1066, %v2927, 0.0
        %v3028 = vsel %vm1067, %v2928, 0.0
        %v3029 = vsel %vm1068, %v2929, 0.0
        %v3030 = vsel %vm1069, %v2930, 0.0
        %v3031 = vsel %vm1070, %v2931, 0.0
        %v3032 = vsel %vm1071, %v2932, 0.0
        %v3033 = vsel %vm1072, %v2933, 0.0
        %v3034 = vsel %vm1073, %v2934, 0.0
        %v3035 = vsel %vm1074, %v2935, 0.0
        %v3036 = vsel %vm1075, %v2936, 0.0
        %v3037 = vsel %vm1076, %v2937, 0.0
        %v3038 = vsel %vm1077, %v2938, 0.0
        %v3039 = vsel %vm1078, %v2939, 0.0
        %v3040 = vsel %vm1079, %v2940, 0.0
        %v3041 = vsel %vm1080, %v2941, 0.0
        %v3042 = vsel %vm1081, %v2942, 0.0
        %v3043 = vsel %vm1082, %v2943, 0.0
        %v3044 = vsel %vm1083, %v3012, 0.0
        %v3045 = vsel %vm1084, %v3013, 0.0
        %v3046 = vld [vmem:[#allocation2 + $0x117] sm:$0xff]
        %v3047 = vld [vmem:[#allocation2 + $0x11f] sm:$0xff]
        %v3048 = vsel %vm893, %v2820, 0.0
        %v3049 = vsel %vm894, %v2821, 0.0
        %v3050 = vsel %vm895, %v2822, 0.0
        %v3051 = vsel %vm896, %v2823, 0.0
        %v3052 = vsel %vm897, %v2824, 0.0
        %v3053 = vsel %vm898, %v2825, 0.0
        %v3054 = vsel %vm899, %v2826, 0.0
        %v3055 = vsel %vm900, %v2827, 0.0
        %v3056 = vsel %vm901, %v2828, 0.0
        %v3057 = vsel %vm902, %v2829, 0.0
        %v3058 = vsel %vm903, %v2830, 0.0
        %v3059 = vsel %vm904, %v2831, 0.0
        %v3060 = vsel %vm905, %v2832, 0.0
        %v3061 = vsel %vm906, %v2833, 0.0
        %v3062 = vsel %vm907, %v2834, 0.0
        %v3063 = vsel %vm908, %v2835, 0.0
        %v3064 = vsel %vm909, %v2836, 0.0
        %v3065 = vsel %vm910, %v2837, 0.0
        %v3066 = vsel %vm911, %v2838, 0.0
        %v3067 = vsel %vm912, %v2839, 0.0
        %v3068 = vsel %vm913, %v2840, 0.0
        %v3069 = vsel %vm914, %v2841, 0.0
        %v3070 = vsel %vm915, %v2842, 0.0
        %v3071 = vsel %vm916, %v2843, 0.0
        %v3072 = vsel %vm917, %v2844, 0.0
        %v3073 = vsel %vm918, %v2845, 0.0
        %v3074 = vsel %vm919, %v2846, 0.0
        %v3075 = vsel %vm920, %v2847, 0.0
        %v3076 = vsel %vm921, %v2976, 0.0
        %v3077 = vsel %vm922, %v2977, 0.0
        %v3078 = vsel %vm923, %v3046, 0.0
        %v3079 = vsel %vm924, %v3047, 0.0
        %v3080 = vld [vmem:[#allocation2 + $0x118] sm:$0xff]
        %v3081 = vld [vmem:[#allocation2 + $0x120] sm:$0xff]
        %v3082 = vld [vmem:[#allocation2 + $0x119] sm:$0xff]
        %v3083 = vld [vmem:[#allocation2 + $0x121] sm:$0xff]
        %v3084 = vsel %vm1053, %v2916, 0.0
        %v3085 = vsel %vm1054, %v2917, 0.0
        %v3086 = vsel %vm1055, %v2918, 0.0
        %v3087 = vsel %vm1056, %v2919, 0.0
        %v3088 = vsel %vm1057, %v2920, 0.0
        %v3089 = vsel %vm1058, %v2921, 0.0
        %v3090 = vsel %vm1059, %v2922, 0.0
        %v3091 = vsel %vm1060, %v2923, 0.0
        %v3092 = vsel %vm1061, %v2924, 0.0
        %v3093 = vsel %vm1062, %v2925, 0.0
        %v3094 = vsel %vm1063, %v2926, 0.0
        %v3095 = vsel %vm1064, %v2927, 0.0
        %v3096 = vsel %vm1065, %v2928, 0.0
        %v3097 = vsel %vm1066, %v2929, 0.0
        %v3098 = vsel %vm1067, %v2930, 0.0
        %v3099 = vsel %vm1068, %v2931, 0.0
        %v3100 = vsel %vm1069, %v2932, 0.0
        %v3101 = vsel %vm1070, %v2933, 0.0
        %v3102 = vsel %vm1071, %v2934, 0.0
        %v3103 = vsel %vm1072, %v2935, 0.0
        %v3104 = vsel %vm1073, %v2936, 0.0
        %v3105 = vsel %vm1074, %v2937, 0.0
        %v3106 = vsel %vm1075, %v2938, 0.0
        %v3107 = vsel %vm1076, %v2939, 0.0
        %v3108 = vsel %vm1077, %v2940, 0.0
        %v3109 = vsel %vm1078, %v2941, 0.0
        %v3110 = vsel %vm1079, %v2942, 0.0
        %v3111 = vsel %vm1080, %v2943, 0.0
        %v3112 = vsel %vm1081, %v3012, 0.0
        %v3113 = vsel %vm1082, %v3013, 0.0
        %v3114 = vsel %vm1083, %v3082, 0.0
        %v3115 = vsel %vm1084, %v3083, 0.0
        %v3116 = vpack.c.bf16 %v2849, %v2848
        %v3117 = vpack.c.bf16 %v2881, %v2880
        %v3118 = vpack.c.bf16 %v2945, %v2944
        %v3119 = vpack.c.bf16 %v2979, %v2978
        %v3120 = vpack.c.bf16 %v2883, %v2882
        %v3121 = vpack.c.bf16 %v3015, %v3014
        %v3122 = vpack.c.bf16 %v3049, %v3048
        %v3123 = vpack.c.bf16 %v2885, %v2884
        %v3124 = vpack.c.bf16 %v3085, %v3084
        %v3125 = vpack.c.bf16 %v2851, %v2850
        %v3126 = vpack.c.bf16 %v2947, %v2946
        %v3127 = vpack.c.bf16 %v2981, %v2980
        %v3128 = vpack.c.bf16 %v3017, %v3016
        %v3129 = vpack.c.bf16 %v3051, %v3050
        %v3130 = vpack.c.bf16 %v2887, %v2886
        %v3131 = vpack.c.bf16 %v3087, %v3086
        %v3132 = vpack.c.bf16 %v2853, %v2852
        %v3133 = vpack.c.bf16 %v2949, %v2948
        %v3134 = vpack.c.bf16 %v2983, %v2982
        %v3135 = vpack.c.bf16 %v3019, %v3018
        %v3136 = vpack.c.bf16 %v3053, %v3052
        %v3137 = vpack.c.bf16 %v2889, %v2888
        %v3138 = vpack.c.bf16 %v3089, %v3088
        %v3139 = vpack.c.bf16 %v2855, %v2854
        %v3140 = vpack.c.bf16 %v2951, %v2950
        %v3141 = vpack.c.bf16 %v2985, %v2984
        %v3142 = vpack.c.bf16 %v3021, %v3020
        %v3143 = vpack.c.bf16 %v3055, %v3054
        %v3144 = vpack.c.bf16 %v2891, %v2890
        %v3145 = vpack.c.bf16 %v3091, %v3090
        %v3146 = vpack.c.bf16 %v2857, %v2856
        %v3147 = vpack.c.bf16 %v2953, %v2952
        %v3148 = vpack.c.bf16 %v2987, %v2986
        %v3149 = vpack.c.bf16 %v3023, %v3022
        %v3150 = vpack.c.bf16 %v3057, %v3056
        %v3151 = vpack.c.bf16 %v2893, %v2892
        %v3152 = vpack.c.bf16 %v3093, %v3092
        %v3153 = vpack.c.bf16 %v2859, %v2858
        %v3154 = vpack.c.bf16 %v2955, %v2954
        %v3155 = vpack.c.bf16 %v2989, %v2988
        %v3156 = vpack.c.bf16 %v3025, %v3024
        %v3157 = vpack.c.bf16 %v3059, %v3058
        %v3158 = vpack.c.bf16 %v2895, %v2894
        %v3159 = vpack.c.bf16 %v3095, %v3094
        %v3160 = vpack.c.bf16 %v2861, %v2860
        %v3161 = vpack.c.bf16 %v2957, %v2956
        %v3162 = vpack.c.bf16 %v2991, %v2990
        %v3163 = vpack.c.bf16 %v3027, %v3026
        %v3164 = vpack.c.bf16 %v3061, %v3060
        %v3165 = vpack.c.bf16 %v2897, %v2896
        %v3166 = vpack.c.bf16 %v3097, %v3096
        %v3167 = vpack.c.bf16 %v2863, %v2862
        %v3168 = vpack.c.bf16 %v2959, %v2958
        %v3169 = vpack.c.bf16 %v2993, %v2992
        %v3170 = vpack.c.bf16 %v3029, %v3028
        %v3171 = vpack.c.bf16 %v3063, %v3062
        %v3172 = vpack.c.bf16 %v2899, %v2898
        %v3173 = vpack.c.bf16 %v3099, %v3098
        %v3174 = vpack.c.bf16 %v2865, %v2864
        %v3175 = vpack.c.bf16 %v2961, %v2960
        %v3176 = vpack.c.bf16 %v2995, %v2994
        %v3177 = vpack.c.bf16 %v3031, %v3030
        %v3178 = vpack.c.bf16 %v3065, %v3064
        %v3179 = vpack.c.bf16 %v2901, %v2900
        %v3180 = vpack.c.bf16 %v3101, %v3100
        %v3181 = vpack.c.bf16 %v2867, %v2866
        %v3182 = vpack.c.bf16 %v2963, %v2962
        %v3183 = vpack.c.bf16 %v2997, %v2996
        %v3184 = vpack.c.bf16 %v3033, %v3032
        %v3185 = vpack.c.bf16 %v3067, %v3066
        %v3186 = vpack.c.bf16 %v2903, %v2902
        %v3187 = vpack.c.bf16 %v3103, %v3102
        %v3188 = vpack.c.bf16 %v2869, %v2868
        %v3189 = vpack.c.bf16 %v2965, %v2964
        %v3190 = vpack.c.bf16 %v2999, %v2998
        %v3191 = vpack.c.bf16 %v3035, %v3034
        %v3192 = vpack.c.bf16 %v3069, %v3068
        %v3193 = vpack.c.bf16 %v2905, %v2904
        %v3194 = vpack.c.bf16 %v3105, %v3104
        %v3195 = vpack.c.bf16 %v2871, %v2870
        %v3196 = vpack.c.bf16 %v2967, %v2966
        %v3197 = vpack.c.bf16 %v3001, %v3000
        %v3198 = vpack.c.bf16 %v3037, %v3036
        %v3199 = vpack.c.bf16 %v3071, %v3070
        %v3200 = vpack.c.bf16 %v2907, %v2906
        %v3201 = vpack.c.bf16 %v3107, %v3106
        %v3202 = vpack.c.bf16 %v2873, %v2872
        %v3203 = vpack.c.bf16 %v2969, %v2968
        %v3204 = vpack.c.bf16 %v3003, %v3002
        %v3205 = vpack.c.bf16 %v3039, %v3038
        %v3206 = vpack.c.bf16 %v3073, %v3072
        %v3207 = vpack.c.bf16 %v2909, %v2908
        %v3208 = vpack.c.bf16 %v3109, %v3108
        %v3209 = vpack.c.bf16 %v2875, %v2874
        %v3210 = vpack.c.bf16 %v2971, %v2970
        %v3211 = vpack.c.bf16 %v3005, %v3004
        %v3212 = vpack.c.bf16 %v3041, %v3040
        %v3213 = vpack.c.bf16 %v3075, %v3074
        %v3214 = vpack.c.bf16 %v2911, %v2910
        %v3215 = vpack.c.bf16 %v3111, %v3110
        %v3216 = vpack.c.bf16 %v2877, %v2876
        %v3217 = vpack.c.bf16 %v2973, %v2972
        %v3218 = vpack.c.bf16 %v3007, %v3006
        %v3219 = vpack.c.bf16 %v3043, %v3042
        %v3220 = vpack.c.bf16 %v3077, %v3076
        %v3221 = vpack.c.bf16 %v3011, %v3010
        %v3222 = vpack.c.bf16 %v3113, %v3112
        %v3223 = vpack.c.bf16 %v2879, %v2878
        %v3224 = vpack.c.bf16 %v2975, %v2974
        %v3225 = vpack.c.bf16 %v3009, %v3008
        %v3226 = vpack.c.bf16 %v3045, %v3044
        %v3227 = vpack.c.bf16 %v3079, %v3078
        %v3228 = vpack.c.bf16 %v3081, %v3080
        %v3229 = vpack.c.bf16 %v3115, %v3114
        %v3230 = vld [vmem:[#allocation8] sm:$0xf]
        %v3231 = vld [vmem:[#allocation8 + $0x4] sm:$0xf]
        %v3232 = vld [vmem:[#allocation8 + $0x8] sm:$0xf]
        %v3233 = vld [vmem:[#allocation8 + $0xc] sm:$0xf]
        %v3234 = vld [vmem:[#allocation8 + $0x10] sm:$0xf]
        %v3235 = vld [vmem:[#allocation8 + $0x14] sm:$0xf]
        %v3236 = vld [vmem:[#allocation8 + $0x18] sm:$0xf]
        %v3237 = vld [vmem:[#allocation8 + $0x1c] sm:$0xf]
        %v3238 = vld [vmem:[#allocation8 + $0x20] sm:$0xf]
        %v3239 = vld [vmem:[#allocation8 + $0x24] sm:$0xf]
        %v3240 = vld [vmem:[#allocation8 + $0x28] sm:$0xf]
        %v3241 = vld [vmem:[#allocation8 + $0x2c] sm:$0xf]
        %v3242 = vld [vmem:[#allocation8 + $0x30] sm:$0xf]
        %v3243 = vld [vmem:[#allocation8 + $0x34] sm:$0xf]
        %v3244 = vld [vmem:[#allocation8 + $0x38] sm:$0xf]
        %v3245 = vld [vmem:[#allocation8 + $0x3c] sm:$0xf]
        %v3246 = vld [vmem:[#allocation8 + $0x40] sm:$0xf]
        %v3247 = vld [vmem:[#allocation8 + $0x44] sm:$0xf]
        %v3248 = vld [vmem:[#allocation8 + $0x48] sm:$0xf]
        %v3249 = vld [vmem:[#allocation8 + $0x4c] sm:$0xf]
        %v3250 = vld [vmem:[#allocation8 + $0x50] sm:$0xf]
        %v3251 = vld [vmem:[#allocation8 + $0x54] sm:$0xf]
        %v3252 = vld [vmem:[#allocation8 + $0x58] sm:$0xf]
        %v3253 = vld [vmem:[#allocation8 + $0x5c] sm:$0xf]
        %v3254 = vld [vmem:[#allocation8 + $0x60] sm:$0xf]
        %v3255 = vld [vmem:[#allocation8 + $0x64] sm:$0xf]
        %v3256 = vld [vmem:[#allocation8 + $0x68] sm:$0xf]
        %v3257 = vld [vmem:[#allocation8 + $0x6c] sm:$0xf]
        %v3258 = vld [vmem:[#allocation8 + $0x70] sm:$0xf]
        %v3259 = vld [vmem:[#allocation8 + $0x74] sm:$0xf]
        %v3260 = vld [vmem:[#allocation8 + $0x78] sm:$0xf]
        %v3261 = vld [vmem:[#allocation8 + $0x7c] sm:$0xf]
        %v3262 = vld [vmem:[#allocation8 + $0x80] sm:$0xf]
        %v3263 = vld [vmem:[#allocation8 + $0x84] sm:$0xf]
        %v3264 = vld [vmem:[#allocation8 + $0x88] sm:$0xf]
        %v3265 = vld [vmem:[#allocation8 + $0x8c] sm:$0xf]
        %v3266 = vld [vmem:[#allocation8 + $0x90] sm:$0xf]
        %v3267 = vld [vmem:[#allocation8 + $0x94] sm:$0xf]
        %v3268 = vld [vmem:[#allocation8 + $0x98] sm:$0xf]
        %v3269 = vld [vmem:[#allocation8 + $0x9c] sm:$0xf]
        %v3270 = vld [vmem:[#allocation8 + $0xa0] sm:$0xf]
        %v3271 = vld [vmem:[#allocation8 + $0xa4] sm:$0xf]
        %v3272 = vld [vmem:[#allocation8 + $0xa8] sm:$0xf]
        %v3273 = vld [vmem:[#allocation8 + $0xac] sm:$0xf]
        %v3274 = vld [vmem:[#allocation8 + $0xb0] sm:$0xf]
        %v3275 = vld [vmem:[#allocation8 + $0xb4] sm:$0xf]
        %v3276 = vld [vmem:[#allocation8 + $0xb8] sm:$0xf]
        %v3277 = vld [vmem:[#allocation8 + $0xbc] sm:$0xf]
        %v3278 = vld [vmem:[#allocation8 + $0xc0] sm:$0xf]
        %v3279 = vld [vmem:[#allocation8 + $0xc4] sm:$0xf]
        %v3280 = vld [vmem:[#allocation8 + $0xc8] sm:$0xf]
        %v3281 = vld [vmem:[#allocation8 + $0xcc] sm:$0xf]
        %v3282 = vld [vmem:[#allocation8 + $0xd0] sm:$0xf]
        %v3283 = vld [vmem:[#allocation8 + $0xd4] sm:$0xf]
        %v3284 = vld [vmem:[#allocation8 + $0xd8] sm:$0xf]
        %v3285 = vld [vmem:[#allocation8 + $0xdc] sm:$0xf]
        %v3286 = vld [vmem:[#allocation8 + $0xe0] sm:$0xf]
        %v3287 = vld [vmem:[#allocation8 + $0xe4] sm:$0xf]
        %v3288 = vld [vmem:[#allocation8 + $0xe8] sm:$0xf]
        %v3289 = vld [vmem:[#allocation8 + $0xec] sm:$0xf]
        %v3290 = vld [vmem:[#allocation8 + $0xf0] sm:$0xf]
        %v3291 = vld [vmem:[#allocation8 + $0xf4] sm:$0xf]
        %v3292 = vld [vmem:[#allocation8 + $0xf8] sm:$0xf]
        %v3293 = vld [vmem:[#allocation8 + $0xfc] sm:$0xf]
        %v3294 = vld [vmem:[#allocation8 + $0x100] sm:$0xf]
        %v3295 = vld [vmem:[#allocation8 + $0x104] sm:$0xf]
        %v3296 = vld [vmem:[#allocation8 + $0x108] sm:$0xf]
        %v3297 = vld [vmem:[#allocation8 + $0x10c] sm:$0xf]
        %v3298 = vld [vmem:[#allocation8 + $0x110] sm:$0xf]
        %v3299 = vld [vmem:[#allocation8 + $0x114] sm:$0xf]
        %v3300 = vld [vmem:[#allocation8 + $0x118] sm:$0xf]
        %v3301 = vld [vmem:[#allocation8 + $0x11c] sm:$0xf]
        %v3302 = vld [vmem:[#allocation8 + $0x120] sm:$0xf]
        %v3303 = vld [vmem:[#allocation8 + $0x124] sm:$0xf]
        %v3304 = vld [vmem:[#allocation8 + $0x128] sm:$0xf]
        %v3305 = vld [vmem:[#allocation8 + $0x12c] sm:$0xf]
        %v3306 = vld [vmem:[#allocation8 + $0x130] sm:$0xf]
        %v3307 = vld [vmem:[#allocation8 + $0x134] sm:$0xf]
        %v3308 = vld [vmem:[#allocation8 + $0x138] sm:$0xf]
        %v3309 = vld [vmem:[#allocation8 + $0x13c] sm:$0xf]
        %v3310 = vld [vmem:[#allocation8 + $0x140] sm:$0xf]
        %v3311 = vld [vmem:[#allocation8 + $0x144] sm:$0xf]
        %v3312 = vld [vmem:[#allocation8 + $0x148] sm:$0xf]
        %v3313 = vld [vmem:[#allocation8 + $0x14c] sm:$0xf]
        %v3314 = vld [vmem:[#allocation8 + $0x150] sm:$0xf]
        %v3315 = vld [vmem:[#allocation8 + $0x154] sm:$0xf]
        %v3316 = vld [vmem:[#allocation8 + $0x158] sm:$0xf]
        %v3317 = vld [vmem:[#allocation8 + $0x15c] sm:$0xf]
        %v3318 = vld [vmem:[#allocation8 + $0x160] sm:$0xf]
        %v3319 = vld [vmem:[#allocation8 + $0x164] sm:$0xf]
        %v3320 = vld [vmem:[#allocation8 + $0x168] sm:$0xf]
        %v3321 = vld [vmem:[#allocation8 + $0x16c] sm:$0xf]
        %v3322 = vld [vmem:[#allocation8 + $0x170] sm:$0xf]
        %v3323 = vld [vmem:[#allocation8 + $0x174] sm:$0xf]
        %v3324 = vld [vmem:[#allocation8 + $0x178] sm:$0xf]
        %v3325 = vld [vmem:[#allocation8 + $0x17c] sm:$0xf]
        %v3326 = vld [vmem:[#allocation8 + $0x180] sm:$0xf]
        %v3327 = vld [vmem:[#allocation8 + $0x184] sm:$0xf]
        %v3328 = vld [vmem:[#allocation8 + $0x188] sm:$0xf]
        %v3329 = vld [vmem:[#allocation8 + $0x18c] sm:$0xf]
        %v3330 = vld [vmem:[#allocation8 + $0x190] sm:$0xf]
        %v3331 = vld [vmem:[#allocation8 + $0x194] sm:$0xf]
        %v3332 = vld [vmem:[#allocation8 + $0x198] sm:$0xf]
        %v3333 = vld [vmem:[#allocation8 + $0x19c] sm:$0xf]
        %v3334 = vld [vmem:[#allocation8 + $0x1a0] sm:$0xf]
        %v3335 = vld [vmem:[#allocation8 + $0x1a4] sm:$0xf]
        %v3336 = vld [vmem:[#allocation8 + $0x1a8] sm:$0xf]
        %v3337 = vld [vmem:[#allocation8 + $0x1ac] sm:$0xf]
        %v3338 = vld [vmem:[#allocation8 + $0x1b0] sm:$0xf]
        %v3339 = vld [vmem:[#allocation8 + $0x1b4] sm:$0xf]
        %v3340 = vld [vmem:[#allocation8 + $0x1b8] sm:$0xf]
        %v3341 = vld [vmem:[#allocation8 + $0x1bc] sm:$0xf]
        %v3342 = vld [vmem:[#allocation8 + $0x1c0] sm:$0xf]
        %v3343 = vld [vmem:[#allocation8 + $0x1c4] sm:$0xf]
        %v3344 = vld [vmem:[#allocation8 + $0x1c8] sm:$0xf]
        %v3345 = vld [vmem:[#allocation8 + $0x1cc] sm:$0xf]
        %v3346 = vld [vmem:[#allocation8 + $0x1d0] sm:$0xf]
        %v3347 = vld [vmem:[#allocation8 + $0x1d4] sm:$0xf]
        %v3348 = vld [vmem:[#allocation8 + $0x1d8] sm:$0xf]
        %v3349 = vld [vmem:[#allocation8 + $0x1dc] sm:$0xf]
        %v3350 = vld [vmem:[#allocation8 + $0x1e0] sm:$0xf]
        %v3351 = vld [vmem:[#allocation8 + $0x1e4] sm:$0xf]
        %v3352 = vld [vmem:[#allocation8 + $0x1e8] sm:$0xf]
        %v3353 = vld [vmem:[#allocation8 + $0x1ec] sm:$0xf]
        %v3354 = vld [vmem:[#allocation8 + $0x1f0] sm:$0xf]
        %v3355 = vld [vmem:[#allocation8 + $0x1f4] sm:$0xf]
        %v3356 = vld [vmem:[#allocation8 + $0x1f8] sm:$0xf]
        %v3357 = vld [vmem:[#allocation8 + $0x1fc] sm:$0xf]
        %v3358 = vld [vmem:[#allocation8 + $0x200] sm:$0xf]
        %v3359 = vld [vmem:[#allocation8 + $0x204] sm:$0xf]
        %v3360 = vld [vmem:[#allocation8 + $0x208] sm:$0xf]
        %v3361 = vld [vmem:[#allocation8 + $0x20c] sm:$0xf]
        %v3362 = vld [vmem:[#allocation8 + $0x210] sm:$0xf]
        %v3363 = vld [vmem:[#allocation8 + $0x214] sm:$0xf]
        %v3364 = vld [vmem:[#allocation8 + $0x218] sm:$0xf]
        %v3365 = vld [vmem:[#allocation8 + $0x21c] sm:$0xf]
        %v3366 = vld [vmem:[#allocation8 + $0x220] sm:$0xf]
        %v3367 = vld [vmem:[#allocation8 + $0x224] sm:$0xf]
        %v3368 = vld [vmem:[#allocation8 + $0x228] sm:$0xf]
        %v3369 = vld [vmem:[#allocation8 + $0x22c] sm:$0xf]
        %v3370 = vld [vmem:[#allocation8 + $0x230] sm:$0xf]
        %v3371 = vld [vmem:[#allocation8 + $0x234] sm:$0xf]
        %v3372 = vld [vmem:[#allocation8 + $0x238] sm:$0xf]
        %v3373 = vld [vmem:[#allocation8 + $0x23c] sm:$0xf]
        %v3374 = vld [vmem:[%s4] sm:$0x1]
        %v3376 = vperm.slane %v3374, 0
        %v3522 = vunpack.c.l.b16 %v3230
        %v3523 = vunpack.c.l.b16 %v3231
        %v3524 = vunpack.c.l.b16 %v3232
        %v3525 = vunpack.c.l.b16 %v3233
        %v3526 = vunpack.c.l.b16 %v3234
        %v3527 = vunpack.c.l.b16 %v3235
        %v3528 = vunpack.c.l.b16 %v3236
        %v3529 = vunpack.c.l.b16 %v3237
        %v3530 = vunpack.c.l.b16 %v3238
        %v3531 = vunpack.c.l.b16 %v3239
        %v3532 = vunpack.c.l.b16 %v3240
        %v3533 = vunpack.c.l.b16 %v3241
        %v3534 = vunpack.c.l.b16 %v3242
        %v3535 = vunpack.c.l.b16 %v3243
        %v3536 = vunpack.c.l.b16 %v3244
        %v3537 = vunpack.c.l.b16 %v3245
        %v3538 = vunpack.c.l.b16 %v3246
        %v3539 = vunpack.c.l.b16 %v3247
        %v3540 = vunpack.c.l.b16 %v3248
        %v3541 = vunpack.c.l.b16 %v3249
        %v3542 = vunpack.c.l.b16 %v3250
        %v3543 = vunpack.c.l.b16 %v3251
        %v3544 = vunpack.c.l.b16 %v3252
        %v3545 = vunpack.c.l.b16 %v3253
        %v3546 = vunpack.c.l.b16 %v3254
        %v3547 = vunpack.c.l.b16 %v3255
        %v3548 = vunpack.c.l.b16 %v3256
        %v3549 = vunpack.c.l.b16 %v3257
        %v3550 = vunpack.c.l.b16 %v3258
        %v3551 = vunpack.c.l.b16 %v3259
        %v3552 = vunpack.c.l.b16 %v3260
        %v3553 = vunpack.c.l.b16 %v3261
        %v3554 = vunpack.c.l.b16 %v3262
        %v3555 = vunpack.c.l.b16 %v3263
        %v3556 = vunpack.c.l.b16 %v3264
        %v3557 = vunpack.c.l.b16 %v3265
        %v3558 = vunpack.c.l.b16 %v3266
        %v3559 = vunpack.c.l.b16 %v3267
        %v3560 = vunpack.c.l.b16 %v3268
        %v3561 = vunpack.c.l.b16 %v3269
        %v3562 = vunpack.c.l.b16 %v3270
        %v3563 = vunpack.c.l.b16 %v3271
        %v3564 = vunpack.c.l.b16 %v3272
        %v3565 = vunpack.c.l.b16 %v3273
        %v3566 = vunpack.c.l.b16 %v3274
        %v3567 = vunpack.c.l.b16 %v3275
        %v3568 = vunpack.c.l.b16 %v3276
        %v3569 = vunpack.c.l.b16 %v3277
        %v3570 = vunpack.c.l.b16 %v3278
        %v3571 = vunpack.c.l.b16 %v3279
        %v3572 = vunpack.c.l.b16 %v3280
        %v3573 = vunpack.c.l.b16 %v3281
        %v3574 = vunpack.c.l.b16 %v3282
        %v3575 = vunpack.c.l.b16 %v3283
        %v3576 = vunpack.c.l.b16 %v3284
        %v3577 = vunpack.c.l.b16 %v3285
        %v3578 = vunpack.c.l.b16 %v3286
        %v3579 = vunpack.c.l.b16 %v3287
        %v3580 = vunpack.c.l.b16 %v3288
        %v3581 = vunpack.c.l.b16 %v3289
        %v3582 = vunpack.c.l.b16 %v3290
        %v3583 = vunpack.c.l.b16 %v3291
        %v3584 = vunpack.c.l.b16 %v3292
        %v3585 = vunpack.c.l.b16 %v3293
        %v3586 = vunpack.c.l.b16 %v3294
        %v3587 = vunpack.c.l.b16 %v3295
        %v3588 = vunpack.c.l.b16 %v3296
        %v3589 = vunpack.c.l.b16 %v3297
        %v3590 = vunpack.c.l.b16 %v3298
        %v3591 = vunpack.c.l.b16 %v3299
        %v3592 = vunpack.c.l.b16 %v3300
        %v3593 = vunpack.c.l.b16 %v3301
        %v3594 = vunpack.c.l.b16 %v3302
        %v3595 = vunpack.c.l.b16 %v3303
        %v3596 = vunpack.c.l.b16 %v3304
        %v3597 = vunpack.c.l.b16 %v3305
        %v3598 = vunpack.c.l.b16 %v3306
        %v3599 = vunpack.c.l.b16 %v3307
        %v3600 = vunpack.c.l.b16 %v3308
        %v3601 = vunpack.c.l.b16 %v3309
        %v3602 = vunpack.c.l.b16 %v3310
        %v3603 = vunpack.c.l.b16 %v3311
        %v3604 = vunpack.c.l.b16 %v3312
        %v3605 = vunpack.c.l.b16 %v3313
        %v3606 = vunpack.c.l.b16 %v3314
        %v3607 = vunpack.c.l.b16 %v3315
        %v3608 = vunpack.c.l.b16 %v3316
        %v3609 = vunpack.c.l.b16 %v3317
        %v3610 = vunpack.c.l.b16 %v3318
        %v3611 = vunpack.c.l.b16 %v3319
        %v3612 = vunpack.c.l.b16 %v3320
        %v3613 = vunpack.c.l.b16 %v3321
        %v3614 = vunpack.c.l.b16 %v3322
        %v3615 = vunpack.c.l.b16 %v3323
        %v3616 = vunpack.c.l.b16 %v3324
        %v3617 = vunpack.c.l.b16 %v3325
        %v3618 = vunpack.c.l.b16 %v3326
        %v3619 = vunpack.c.l.b16 %v3327
        %v3620 = vunpack.c.l.b16 %v3328
        %v3621 = vunpack.c.l.b16 %v3329
        %v3622 = vunpack.c.l.b16 %v3330
        %v3623 = vunpack.c.l.b16 %v3331
        %v3624 = vunpack.c.l.b16 %v3332
        %v3625 = vunpack.c.l.b16 %v3333
        %v3626 = vunpack.c.l.b16 %v3334
        %v3627 = vunpack.c.l.b16 %v3335
        %v3628 = vunpack.c.l.b16 %v3336
        %v3629 = vunpack.c.l.b16 %v3337
        %v3630 = vunpack.c.l.b16 %v3338
        %v3631 = vunpack.c.l.b16 %v3339
        %v3632 = vunpack.c.l.b16 %v3340
        %v3633 = vunpack.c.l.b16 %v3341
        %v3634 = vunpack.c.l.b16 %v3342
        %v3635 = vunpack.c.l.b16 %v3343
        %v3636 = vunpack.c.l.b16 %v3344
        %v3637 = vunpack.c.l.b16 %v3345
        %v3638 = vunpack.c.l.b16 %v3346
        %v3639 = vunpack.c.l.b16 %v3347
        %v3640 = vunpack.c.l.b16 %v3348
        %v3641 = vunpack.c.l.b16 %v3349
        %v3642 = vunpack.c.l.b16 %v3350
        %v3643 = vunpack.c.l.b16 %v3351
        %v3644 = vunpack.c.l.b16 %v3352
        %v3645 = vunpack.c.l.b16 %v3353
        %v3646 = vunpack.c.l.b16 %v3354
        %v3647 = vunpack.c.l.b16 %v3355
        %v3648 = vunpack.c.l.b16 %v3356
        %v3649 = vunpack.c.l.b16 %v3357
        %v3650 = vunpack.c.l.b16 %v3358
        %v3651 = vunpack.c.l.b16 %v3359
        %v3652 = vunpack.c.l.b16 %v3360
        %v3653 = vunpack.c.l.b16 %v3361
        %v3654 = vunpack.c.l.b16 %v3362
        %v3655 = vunpack.c.l.b16 %v3363
        %v3656 = vunpack.c.l.b16 %v3364
        %v3657 = vunpack.c.l.b16 %v3365
        %v3658 = vunpack.c.l.b16 %v3366
        %v3659 = vunpack.c.l.b16 %v3367
        %v3660 = vunpack.c.l.b16 %v3368
        %v3661 = vunpack.c.l.b16 %v3369
        %v3662 = vunpack.c.l.b16 %v3370
        %v3663 = vunpack.c.l.b16 %v3371
        %v3664 = vunpack.c.l.b16 %v3372
        %v3665 = vunpack.c.l.b16 %v3373
        %v3666 = vpack.c.b16 %v3523, %v3522
        %v3667 = vpack.c.b16 %v3525, %v3524
        %v3668 = vpack.c.b16 %v3527, %v3526
        %v3669 = vpack.c.b16 %v3529, %v3528
        %v3670 = vpack.c.b16 %v3531, %v3530
        %v3671 = vpack.c.b16 %v3533, %v3532
        %v3672 = vpack.c.b16 %v3535, %v3534
        %v3673 = vpack.c.b16 %v3537, %v3536
        %v3674 = vpack.c.b16 %v3539, %v3538
        %v3675 = vpack.c.b16 %v3541, %v3540
        %v3676 = vpack.c.b16 %v3543, %v3542
        %v3677 = vpack.c.b16 %v3545, %v3544
        %v3678 = vpack.c.b16 %v3547, %v3546
        %v3679 = vpack.c.b16 %v3549, %v3548
        %v3680 = vpack.c.b16 %v3551, %v3550
        %v3681 = vpack.c.b16 %v3553, %v3552
        %v3682 = vpack.c.b16 %v3555, %v3554
        %v3683 = vpack.c.b16 %v3557, %v3556
        %v3684 = vpack.c.b16 %v3559, %v3558
        %v3685 = vpack.c.b16 %v3561, %v3560
        %v3686 = vpack.c.b16 %v3563, %v3562
        %v3687 = vpack.c.b16 %v3565, %v3564
        %v3688 = vpack.c.b16 %v3567, %v3566
        %v3689 = vpack.c.b16 %v3569, %v3568
        %v3690 = vpack.c.b16 %v3571, %v3570
        %v3691 = vpack.c.b16 %v3573, %v3572
        %v3692 = vpack.c.b16 %v3575, %v3574
        %v3693 = vpack.c.b16 %v3577, %v3576
        %v3694 = vpack.c.b16 %v3579, %v3578
        %v3695 = vpack.c.b16 %v3581, %v3580
        %v3696 = vpack.c.b16 %v3583, %v3582
        %v3697 = vpack.c.b16 %v3585, %v3584
        %v3698 = vpack.c.b16 %v3587, %v3586
        %v3699 = vpack.c.b16 %v3589, %v3588
        %v3700 = vpack.c.b16 %v3591, %v3590
        %v3701 = vpack.c.b16 %v3593, %v3592
        %v3702 = vpack.c.b16 %v3595, %v3594
        %v3703 = vpack.c.b16 %v3597, %v3596
        %v3704 = vpack.c.b16 %v3599, %v3598
        %v3705 = vpack.c.b16 %v3601, %v3600
        %v3706 = vpack.c.b16 %v3603, %v3602
        %v3707 = vpack.c.b16 %v3605, %v3604
        %v3708 = vpack.c.b16 %v3607, %v3606
        %v3709 = vpack.c.b16 %v3609, %v3608
        %v3710 = vpack.c.b16 %v3611, %v3610
        %v3711 = vpack.c.b16 %v3613, %v3612
        %v3712 = vpack.c.b16 %v3615, %v3614
        %v3713 = vpack.c.b16 %v3617, %v3616
        %v3714 = vpack.c.b16 %v3619, %v3618
        %v3715 = vpack.c.b16 %v3621, %v3620
        %v3716 = vpack.c.b16 %v3623, %v3622
        %v3717 = vpack.c.b16 %v3625, %v3624
        %v3718 = vpack.c.b16 %v3627, %v3626
        %v3719 = vpack.c.b16 %v3629, %v3628
        %v3720 = vpack.c.b16 %v3631, %v3630
        %v3721 = vpack.c.b16 %v3633, %v3632
        %v3722 = vpack.c.b16 %v3635, %v3634
        %v3723 = vpack.c.b16 %v3637, %v3636
        %v3724 = vpack.c.b16 %v3639, %v3638
        %v3725 = vpack.c.b16 %v3641, %v3640
        %v3726 = vpack.c.b16 %v3643, %v3642
        %v3727 = vpack.c.b16 %v3645, %v3644
        %v3728 = vpack.c.b16 %v3647, %v3646
        %v3729 = vpack.c.b16 %v3649, %v3648
        %v3730 = vpack.c.b16 %v3651, %v3650
        %v3731 = vpack.c.b16 %v3653, %v3652
        %v3732 = vpack.c.b16 %v3655, %v3654
        %v3733 = vpack.c.b16 %v3657, %v3656
        %v3734 = vpack.c.b16 %v3659, %v3658
        %v3735 = vpack.c.b16 %v3661, %v3660
        %v3736 = vpack.c.b16 %v3663, %v3662
        %v3737 = vpack.c.b16 %v3665, %v3664
        %3810 = vmatpush.bf16.msra.mxu0 %v3673
        %3811 = vmatpush.bf16.msra.mxu0 %v3672
        %3812 = vmatpush.bf16.msra.mxu0 %v3671
        %3813 = vmatpush.bf16.msra.mxu0 %v3670
        %3814 = vmatpush.bf16.msra.mxu0 %v3669
        %3815 = vmatpush.bf16.msra.mxu0 %v3668
        %3816 = vmatpush.bf16.msra.mxu0 %v3667
        %3817 = vmatpush.bf16.msra.mxu0 %v3666
        %3818 = vmatmul.bf16.gmra.mxu0 %v3116
        %v3819 = vpop.f32.mrf.mxu0
        %v3820 = vadd.f32 %v3376, %v3819
        %v3821 = vpop.f32.mrf.mxu0
        %v3822 = vadd.f32 %v3376, %v3821
        %3823 = vmatmul.bf16.gmra.mxu0 %v3125
        %v3824 = vpop.f32.mrf.mxu0
        %v3825 = vadd.f32 %v3376, %v3824
        %v3826 = vpop.f32.mrf.mxu0
        %v3827 = vadd.f32 %v3376, %v3826
        %3828 = vmatmul.bf16.gmra.mxu0 %v3132
        %v3829 = vpop.f32.mrf.mxu0
        %v3830 = vadd.f32 %v3376, %v3829
        %v3831 = vpop.f32.mrf.mxu0
        %v3832 = vadd.f32 %v3376, %v3831
        %3833 = vmatmul.bf16.gmra.mxu0 %v3139
        %v3834 = vpop.f32.mrf.mxu0
        %v3835 = vadd.f32 %v3376, %v3834
        %v3836 = vpop.f32.mrf.mxu0
        %v3837 = vadd.f32 %v3376, %v3836
        %3838 = vmatmul.bf16.gmra.mxu0 %v3146
        %v3839 = vpop.f32.mrf.mxu0
        %v3840 = vadd.f32 %v3376, %v3839
        %v3841 = vpop.f32.mrf.mxu0
        %v3842 = vadd.f32 %v3376, %v3841
        %3843 = vmatmul.bf16.gmra.mxu0 %v3153
        %v3844 = vpop.f32.mrf.mxu0
        %v3845 = vadd.f32 %v3376, %v3844
        %v3846 = vpop.f32.mrf.mxu0
        %v3847 = vadd.f32 %v3376, %v3846
        %3848 = vmatmul.bf16.gmra.mxu0 %v3160
        %v3849 = vpop.f32.mrf.mxu0
        %v3850 = vadd.f32 %v3376, %v3849
        %v3851 = vpop.f32.mrf.mxu0
        %v3852 = vadd.f32 %v3376, %v3851
        %3853 = vmatmul.bf16.gmra.mxu0 %v3167
        %v3854 = vpop.f32.mrf.mxu0
        %v3855 = vadd.f32 %v3376, %v3854
        %v3856 = vpop.f32.mrf.mxu0
        %v3857 = vadd.f32 %v3376, %v3856
        %3858 = vmatmul.bf16.gmra.mxu0 %v3174
        %v3859 = vpop.f32.mrf.mxu0
        %v3860 = vadd.f32 %v3376, %v3859
        %v3861 = vpop.f32.mrf.mxu0
        %v3862 = vadd.f32 %v3376, %v3861
        %3863 = vmatmul.bf16.gmra.mxu0 %v3181
        %v3864 = vpop.f32.mrf.mxu0
        %v3865 = vadd.f32 %v3376, %v3864
        %v3866 = vpop.f32.mrf.mxu0
        %v3867 = vadd.f32 %v3376, %v3866
        %3868 = vmatmul.bf16.gmra.mxu0 %v3188
        %v3869 = vpop.f32.mrf.mxu0
        %v3870 = vadd.f32 %v3376, %v3869
        %v3871 = vpop.f32.mrf.mxu0
        %v3872 = vadd.f32 %v3376, %v3871
        %3873 = vmatmul.bf16.gmra.mxu0 %v3195
        %v3874 = vpop.f32.mrf.mxu0
        %v3875 = vadd.f32 %v3376, %v3874
        %v3876 = vpop.f32.mrf.mxu0
        %v3877 = vadd.f32 %v3376, %v3876
        %3878 = vmatmul.bf16.gmra.mxu0 %v3202
        %v3879 = vpop.f32.mrf.mxu0
        %v3880 = vadd.f32 %v3376, %v3879
        %v3881 = vpop.f32.mrf.mxu0
        %v3882 = vadd.f32 %v3376, %v3881
        %3883 = vmatmul.bf16.gmra.mxu0 %v3209
        %v3884 = vpop.f32.mrf.mxu0
        %v3885 = vadd.f32 %v3376, %v3884
        %v3886 = vpop.f32.mrf.mxu0
        %v3887 = vadd.f32 %v3376, %v3886
        %3888 = vmatmul.bf16.gmra.mxu0 %v3216
        %v3889 = vpop.f32.mrf.mxu0
        %v3890 = vadd.f32 %v3376, %v3889
        %v3891 = vpop.f32.mrf.mxu0
        %v3892 = vadd.f32 %v3376, %v3891
        %3893 = vmatmul.bf16.gmra.mxu0 %v3223
        %v3894 = vpop.f32.mrf.mxu0
        %v3895 = vadd.f32 %v3376, %v3894
        %v3896 = vpop.f32.mrf.mxu0
        %v3897 = vadd.f32 %v3376, %v3896
        %3898 = vdwg.mxu0
        %3899 = vmatpush.bf16.msra.mxu0 %v3681
        %3900 = vmatpush.bf16.msra.mxu0 %v3680
        %3901 = vmatpush.bf16.msra.mxu0 %v3679
        %3902 = vmatpush.bf16.msra.mxu0 %v3678
        %3903 = vmatpush.bf16.msra.mxu0 %v3677
        %3904 = vmatpush.bf16.msra.mxu0 %v3676
        %3905 = vmatpush.bf16.msra.mxu0 %v3675
        %3906 = vmatpush.bf16.msra.mxu0 %v3674
        %3907 = vmatmul.bf16.gmra.mxu0 %v3117
        %v3908 = vpop.f32.mrf.mxu0
        %v3909 = vadd.f32 %v3820, %v3908
        %v3910 = vpop.f32.mrf.mxu0
        %v3911 = vadd.f32 %v3822, %v3910
        %3912 = vmatmul.bf16.gmra.mxu0 %v3120
        %v3913 = vpop.f32.mrf.mxu0
        %v3914 = vadd.f32 %v3825, %v3913
        %v3915 = vpop.f32.mrf.mxu0
        %v3916 = vadd.f32 %v3827, %v3915
        %3917 = vmatmul.bf16.gmra.mxu0 %v3123
        %v3918 = vpop.f32.mrf.mxu0
        %v3919 = vadd.f32 %v3830, %v3918
        %v3920 = vpop.f32.mrf.mxu0
        %v3921 = vadd.f32 %v3832, %v3920
        %3922 = vmatmul.bf16.gmra.mxu0 %v3130
        %v3923 = vpop.f32.mrf.mxu0
        %v3924 = vadd.f32 %v3835, %v3923
        %v3925 = vpop.f32.mrf.mxu0
        %v3926 = vadd.f32 %v3837, %v3925
        %3927 = vmatmul.bf16.gmra.mxu0 %v3137
        %v3928 = vpop.f32.mrf.mxu0
        %v3929 = vadd.f32 %v3840, %v3928
        %v3930 = vpop.f32.mrf.mxu0
        %v3931 = vadd.f32 %v3842, %v3930
        %3932 = vmatmul.bf16.gmra.mxu0 %v3144
        %v3933 = vpop.f32.mrf.mxu0
        %v3934 = vadd.f32 %v3845, %v3933
        %v3935 = vpop.f32.mrf.mxu0
        %v3936 = vadd.f32 %v3847, %v3935
        %3937 = vmatmul.bf16.gmra.mxu0 %v3151
        %v3938 = vpop.f32.mrf.mxu0
        %v3939 = vadd.f32 %v3850, %v3938
        %v3940 = vpop.f32.mrf.mxu0
        %v3941 = vadd.f32 %v3852, %v3940
        %3942 = vmatmul.bf16.gmra.mxu0 %v3158
        %v3943 = vpop.f32.mrf.mxu0
        %v3944 = vadd.f32 %v3855, %v3943
        %v3945 = vpop.f32.mrf.mxu0
        %v3946 = vadd.f32 %v3857, %v3945
        %3947 = vmatmul.bf16.gmra.mxu0 %v3165
        %v3948 = vpop.f32.mrf.mxu0
        %v3949 = vadd.f32 %v3860, %v3948
        %v3950 = vpop.f32.mrf.mxu0
        %v3951 = vadd.f32 %v3862, %v3950
        %3952 = vmatmul.bf16.gmra.mxu0 %v3172
        %v3953 = vpop.f32.mrf.mxu0
        %v3954 = vadd.f32 %v3865, %v3953
        %v3955 = vpop.f32.mrf.mxu0
        %v3956 = vadd.f32 %v3867, %v3955
        %3957 = vmatmul.bf16.gmra.mxu0 %v3179
        %v3958 = vpop.f32.mrf.mxu0
        %v3959 = vadd.f32 %v3870, %v3958
        %v3960 = vpop.f32.mrf.mxu0
        %v3961 = vadd.f32 %v3872, %v3960
        %3962 = vmatmul.bf16.gmra.mxu0 %v3186
        %v3963 = vpop.f32.mrf.mxu0
        %v3964 = vadd.f32 %v3875, %v3963
        %v3965 = vpop.f32.mrf.mxu0
        %v3966 = vadd.f32 %v3877, %v3965
        %3967 = vmatmul.bf16.gmra.mxu0 %v3193
        %v3968 = vpop.f32.mrf.mxu0
        %v3969 = vadd.f32 %v3880, %v3968
        %v3970 = vpop.f32.mrf.mxu0
        %v3971 = vadd.f32 %v3882, %v3970
        %3972 = vmatmul.bf16.gmra.mxu0 %v3200
        %v3973 = vpop.f32.mrf.mxu0
        %v3974 = vadd.f32 %v3885, %v3973
        %v3975 = vpop.f32.mrf.mxu0
        %v3976 = vadd.f32 %v3887, %v3975
        %3977 = vmatmul.bf16.gmra.mxu0 %v3207
        %v3978 = vpop.f32.mrf.mxu0
        %v3979 = vadd.f32 %v3890, %v3978
        %v3980 = vpop.f32.mrf.mxu0
        %v3981 = vadd.f32 %v3892, %v3980
        %3982 = vmatmul.bf16.gmra.mxu0 %v3214
        %v3983 = vpop.f32.mrf.mxu0
        %v3984 = vadd.f32 %v3895, %v3983
        %v3985 = vpop.f32.mrf.mxu0
        %v3986 = vadd.f32 %v3897, %v3985
        %3987 = vdwg.mxu0
        %3988 = vmatpush.bf16.msra.mxu0 %v3689
        %3989 = vmatpush.bf16.msra.mxu0 %v3688
        %3990 = vmatpush.bf16.msra.mxu0 %v3687
        %3991 = vmatpush.bf16.msra.mxu0 %v3686
        %3992 = vmatpush.bf16.msra.mxu0 %v3685
        %3993 = vmatpush.bf16.msra.mxu0 %v3684
        %3994 = vmatpush.bf16.msra.mxu0 %v3683
        %3995 = vmatpush.bf16.msra.mxu0 %v3682
        %3996 = vmatmul.bf16.gmra.mxu0 %v3118
        %v3997 = vpop.f32.mrf.mxu0
        %v3998 = vadd.f32 %v3909, %v3997
        %v3999 = vpop.f32.mrf.mxu0
        %v4000 = vadd.f32 %v3911, %v3999
        %4001 = vmatmul.bf16.gmra.mxu0 %v3126
        %v4002 = vpop.f32.mrf.mxu0
        %v4003 = vadd.f32 %v3914, %v4002
        %v4004 = vpop.f32.mrf.mxu0
        %v4005 = vadd.f32 %v3916, %v4004
        %4006 = vmatmul.bf16.gmra.mxu0 %v3133
        %v4007 = vpop.f32.mrf.mxu0
        %v4008 = vadd.f32 %v3919, %v4007
        %v4009 = vpop.f32.mrf.mxu0
        %v4010 = vadd.f32 %v3921, %v4009
        %4011 = vmatmul.bf16.gmra.mxu0 %v3140
        %v4012 = vpop.f32.mrf.mxu0
        %v4013 = vadd.f32 %v3924, %v4012
        %v4014 = vpop.f32.mrf.mxu0
        %v4015 = vadd.f32 %v3926, %v4014
        %4016 = vmatmul.bf16.gmra.mxu0 %v3147
        %v4017 = vpop.f32.mrf.mxu0
        %v4018 = vadd.f32 %v3929, %v4017
        %v4019 = vpop.f32.mrf.mxu0
        %v4020 = vadd.f32 %v3931, %v4019
        %4021 = vmatmul.bf16.gmra.mxu0 %v3154
        %v4022 = vpop.f32.mrf.mxu0
        %v4023 = vadd.f32 %v3934, %v4022
        %v4024 = vpop.f32.mrf.mxu0
        %v4025 = vadd.f32 %v3936, %v4024
        %4026 = vmatmul.bf16.gmra.mxu0 %v3161
        %v4027 = vpop.f32.mrf.mxu0
        %v4028 = vadd.f32 %v3939, %v4027
        %v4029 = vpop.f32.mrf.mxu0
        %v4030 = vadd.f32 %v3941, %v4029
        %4031 = vmatmul.bf16.gmra.mxu0 %v3168
        %v4032 = vpop.f32.mrf.mxu0
        %v4033 = vadd.f32 %v3944, %v4032
        %v4034 = vpop.f32.mrf.mxu0
        %v4035 = vadd.f32 %v3946, %v4034
        %4036 = vmatmul.bf16.gmra.mxu0 %v3175
        %v4037 = vpop.f32.mrf.mxu0
        %v4038 = vadd.f32 %v3949, %v4037
        %v4039 = vpop.f32.mrf.mxu0
        %v4040 = vadd.f32 %v3951, %v4039
        %4041 = vmatmul.bf16.gmra.mxu0 %v3182
        %v4042 = vpop.f32.mrf.mxu0
        %v4043 = vadd.f32 %v3954, %v4042
        %v4044 = vpop.f32.mrf.mxu0
        %v4045 = vadd.f32 %v3956, %v4044
        %4046 = vmatmul.bf16.gmra.mxu0 %v3189
        %v4047 = vpop.f32.mrf.mxu0
        %v4048 = vadd.f32 %v3959, %v4047
        %v4049 = vpop.f32.mrf.mxu0
        %v4050 = vadd.f32 %v3961, %v4049
        %4051 = vmatmul.bf16.gmra.mxu0 %v3196
        %v4052 = vpop.f32.mrf.mxu0
        %v4053 = vadd.f32 %v3964, %v4052
        %v4054 = vpop.f32.mrf.mxu0
        %v4055 = vadd.f32 %v3966, %v4054
        %4056 = vmatmul.bf16.gmra.mxu0 %v3203
        %v4057 = vpop.f32.mrf.mxu0
        %v4058 = vadd.f32 %v3969, %v4057
        %v4059 = vpop.f32.mrf.mxu0
        %v4060 = vadd.f32 %v3971, %v4059
        %4061 = vmatmul.bf16.gmra.mxu0 %v3210
        %v4062 = vpop.f32.mrf.mxu0
        %v4063 = vadd.f32 %v3974, %v4062
        %v4064 = vpop.f32.mrf.mxu0
        %v4065 = vadd.f32 %v3976, %v4064
        %4066 = vmatmul.bf16.gmra.mxu0 %v3217
        %v4067 = vpop.f32.mrf.mxu0
        %v4068 = vadd.f32 %v3979, %v4067
        %v4069 = vpop.f32.mrf.mxu0
        %v4070 = vadd.f32 %v3981, %v4069
        %4071 = vmatmul.bf16.gmra.mxu0 %v3224
        %v4072 = vpop.f32.mrf.mxu0
        %v4073 = vadd.f32 %v3984, %v4072
        %v4074 = vpop.f32.mrf.mxu0
        %v4075 = vadd.f32 %v3986, %v4074
        %4076 = vdwg.mxu0
        %4077 = vmatpush.bf16.msra.mxu0 %v3697
        %4078 = vmatpush.bf16.msra.mxu0 %v3696
        %4079 = vmatpush.bf16.msra.mxu0 %v3695
        %4080 = vmatpush.bf16.msra.mxu0 %v3694
        %4081 = vmatpush.bf16.msra.mxu0 %v3693
        %4082 = vmatpush.bf16.msra.mxu0 %v3692
        %4083 = vmatpush.bf16.msra.mxu0 %v3691
        %4084 = vmatpush.bf16.msra.mxu0 %v3690
        %4085 = vmatmul.bf16.gmra.mxu0 %v3119
        %v4086 = vpop.f32.mrf.mxu0
        %v4087 = vadd.f32 %v3998, %v4086
        %v4088 = vpop.f32.mrf.mxu0
        %v4089 = vadd.f32 %v4000, %v4088
        %4090 = vmatmul.bf16.gmra.mxu0 %v3127
        %v4091 = vpop.f32.mrf.mxu0
        %v4092 = vadd.f32 %v4003, %v4091
        %v4093 = vpop.f32.mrf.mxu0
        %v4094 = vadd.f32 %v4005, %v4093
        %4095 = vmatmul.bf16.gmra.mxu0 %v3134
        %v4096 = vpop.f32.mrf.mxu0
        %v4097 = vadd.f32 %v4008, %v4096
        %v4098 = vpop.f32.mrf.mxu0
        %v4099 = vadd.f32 %v4010, %v4098
        %4100 = vmatmul.bf16.gmra.mxu0 %v3141
        %v4101 = vpop.f32.mrf.mxu0
        %v4102 = vadd.f32 %v4013, %v4101
        %v4103 = vpop.f32.mrf.mxu0
        %v4104 = vadd.f32 %v4015, %v4103
        %4105 = vmatmul.bf16.gmra.mxu0 %v3148
        %v4106 = vpop.f32.mrf.mxu0
        %v4107 = vadd.f32 %v4018, %v4106
        %v4108 = vpop.f32.mrf.mxu0
        %v4109 = vadd.f32 %v4020, %v4108
        %4110 = vmatmul.bf16.gmra.mxu0 %v3155
        %v4111 = vpop.f32.mrf.mxu0
        %v4112 = vadd.f32 %v4023, %v4111
        %v4113 = vpop.f32.mrf.mxu0
        %v4114 = vadd.f32 %v4025, %v4113
        %4115 = vmatmul.bf16.gmra.mxu0 %v3162
        %v4116 = vpop.f32.mrf.mxu0
        %v4117 = vadd.f32 %v4028, %v4116
        %v4118 = vpop.f32.mrf.mxu0
        %v4119 = vadd.f32 %v4030, %v4118
        %4120 = vmatmul.bf16.gmra.mxu0 %v3169
        %v4121 = vpop.f32.mrf.mxu0
        %v4122 = vadd.f32 %v4033, %v4121
        %v4123 = vpop.f32.mrf.mxu0
        %v4124 = vadd.f32 %v4035, %v4123
        %4125 = vmatmul.bf16.gmra.mxu0 %v3176
        %v4126 = vpop.f32.mrf.mxu0
        %v4127 = vadd.f32 %v4038, %v4126
        %v4128 = vpop.f32.mrf.mxu0
        %v4129 = vadd.f32 %v4040, %v4128
        %4130 = vmatmul.bf16.gmra.mxu0 %v3183
        %v4131 = vpop.f32.mrf.mxu0
        %v4132 = vadd.f32 %v4043, %v4131
        %v4133 = vpop.f32.mrf.mxu0
        %v4134 = vadd.f32 %v4045, %v4133
        %4135 = vmatmul.bf16.gmra.mxu0 %v3190
        %v4136 = vpop.f32.mrf.mxu0
        %v4137 = vadd.f32 %v4048, %v4136
        %v4138 = vpop.f32.mrf.mxu0
        %v4139 = vadd.f32 %v4050, %v4138
        %4140 = vmatmul.bf16.gmra.mxu0 %v3197
        %v4141 = vpop.f32.mrf.mxu0
        %v4142 = vadd.f32 %v4053, %v4141
        %v4143 = vpop.f32.mrf.mxu0
        %v4144 = vadd.f32 %v4055, %v4143
        %4145 = vmatmul.bf16.gmra.mxu0 %v3204
        %v4146 = vpop.f32.mrf.mxu0
        %v4147 = vadd.f32 %v4058, %v4146
        %v4148 = vpop.f32.mrf.mxu0
        %v4149 = vadd.f32 %v4060, %v4148
        %4150 = vmatmul.bf16.gmra.mxu0 %v3211
        %v4151 = vpop.f32.mrf.mxu0
        %v4152 = vadd.f32 %v4063, %v4151
        %v4153 = vpop.f32.mrf.mxu0
        %v4154 = vadd.f32 %v4065, %v4153
        %4155 = vmatmul.bf16.gmra.mxu0 %v3218
        %v4156 = vpop.f32.mrf.mxu0
        %v4157 = vadd.f32 %v4068, %v4156
        %v4158 = vpop.f32.mrf.mxu0
        %v4159 = vadd.f32 %v4070, %v4158
        %4160 = vmatmul.bf16.gmra.mxu0 %v3225
        %v4161 = vpop.f32.mrf.mxu0
        %v4162 = vadd.f32 %v4073, %v4161
        %v4163 = vpop.f32.mrf.mxu0
        %v4164 = vadd.f32 %v4075, %v4163
        %4165 = vdwg.mxu0
        %4166 = vmatpush.bf16.msra.mxu0 %v3705
        %4167 = vmatpush.bf16.msra.mxu0 %v3704
        %4168 = vmatpush.bf16.msra.mxu0 %v3703
        %4169 = vmatpush.bf16.msra.mxu0 %v3702
        %4170 = vmatpush.bf16.msra.mxu0 %v3701
        %4171 = vmatpush.bf16.msra.mxu0 %v3700
        %4172 = vmatpush.bf16.msra.mxu0 %v3699
        %4173 = vmatpush.bf16.msra.mxu0 %v3698
        %4174 = vmatmul.bf16.gmra.mxu0 %v3120
        %v4175 = vpop.f32.mrf.mxu0
        %v4176 = vadd.f32 %v4087, %v4175
        %v4177 = vpop.f32.mrf.mxu0
        %v4178 = vadd.f32 %v4089, %v4177
        %4179 = vmatmul.bf16.gmra.mxu0 %v3123
        %v4180 = vpop.f32.mrf.mxu0
        %v4181 = vadd.f32 %v4092, %v4180
        %v4182 = vpop.f32.mrf.mxu0
        %v4183 = vadd.f32 %v4094, %v4182
        %4184 = vmatmul.bf16.gmra.mxu0 %v3130
        %v4185 = vpop.f32.mrf.mxu0
        %v4186 = vadd.f32 %v4097, %v4185
        %v4187 = vpop.f32.mrf.mxu0
        %v4188 = vadd.f32 %v4099, %v4187
        %4189 = vmatmul.bf16.gmra.mxu0 %v3137
        %v4190 = vpop.f32.mrf.mxu0
        %v4191 = vadd.f32 %v4102, %v4190
        %v4192 = vpop.f32.mrf.mxu0
        %v4193 = vadd.f32 %v4104, %v4192
        %4194 = vmatmul.bf16.gmra.mxu0 %v3144
        %v4195 = vpop.f32.mrf.mxu0
        %v4196 = vadd.f32 %v4107, %v4195
        %v4197 = vpop.f32.mrf.mxu0
        %v4198 = vadd.f32 %v4109, %v4197
        %4199 = vmatmul.bf16.gmra.mxu0 %v3151
        %v4200 = vpop.f32.mrf.mxu0
        %v4201 = vadd.f32 %v4112, %v4200
        %v4202 = vpop.f32.mrf.mxu0
        %v4203 = vadd.f32 %v4114, %v4202
        %4204 = vmatmul.bf16.gmra.mxu0 %v3158
        %v4205 = vpop.f32.mrf.mxu0
        %v4206 = vadd.f32 %v4117, %v4205
        %v4207 = vpop.f32.mrf.mxu0
        %v4208 = vadd.f32 %v4119, %v4207
        %4209 = vmatmul.bf16.gmra.mxu0 %v3165
        %v4210 = vpop.f32.mrf.mxu0
        %v4211 = vadd.f32 %v4122, %v4210
        %v4212 = vpop.f32.mrf.mxu0
        %v4213 = vadd.f32 %v4124, %v4212
        %4214 = vmatmul.bf16.gmra.mxu0 %v3172
        %v4215 = vpop.f32.mrf.mxu0
        %v4216 = vadd.f32 %v4127, %v4215
        %v4217 = vpop.f32.mrf.mxu0
        %v4218 = vadd.f32 %v4129, %v4217
        %4219 = vmatmul.bf16.gmra.mxu0 %v3179
        %v4220 = vpop.f32.mrf.mxu0
        %v4221 = vadd.f32 %v4132, %v4220
        %v4222 = vpop.f32.mrf.mxu0
        %v4223 = vadd.f32 %v4134, %v4222
        %4224 = vmatmul.bf16.gmra.mxu0 %v3186
        %v4225 = vpop.f32.mrf.mxu0
        %v4226 = vadd.f32 %v4137, %v4225
        %v4227 = vpop.f32.mrf.mxu0
        %v4228 = vadd.f32 %v4139, %v4227
        %4229 = vmatmul.bf16.gmra.mxu0 %v3193
        %v4230 = vpop.f32.mrf.mxu0
        %v4231 = vadd.f32 %v4142, %v4230
        %v4232 = vpop.f32.mrf.mxu0
        %v4233 = vadd.f32 %v4144, %v4232
        %4234 = vmatmul.bf16.gmra.mxu0 %v3200
        %v4235 = vpop.f32.mrf.mxu0
        %v4236 = vadd.f32 %v4147, %v4235
        %v4237 = vpop.f32.mrf.mxu0
        %v4238 = vadd.f32 %v4149, %v4237
        %4239 = vmatmul.bf16.gmra.mxu0 %v3207
        %v4240 = vpop.f32.mrf.mxu0
        %v4241 = vadd.f32 %v4152, %v4240
        %v4242 = vpop.f32.mrf.mxu0
        %v4243 = vadd.f32 %v4154, %v4242
        %4244 = vmatmul.bf16.gmra.mxu0 %v3214
        %v4245 = vpop.f32.mrf.mxu0
        %v4246 = vadd.f32 %v4157, %v4245
        %v4247 = vpop.f32.mrf.mxu0
        %v4248 = vadd.f32 %v4159, %v4247
        %4249 = vmatmul.bf16.gmra.mxu0 %v3221
        %v4250 = vpop.f32.mrf.mxu0
        %v4251 = vadd.f32 %v4162, %v4250
        %v4252 = vpop.f32.mrf.mxu0
        %v4253 = vadd.f32 %v4164, %v4252
        %4254 = vdwg.mxu0
        %4255 = vmatpush.bf16.msra.mxu0 %v3713
        %4256 = vmatpush.bf16.msra.mxu0 %v3712
        %4257 = vmatpush.bf16.msra.mxu0 %v3711
        %4258 = vmatpush.bf16.msra.mxu0 %v3710
        %4259 = vmatpush.bf16.msra.mxu0 %v3709
        %4260 = vmatpush.bf16.msra.mxu0 %v3708
        %4261 = vmatpush.bf16.msra.mxu0 %v3707
        %4262 = vmatpush.bf16.msra.mxu0 %v3706
        %4263 = vmatmul.bf16.gmra.mxu0 %v3121
        %v4264 = vpop.f32.mrf.mxu0
        %v4265 = vadd.f32 %v4176, %v4264
        %v4266 = vpop.f32.mrf.mxu0
        %v4267 = vadd.f32 %v4178, %v4266
        %4268 = vmatmul.bf16.gmra.mxu0 %v3128
        %v4269 = vpop.f32.mrf.mxu0
        %v4270 = vadd.f32 %v4181, %v4269
        %v4271 = vpop.f32.mrf.mxu0
        %v4272 = vadd.f32 %v4183, %v4271
        %4273 = vmatmul.bf16.gmra.mxu0 %v3135
        %v4274 = vpop.f32.mrf.mxu0
        %v4275 = vadd.f32 %v4186, %v4274
        %v4276 = vpop.f32.mrf.mxu0
        %v4277 = vadd.f32 %v4188, %v4276
        %4278 = vmatmul.bf16.gmra.mxu0 %v3142
        %v4279 = vpop.f32.mrf.mxu0
        %v4280 = vadd.f32 %v4191, %v4279
        %v4281 = vpop.f32.mrf.mxu0
        %v4282 = vadd.f32 %v4193, %v4281
        %4283 = vmatmul.bf16.gmra.mxu0 %v3149
        %v4284 = vpop.f32.mrf.mxu0
        %v4285 = vadd.f32 %v4196, %v4284
        %v4286 = vpop.f32.mrf.mxu0
        %v4287 = vadd.f32 %v4198, %v4286
        %4288 = vmatmul.bf16.gmra.mxu0 %v3156
        %v4289 = vpop.f32.mrf.mxu0
        %v4290 = vadd.f32 %v4201, %v4289
        %v4291 = vpop.f32.mrf.mxu0
        %v4292 = vadd.f32 %v4203, %v4291
        %4293 = vmatmul.bf16.gmra.mxu0 %v3163
        %v4294 = vpop.f32.mrf.mxu0
        %v4295 = vadd.f32 %v4206, %v4294
        %v4296 = vpop.f32.mrf.mxu0
        %v4297 = vadd.f32 %v4208, %v4296
        %4298 = vmatmul.bf16.gmra.mxu0 %v3170
        %v4299 = vpop.f32.mrf.mxu0
        %v4300 = vadd.f32 %v4211, %v4299
        %v4301 = vpop.f32.mrf.mxu0
        %v4302 = vadd.f32 %v4213, %v4301
        %4303 = vmatmul.bf16.gmra.mxu0 %v3177
        %v4304 = vpop.f32.mrf.mxu0
        %v4305 = vadd.f32 %v4216, %v4304
        %v4306 = vpop.f32.mrf.mxu0
        %v4307 = vadd.f32 %v4218, %v4306
        %4308 = vmatmul.bf16.gmra.mxu0 %v3184
        %v4309 = vpop.f32.mrf.mxu0
        %v4310 = vadd.f32 %v4221, %v4309
        %v4311 = vpop.f32.mrf.mxu0
        %v4312 = vadd.f32 %v4223, %v4311
        %4313 = vmatmul.bf16.gmra.mxu0 %v3191
        %v4314 = vpop.f32.mrf.mxu0
        %v4315 = vadd.f32 %v4226, %v4314
        %v4316 = vpop.f32.mrf.mxu0
        %v4317 = vadd.f32 %v4228, %v4316
        %4318 = vmatmul.bf16.gmra.mxu0 %v3198
        %v4319 = vpop.f32.mrf.mxu0
        %v4320 = vadd.f32 %v4231, %v4319
        %v4321 = vpop.f32.mrf.mxu0
        %v4322 = vadd.f32 %v4233, %v4321
        %4323 = vmatmul.bf16.gmra.mxu0 %v3205
        %v4324 = vpop.f32.mrf.mxu0
        %v4325 = vadd.f32 %v4236, %v4324
        %v4326 = vpop.f32.mrf.mxu0
        %v4327 = vadd.f32 %v4238, %v4326
        %4328 = vmatmul.bf16.gmra.mxu0 %v3212
        %v4329 = vpop.f32.mrf.mxu0
        %v4330 = vadd.f32 %v4241, %v4329
        %v4331 = vpop.f32.mrf.mxu0
        %v4332 = vadd.f32 %v4243, %v4331
        %4333 = vmatmul.bf16.gmra.mxu0 %v3219
        %v4334 = vpop.f32.mrf.mxu0
        %v4335 = vadd.f32 %v4246, %v4334
        %v4336 = vpop.f32.mrf.mxu0
        %v4337 = vadd.f32 %v4248, %v4336
        %4338 = vmatmul.bf16.gmra.mxu0 %v3226
        %v4339 = vpop.f32.mrf.mxu0
        %v4340 = vadd.f32 %v4251, %v4339
        %v4341 = vpop.f32.mrf.mxu0
        %v4342 = vadd.f32 %v4253, %v4341
        %4343 = vdwg.mxu0
        %4344 = vmatpush.bf16.msra.mxu0 %v3721
        %4345 = vmatpush.bf16.msra.mxu0 %v3720
        %4346 = vmatpush.bf16.msra.mxu0 %v3719
        %4347 = vmatpush.bf16.msra.mxu0 %v3718
        %4348 = vmatpush.bf16.msra.mxu0 %v3717
        %4349 = vmatpush.bf16.msra.mxu0 %v3716
        %4350 = vmatpush.bf16.msra.mxu0 %v3715
        %4351 = vmatpush.bf16.msra.mxu0 %v3714
        %4352 = vmatmul.bf16.gmra.mxu0 %v3122
        %v4353 = vpop.f32.mrf.mxu0
        %v4354 = vadd.f32 %v4265, %v4353
        %v4355 = vpop.f32.mrf.mxu0
        %v4356 = vadd.f32 %v4267, %v4355
        %4357 = vmatmul.bf16.gmra.mxu0 %v3129
        %v4358 = vpop.f32.mrf.mxu0
        %v4359 = vadd.f32 %v4270, %v4358
        %v4360 = vpop.f32.mrf.mxu0
        %v4361 = vadd.f32 %v4272, %v4360
        %4362 = vmatmul.bf16.gmra.mxu0 %v3136
        %v4363 = vpop.f32.mrf.mxu0
        %v4364 = vadd.f32 %v4275, %v4363
        %v4365 = vpop.f32.mrf.mxu0
        %v4366 = vadd.f32 %v4277, %v4365
        %4367 = vmatmul.bf16.gmra.mxu0 %v3143
        %v4368 = vpop.f32.mrf.mxu0
        %v4369 = vadd.f32 %v4280, %v4368
        %v4370 = vpop.f32.mrf.mxu0
        %v4371 = vadd.f32 %v4282, %v4370
        %4372 = vmatmul.bf16.gmra.mxu0 %v3150
        %v4373 = vpop.f32.mrf.mxu0
        %v4374 = vadd.f32 %v4285, %v4373
        %v4375 = vpop.f32.mrf.mxu0
        %v4376 = vadd.f32 %v4287, %v4375
        %4377 = vmatmul.bf16.gmra.mxu0 %v3157
        %v4378 = vpop.f32.mrf.mxu0
        %v4379 = vadd.f32 %v4290, %v4378
        %v4380 = vpop.f32.mrf.mxu0
        %v4381 = vadd.f32 %v4292, %v4380
        %4382 = vmatmul.bf16.gmra.mxu0 %v3164
        %v4383 = vpop.f32.mrf.mxu0
        %v4384 = vadd.f32 %v4295, %v4383
        %v4385 = vpop.f32.mrf.mxu0
        %v4386 = vadd.f32 %v4297, %v4385
        %4387 = vmatmul.bf16.gmra.mxu0 %v3171
        %v4388 = vpop.f32.mrf.mxu0
        %v4389 = vadd.f32 %v4300, %v4388
        %v4390 = vpop.f32.mrf.mxu0
        %v4391 = vadd.f32 %v4302, %v4390
        %4392 = vmatmul.bf16.gmra.mxu0 %v3178
        %v4393 = vpop.f32.mrf.mxu0
        %v4394 = vadd.f32 %v4305, %v4393
        %v4395 = vpop.f32.mrf.mxu0
        %v4396 = vadd.f32 %v4307, %v4395
        %4397 = vmatmul.bf16.gmra.mxu0 %v3185
        %v4398 = vpop.f32.mrf.mxu0
        %v4399 = vadd.f32 %v4310, %v4398
        %v4400 = vpop.f32.mrf.mxu0
        %v4401 = vadd.f32 %v4312, %v4400
        %4402 = vmatmul.bf16.gmra.mxu0 %v3192
        %v4403 = vpop.f32.mrf.mxu0
        %v4404 = vadd.f32 %v4315, %v4403
        %v4405 = vpop.f32.mrf.mxu0
        %v4406 = vadd.f32 %v4317, %v4405
        %4407 = vmatmul.bf16.gmra.mxu0 %v3199
        %v4408 = vpop.f32.mrf.mxu0
        %v4409 = vadd.f32 %v4320, %v4408
        %v4410 = vpop.f32.mrf.mxu0
        %v4411 = vadd.f32 %v4322, %v4410
        %4412 = vmatmul.bf16.gmra.mxu0 %v3206
        %v4413 = vpop.f32.mrf.mxu0
        %v4414 = vadd.f32 %v4325, %v4413
        %v4415 = vpop.f32.mrf.mxu0
        %v4416 = vadd.f32 %v4327, %v4415
        %4417 = vmatmul.bf16.gmra.mxu0 %v3213
        %v4418 = vpop.f32.mrf.mxu0
        %v4419 = vadd.f32 %v4330, %v4418
        %v4420 = vpop.f32.mrf.mxu0
        %v4421 = vadd.f32 %v4332, %v4420
        %4422 = vmatmul.bf16.gmra.mxu0 %v3220
        %v4423 = vpop.f32.mrf.mxu0
        %v4424 = vadd.f32 %v4335, %v4423
        %v4425 = vpop.f32.mrf.mxu0
        %v4426 = vadd.f32 %v4337, %v4425
        %4427 = vmatmul.bf16.gmra.mxu0 %v3227
        %v4428 = vpop.f32.mrf.mxu0
        %v4429 = vadd.f32 %v4340, %v4428
        %v4430 = vpop.f32.mrf.mxu0
        %v4431 = vadd.f32 %v4342, %v4430
        %4432 = vdwg.mxu0
        %4433 = vmatpush.bf16.msra.mxu0 %v3729
        %4434 = vmatpush.bf16.msra.mxu0 %v3728
        %4435 = vmatpush.bf16.msra.mxu0 %v3727
        %4436 = vmatpush.bf16.msra.mxu0 %v3726
        %4437 = vmatpush.bf16.msra.mxu0 %v3725
        %4438 = vmatpush.bf16.msra.mxu0 %v3724
        %4439 = vmatpush.bf16.msra.mxu0 %v3723
        %4440 = vmatpush.bf16.msra.mxu0 %v3722
        %4441 = vmatmul.bf16.gmra.mxu0 %v3123
        %v4442 = vpop.f32.mrf.mxu0
        %v4443 = vadd.f32 %v4354, %v4442
        %v4444 = vpop.f32.mrf.mxu0
        %v4445 = vadd.f32 %v4356, %v4444
        %4446 = vmatmul.bf16.gmra.mxu0 %v3130
        %v4447 = vpop.f32.mrf.mxu0
        %v4448 = vadd.f32 %v4359, %v4447
        %v4449 = vpop.f32.mrf.mxu0
        %v4450 = vadd.f32 %v4361, %v4449
        %4451 = vmatmul.bf16.gmra.mxu0 %v3137
        %v4452 = vpop.f32.mrf.mxu0
        %v4453 = vadd.f32 %v4364, %v4452
        %v4454 = vpop.f32.mrf.mxu0
        %v4455 = vadd.f32 %v4366, %v4454
        %4456 = vmatmul.bf16.gmra.mxu0 %v3144
        %v4457 = vpop.f32.mrf.mxu0
        %v4458 = vadd.f32 %v4369, %v4457
        %v4459 = vpop.f32.mrf.mxu0
        %v4460 = vadd.f32 %v4371, %v4459
        %4461 = vmatmul.bf16.gmra.mxu0 %v3151
        %v4462 = vpop.f32.mrf.mxu0
        %v4463 = vadd.f32 %v4374, %v4462
        %v4464 = vpop.f32.mrf.mxu0
        %v4465 = vadd.f32 %v4376, %v4464
        %4466 = vmatmul.bf16.gmra.mxu0 %v3158
        %v4467 = vpop.f32.mrf.mxu0
        %v4468 = vadd.f32 %v4379, %v4467
        %v4469 = vpop.f32.mrf.mxu0
        %v4470 = vadd.f32 %v4381, %v4469
        %4471 = vmatmul.bf16.gmra.mxu0 %v3165
        %v4472 = vpop.f32.mrf.mxu0
        %v4473 = vadd.f32 %v4384, %v4472
        %v4474 = vpop.f32.mrf.mxu0
        %v4475 = vadd.f32 %v4386, %v4474
        %4476 = vmatmul.bf16.gmra.mxu0 %v3172
        %v4477 = vpop.f32.mrf.mxu0
        %v4478 = vadd.f32 %v4389, %v4477
        %v4479 = vpop.f32.mrf.mxu0
        %v4480 = vadd.f32 %v4391, %v4479
        %4481 = vmatmul.bf16.gmra.mxu0 %v3179
        %v4482 = vpop.f32.mrf.mxu0
        %v4483 = vadd.f32 %v4394, %v4482
        %v4484 = vpop.f32.mrf.mxu0
        %v4485 = vadd.f32 %v4396, %v4484
        %4486 = vmatmul.bf16.gmra.mxu0 %v3186
        %v4487 = vpop.f32.mrf.mxu0
        %v4488 = vadd.f32 %v4399, %v4487
        %v4489 = vpop.f32.mrf.mxu0
        %v4490 = vadd.f32 %v4401, %v4489
        %4491 = vmatmul.bf16.gmra.mxu0 %v3193
        %v4492 = vpop.f32.mrf.mxu0
        %v4493 = vadd.f32 %v4404, %v4492
        %v4494 = vpop.f32.mrf.mxu0
        %v4495 = vadd.f32 %v4406, %v4494
        %4496 = vmatmul.bf16.gmra.mxu0 %v3200
        %v4497 = vpop.f32.mrf.mxu0
        %v4498 = vadd.f32 %v4409, %v4497
        %v4499 = vpop.f32.mrf.mxu0
        %v4500 = vadd.f32 %v4411, %v4499
        %4501 = vmatmul.bf16.gmra.mxu0 %v3207
        %v4502 = vpop.f32.mrf.mxu0
        %v4503 = vadd.f32 %v4414, %v4502
        %v4504 = vpop.f32.mrf.mxu0
        %v4505 = vadd.f32 %v4416, %v4504
        %4506 = vmatmul.bf16.gmra.mxu0 %v3214
        %v4507 = vpop.f32.mrf.mxu0
        %v4508 = vadd.f32 %v4419, %v4507
        %v4509 = vpop.f32.mrf.mxu0
        %v4510 = vadd.f32 %v4421, %v4509
        %4511 = vmatmul.bf16.gmra.mxu0 %v3221
        %v4512 = vpop.f32.mrf.mxu0
        %v4513 = vadd.f32 %v4424, %v4512
        %v4514 = vpop.f32.mrf.mxu0
        %v4515 = vadd.f32 %v4426, %v4514
        %4516 = vmatmul.bf16.gmra.mxu0 %v3228
        %v4517 = vpop.f32.mrf.mxu0
        %v4518 = vadd.f32 %v4429, %v4517
        %v4519 = vpop.f32.mrf.mxu0
        %v4520 = vadd.f32 %v4431, %v4519
        %4521 = vdwg.mxu0
        %4522 = vmatpush.bf16.msra.mxu0 %v3737
        %4523 = vmatpush.bf16.msra.mxu0 %v3736
        %4524 = vmatpush.bf16.msra.mxu0 %v3735
        %4525 = vmatpush.bf16.msra.mxu0 %v3734
        %4526 = vmatpush.bf16.msra.mxu0 %v3733
        %4527 = vmatpush.bf16.msra.mxu0 %v3732
        %4528 = vmatpush.bf16.msra.mxu0 %v3731
        %4529 = vmatpush.bf16.msra.mxu0 %v3730
        %4530 = vmatmul.bf16.gmra.mxu0 %v3124
        %v4531 = vpop.f32.mrf.mxu0
        %v4532 = vadd.f32 %v4443, %v4531
        %v4533 = vpop.f32.mrf.mxu0
        %v4534 = vadd.f32 %v4445, %v4533
        %4535 = vmatmul.bf16.gmra.mxu0 %v3131
        %v4536 = vpop.f32.mrf.mxu0
        %v4537 = vadd.f32 %v4448, %v4536
        %v4538 = vpop.f32.mrf.mxu0
        %v4539 = vadd.f32 %v4450, %v4538
        %4540 = vmatmul.bf16.gmra.mxu0 %v3138
        %v4541 = vpop.f32.mrf.mxu0
        %v4542 = vadd.f32 %v4453, %v4541
        %v4543 = vpop.f32.mrf.mxu0
        %v4544 = vadd.f32 %v4455, %v4543
        %4545 = vmatmul.bf16.gmra.mxu0 %v3145
        %v4546 = vpop.f32.mrf.mxu0
        %v4547 = vadd.f32 %v4458, %v4546
        %v4548 = vpop.f32.mrf.mxu0
        %v4549 = vadd.f32 %v4460, %v4548
        %4550 = vmatmul.bf16.gmra.mxu0 %v3152
        %v4551 = vpop.f32.mrf.mxu0
        %v4552 = vadd.f32 %v4463, %v4551
        %v4553 = vpop.f32.mrf.mxu0
        %v4554 = vadd.f32 %v4465, %v4553
        %4555 = vmatmul.bf16.gmra.mxu0 %v3159
        %v4556 = vpop.f32.mrf.mxu0
        %v4557 = vadd.f32 %v4468, %v4556
        %v4558 = vpop.f32.mrf.mxu0
        %v4559 = vadd.f32 %v4470, %v4558
        %4560 = vmatmul.bf16.gmra.mxu0 %v3166
        %v4561 = vpop.f32.mrf.mxu0
        %v4562 = vadd.f32 %v4473, %v4561
        %v4563 = vpop.f32.mrf.mxu0
        %v4564 = vadd.f32 %v4475, %v4563
        %4565 = vmatmul.bf16.gmra.mxu0 %v3173
        %v4566 = vpop.f32.mrf.mxu0
        %v4567 = vadd.f32 %v4478, %v4566
        %v4568 = vpop.f32.mrf.mxu0
        %v4569 = vadd.f32 %v4480, %v4568
        %4570 = vmatmul.bf16.gmra.mxu0 %v3180
        %v4571 = vpop.f32.mrf.mxu0
        %v4572 = vadd.f32 %v4483, %v4571
        %v4573 = vpop.f32.mrf.mxu0
        %v4574 = vadd.f32 %v4485, %v4573
        %4575 = vmatmul.bf16.gmra.mxu0 %v3187
        %v4576 = vpop.f32.mrf.mxu0
        %v4577 = vadd.f32 %v4488, %v4576
        %v4578 = vpop.f32.mrf.mxu0
        %v4579 = vadd.f32 %v4490, %v4578
        %4580 = vmatmul.bf16.gmra.mxu0 %v3194
        %v4581 = vpop.f32.mrf.mxu0
        %v4582 = vadd.f32 %v4493, %v4581
        %v4583 = vpop.f32.mrf.mxu0
        %v4584 = vadd.f32 %v4495, %v4583
        %4585 = vmatmul.bf16.gmra.mxu0 %v3201
        %v4586 = vpop.f32.mrf.mxu0
        %v4587 = vadd.f32 %v4498, %v4586
        %v4588 = vpop.f32.mrf.mxu0
        %v4589 = vadd.f32 %v4500, %v4588
        %4590 = vmatmul.bf16.gmra.mxu0 %v3208
        %v4591 = vpop.f32.mrf.mxu0
        %v4592 = vadd.f32 %v4503, %v4591
        %v4593 = vpop.f32.mrf.mxu0
        %v4594 = vadd.f32 %v4505, %v4593
        %4595 = vmatmul.bf16.gmra.mxu0 %v3215
        %v4596 = vpop.f32.mrf.mxu0
        %v4597 = vadd.f32 %v4508, %v4596
        %v4598 = vpop.f32.mrf.mxu0
        %v4599 = vadd.f32 %v4510, %v4598
        %4600 = vmatmul.bf16.gmra.mxu0 %v3222
        %v4601 = vpop.f32.mrf.mxu0
        %v4602 = vadd.f32 %v4513, %v4601
        %v4603 = vpop.f32.mrf.mxu0
        %v4604 = vadd.f32 %v4515, %v4603
        %4605 = vmatmul.bf16.gmra.mxu0 %v3229
        %v4606 = vpop.f32.mrf.mxu0
        %v4607 = vadd.f32 %v4518, %v4606
        %v4608 = vpop.f32.mrf.mxu0
        %v4609 = vadd.f32 %v4520, %v4608
        %4610 = vdwg.mxu0
        %v4611 = vld [vmem:[%s240] sm:$0xff]
        %v4612 = vld [vmem:[%s240 + $0x8] sm:$0xff]
        %v4613 = vld [vmem:[%s240 + $0x10] sm:$0xff]
        %v4614 = vld [vmem:[%s240 + $0x18] sm:$0xff]
        %v4615 = vld [vmem:[%s240 + $0x20] sm:$0xff]
        %v4616 = vld [vmem:[%s240 + $0x28] sm:$0xff]
        %v4617 = vld [vmem:[%s240 + $0x30] sm:$0xff]
        %v4618 = vld [vmem:[%s240 + $0x38] sm:$0xff]
        %v4619 = vld [vmem:[%s240 + $0x40] sm:$0xff]
        %v4620 = vld [vmem:[%s240 + $0x48] sm:$0xff]
        %v4621 = vld [vmem:[%s240 + $0x50] sm:$0xff]
        %v4622 = vld [vmem:[%s240 + $0x58] sm:$0xff]
        %v4623 = vld [vmem:[%s240 + $0x60] sm:$0xff]
        %v4624 = vld [vmem:[%s240 + $0x68] sm:$0xff]
        %v4625 = vld [vmem:[%s240 + $0x70] sm:$0xff]
        %v4626 = vld [vmem:[%s240 + $0x78] sm:$0xff]
        %v4627 = vld [vmem:[%s240 + $0x80] sm:$0xff]
        %v4628 = vld [vmem:[%s240 + $0x88] sm:$0xff]
        %v4629 = vld [vmem:[%s240 + $0x90] sm:$0xff]
        %v4630 = vld [vmem:[%s240 + $0x98] sm:$0xff]
        %v4631 = vld [vmem:[%s240 + $0xa0] sm:$0xff]
        %v4632 = vld [vmem:[%s240 + $0xa8] sm:$0xff]
        %v4633 = vld [vmem:[%s240 + $0xb0] sm:$0xff]
        %v4634 = vld [vmem:[%s240 + $0xb8] sm:$0xff]
        %v4635 = vld [vmem:[%s240 + $0xc0] sm:$0xff]
        %v4636 = vld [vmem:[%s240 + $0xc8] sm:$0xff]
        %v4637 = vld [vmem:[%s240 + $0xd0] sm:$0xff]
        %v4638 = vld [vmem:[%s240 + $0xd8] sm:$0xff]
        %v4639 = vld [vmem:[%s240 + $0xe0] sm:$0xff]
        %v4640 = vld [vmem:[%s240 + $0xe8] sm:$0xff]
        %v4641 = vld [vmem:[%s240 + $0xf0] sm:$0xff]
        %v4642 = vld [vmem:[%s240 + $0xf8] sm:$0xff]
        %v4643 = vadd.f32 %v4532, %v4611
        %v4644 = vadd.f32 %v4534, %v4612
        %v4645 = vadd.f32 %v4537, %v4613
        %v4646 = vadd.f32 %v4539, %v4614
        %v4647 = vadd.f32 %v4542, %v4615
        %v4648 = vadd.f32 %v4544, %v4616
        %v4649 = vadd.f32 %v4547, %v4617
        %v4650 = vadd.f32 %v4549, %v4618
        %v4651 = vadd.f32 %v4552, %v4619
        %v4652 = vadd.f32 %v4554, %v4620
        %v4653 = vadd.f32 %v4557, %v4621
        %v4654 = vadd.f32 %v4559, %v4622
        %v4655 = vadd.f32 %v4562, %v4623
        %v4656 = vadd.f32 %v4564, %v4624
        %v4657 = vadd.f32 %v4567, %v4625
        %v4658 = vadd.f32 %v4569, %v4626
        %v4659 = vadd.f32 %v4572, %v4627
        %v4660 = vadd.f32 %v4574, %v4628
        %v4661 = vadd.f32 %v4577, %v4629
        %v4662 = vadd.f32 %v4579, %v4630
        %v4663 = vadd.f32 %v4582, %v4631
        %v4664 = vadd.f32 %v4584, %v4632
        %v4665 = vadd.f32 %v4587, %v4633
        %v4666 = vadd.f32 %v4589, %v4634
        %v4667 = vadd.f32 %v4592, %v4635
        %v4668 = vadd.f32 %v4594, %v4636
        %v4669 = vadd.f32 %v4597, %v4637
        %v4670 = vadd.f32 %v4599, %v4638
        %v4671 = vadd.f32 %v4602, %v4639
        %v4672 = vadd.f32 %v4604, %v4640
        %v4673 = vadd.f32 %v4607, %v4641
        %v4674 = vadd.f32 %v4609, %v4642
        %v4675 = vmax.f32 %v4643, 0.0
        %v4676 = vmax.f32 %v4644, 0.0
        %v4677 = vmax.f32 %v4645, 0.0
        %v4678 = vmax.f32 %v4646, 0.0
        %v4679 = vmax.f32 %v4647, 0.0
        %v4680 = vmax.f32 %v4648, 0.0
        %v4681 = vmax.f32 %v4649, 0.0
        %v4682 = vmax.f32 %v4650, 0.0
        %v4683 = vmax.f32 %v4651, 0.0
        %v4684 = vmax.f32 %v4652, 0.0
        %v4685 = vmax.f32 %v4653, 0.0
        %v4686 = vmax.f32 %v4654, 0.0
        %v4687 = vmax.f32 %v4655, 0.0
        %v4688 = vmax.f32 %v4656, 0.0
        %v4689 = vmax.f32 %v4657, 0.0
        %v4690 = vmax.f32 %v4658, 0.0
        %v4691 = vmax.f32 %v4659, 0.0
        %v4692 = vmax.f32 %v4660, 0.0
        %v4693 = vmax.f32 %v4661, 0.0
        %v4694 = vmax.f32 %v4662, 0.0
        %v4695 = vmax.f32 %v4663, 0.0
        %v4696 = vmax.f32 %v4664, 0.0
        %v4697 = vmax.f32 %v4665, 0.0
        %v4698 = vmax.f32 %v4666, 0.0
        %v4699 = vmax.f32 %v4667, 0.0
        %v4700 = vmax.f32 %v4668, 0.0
        %v4701 = vmax.f32 %v4669, 0.0
        %v4702 = vmax.f32 %v4670, 0.0
        %v4703 = vmax.f32 %v4671, 0.0
        %v4704 = vmax.f32 %v4672, 0.0
        %v4705 = vmax.f32 %v4673, 0.0
        %v4706 = vmax.f32 %v4674, 0.0
        %4707 = vst [vmem:[%s277] sm:$0xff] %v4675
        %4708 = vst [vmem:[%s277 + $0x8] sm:$0xff] %v4676
        %4709 = vst [vmem:[%s277 + $0x10] sm:$0xff] %v4677
        %4710 = vst [vmem:[%s277 + $0x18] sm:$0xff] %v4678
        %4711 = vst [vmem:[%s277 + $0x20] sm:$0xff] %v4679
        %4712 = vst [vmem:[%s277 + $0x28] sm:$0xff] %v4680
        %4713 = vst [vmem:[%s277 + $0x30] sm:$0xff] %v4681
        %4714 = vst [vmem:[%s277 + $0x38] sm:$0xff] %v4682
        %4715 = vst [vmem:[%s277 + $0x40] sm:$0xff] %v4683
        %4716 = vst [vmem:[%s277 + $0x48] sm:$0xff] %v4684
        %4717 = vst [vmem:[%s277 + $0x50] sm:$0xff] %v4685
        %4718 = vst [vmem:[%s277 + $0x58] sm:$0xff] %v4686
        %4719 = vst [vmem:[%s277 + $0x60] sm:$0xff] %v4687
        %4720 = vst [vmem:[%s277 + $0x68] sm:$0xff] %v4688
        %4721 = vst [vmem:[%s277 + $0x70] sm:$0xff] %v4689
        %4722 = vst [vmem:[%s277 + $0x78] sm:$0xff] %v4690
        %4723 = vst [vmem:[%s277 + $0x80] sm:$0xff] %v4691
        %4724 = vst [vmem:[%s277 + $0x88] sm:$0xff] %v4692
        %4725 = vst [vmem:[%s277 + $0x90] sm:$0xff] %v4693
        %4726 = vst [vmem:[%s277 + $0x98] sm:$0xff] %v4694
        %4727 = vst [vmem:[%s277 + $0xa0] sm:$0xff] %v4695
        %4728 = vst [vmem:[%s277 + $0xa8] sm:$0xff] %v4696
        %4729 = vst [vmem:[%s277 + $0xb0] sm:$0xff] %v4697
        %4730 = vst [vmem:[%s277 + $0xb8] sm:$0xff] %v4698
        %4731 = vst [vmem:[%s277 + $0xc0] sm:$0xff] %v4699
        %4732 = vst [vmem:[%s277 + $0xc8] sm:$0xff] %v4700
        %4733 = vst [vmem:[%s277 + $0xd0] sm:$0xff] %v4701
        %4734 = vst [vmem:[%s277 + $0xd8] sm:$0xff] %v4702
        %4735 = vst [vmem:[%s277 + $0xe0] sm:$0xff] %v4703
        %4736 = vst [vmem:[%s277 + $0xe8] sm:$0xff] %v4704
        %4737 = vst [vmem:[%s277 + $0xf0] sm:$0xff] %v4705
        %4738 = vst [vmem:[%s277 + $0xf8] sm:$0xff] %v4706
        %s4739 = sand.u32 %s141, 1
        %s4740 = scalar_lea.sflag [#allocation5], %s4739
        %s4741 = sand.u32 %s141, 1
        %s4742 = smul.addr %s4741, 256
        %s4743 = scalar_lea.vmem [#allocation9], %s4742
        // Predicated region
        $region53: #{tpu_custom_call.1} parent=39 // pred_check
          %p4744 = pneg %p151
        $region54: #{tpu_custom_call.1} parent=39 // pred_check_branch
          %4746 = sbr.rel (%p4744) target = $region56
        $region55: #{tpu_custom_call.1} parent=39 // pred_region
          %4748 = vsyncadd %s4740, 0
          %s4749 = smul.addr %s23, 32
          %s4750 = smul.addr %s4749, 8
          %s4751 = scalar_lea.hbm %s5, %s4750
          %s4752 = sshll.u32 %s4743, 4
          %s4753 = int_to_ptr.vmem [resolvable:$true] %s4752
          %s4754 = sshll.u32 %s4751, 4
          %s4755 = int_to_ptr.hbm [resolvable:$true] %s4754
          %4760 = dma.vmem_to_hbm [thread:$0]  %s4753, 4096, %s4755, %s4740, 128, 128, 8
        $region56: #{tpu_custom_call.1} parent=39 // pred_fallthru
          _
      $region40: #{tpu_custom_call.1} parent=5 // pred_fallthru
        _
      %p4761 = scmp.le.s32.totalorder 2, %s18
      // Predicated region
      $region57: #{tpu_custom_call.1} parent=5 // pred_check
        %p4762 = pneg %p4761
      $region58: #{tpu_custom_call.1} parent=5 // pred_check_branch
        %4764 = sbr.rel (%p4762) target = $region60
      $region59: #{tpu_custom_call.1} parent=5 // pred_region
        %s4765 = ssub.s32 %s18, 2
        // Predicated region
        $region61: #{tpu_custom_call.1} parent=59 // pred_check
          %p4766 = pneg %p157
        $region62: #{tpu_custom_call.1} parent=59 // pred_check_branch
          %4768 = sbr.rel (%p4766) target = $region64
        $region63: #{tpu_custom_call.1} parent=59 // pred_region
          %s4769 = sand.u32 %s142, 1
          %s4770 = scalar_lea.sflag [#allocation5], %s4769
          %s4771 = sand.u32 %s142, 1
          %s4772 = smul.addr %s4771, 256
          %s4773 = scalar_lea.vmem [#allocation9], %s4772
          %4775 = dma.done %s4770, 4096
        $region64: #{tpu_custom_call.1} parent=59 // pred_fallthru
          _
      $region60: #{tpu_custom_call.1} parent=5 // pred_fallthru
        _
    $region6: #{tpu_custom_call.1} parent=1 // loop_footer
      %s22 = sadd.s32 1, %s18
    $region7: #{tpu_custom_call.1} parent=1 // loop_footer_branch
      %17 = sbr.rel target = $region3
    $region8: #{tpu_custom_call.1} parent=1 // loop_exit
      _
    %4776 = vsyncpa [#allocation4], 1
    %s4777 = scalar_lea.sflag [#allocation4], 1
    %4778 = vsyncpa %s4777, 1
    %4779 = vsyncpa [#allocation7], 1
    %4780 = vsyncpa [#allocation5], 1
    %s4781 = scalar_lea.sflag [#allocation5], 1
    %4782 = vsyncpa %s4781, 1

</llo_original>
